<compile_context>
chip_gen: v7x
topology: tpu7x:2x2x1
jax: 0.10.0
libtpu: 0.0.40
codegen_flags: <defaults>
</compile_context>

<pallas_src>
import functools
import math

import jax
import jax.numpy as jnp
from jax.experimental import pallas as pl
from jax.experimental.pallas import tpu as pltpu

EPS = 1e-5
LANE = 128

_COMPILER_PARAMS = pltpu.CompilerParams(
    dimension_semantics=("parallel",),        # shard the batch axis across TCs (v7x)
    vmem_limit_bytes=64 * 1024 * 1024,        # explicit scoped-VMEM budget (<= v7x physical)
)


# ---------------------------------------------------------------------------
# BlockSpec / misc helpers
# ---------------------------------------------------------------------------
def _per_image_spec(tail):
    """Block = one batch element of an (N, *tail) array."""
    tail = tuple(int(t) for t in tail)
    zeros = (0,) * len(tail)
    return pl.BlockSpec((None,) + tail, lambda i: (i,) + zeros)


def _resident_spec(shape):
    """Whole-array block, constant index map -> stays resident across grid steps."""
    shape = tuple(int(t) for t in shape)
    zeros = (0,) * len(shape)
    return pl.BlockSpec(shape, lambda i: zeros)


def _cost(flops, shapes_dtypes):
    nbytes = sum(math.prod(tuple(s)) * jnp.dtype(d).itemsize for s, d in shapes_dtypes)
    return pl.CostEstimate(flops=int(flops), transcendentals=0, bytes_accessed=int(nbytes))


def _pad_last(a, c):
    pad = c - a.shape[-1]
    if pad == 0:
        return a
    return jnp.pad(a, [(0, 0)] * (a.ndim - 1) + [(0, pad)])


def _pad_gb(gamma, beta, cp):
    p = cp - gamma.shape[0]
    g = jnp.pad(gamma.astype(jnp.float32), (0, p), constant_values=1.0).reshape(1, cp)
    b = jnp.pad(beta.astype(jnp.float32), (0, p), constant_values=0.0).reshape(1, cp)
    return g, b


def _bn_scale_shift(stats, count, gamma, beta):
    """(N, 2, Cp) partial [sum, sumsq] -> (2, Cp) [scale, shift] (training-mode BN)."""
    tot = jnp.sum(stats, axis=0)                       # (2, Cp)
    mean = tot[0:1, :] / count
    var = jnp.maximum(tot[1:2, :] / count - mean * mean, 0.0)
    scale = gamma * jax.lax.rsqrt(var + EPS)
    shift = beta - mean * scale
    return jnp.concatenate([scale, shift], axis=0)     # (2, Cp) float32


# ---------------------------------------------------------------------------
# In-kernel building blocks
# ---------------------------------------------------------------------------
def _store_sum_sumsq(stats_ref, y):
    stats_ref[0:1, :] = jnp.sum(y, axis=0, keepdims=True)
    stats_ref[1:2, :] = jnp.sum(y * y, axis=0, keepdims=True)


def _image_conv(img, wimg_ref):
    # 1x1 conv over only 3 input channels: 3 VPU FMAs, keep the MXU free.
    yi = img[:, 0:1] * wimg_ref[0:1, :]
    yi = yi + img[:, 1:2] * wimg_ref[1:2, :]
    yi = yi + img[:, 2:3] * wimg_ref[2:3, :]
    return yi


def _downsample_conv(xpool_ref, wds_ref):
    # 1x1 conv of the avg-pooled input (bf16 inputs, f32 accumulation).
    return jnp.dot(xpool_ref[...].astype(jnp.bfloat16), wds_ref[...],
                   preferred_element_type=jnp.float32)


def _conv3x3_from_phases(xph_ref, w_ref, *, stride, ho, wo, cp):
    # 3x3 conv (stride handled by the polyphase input layout) as 9 shifted matmuls.
    m = ho * wo
    cin = xph_ref.shape[-1]
    acc = jnp.zeros((m, cp), jnp.float32)
    for ky in range(3):
        for kx in range(3):
            py, qy = ky % stride, ky // stride
            px, qx = kx % stride, kx // stride
            p = py * stride + px
            xs = xph_ref[p, qy:qy + ho, qx:qx + wo, :].reshape(m, cin)
            acc = acc + jnp.dot(xs, w_ref[ky * 3 + kx],
                                preferred_element_type=jnp.float32)
    return acc


# ---------------------------------------------------------------------------
# Kernel bodies
# ---------------------------------------------------------------------------
def _make_kernel_a(*, stride, ho, wo, cp, with_ds):
    """conv1 (pre-BN) + partial batch stats for bn1 / ImageProcess-bn / downsample-bn."""
    def kernel(*refs):
        if with_ds:
            (xph_ref, xpool_ref, img_ref, w1_ref, wds_ref, wimg_ref,
             y1_ref, st1_ref, sti_ref, std_ref) = refs
        else:
            (xph_ref, img_ref, w1_ref, wimg_ref, y1_ref, st1_ref, sti_ref) = refs

        y1 = _conv3x3_from_phases(xph_ref, w1_ref, stride=stride, ho=ho, wo=wo, cp=cp)
        y1_ref[...] = y1.reshape(ho, wo, cp)
        _store_sum_sumsq(st1_ref, y1)

        yi = _image_conv(img_ref[...], wimg_ref)       # only stats needed here
        _store_sum_sumsq(sti_ref, yi)

        if with_ds:
            yd = _downsample_conv(xpool_ref, wds_ref)  # only stats needed here
            _store_sum_sumsq(std_ref, yd)
    return kernel


def _make_kernel_b(*, ho, wo, cp):
    """bn1+relu (global stats) fused with conv2 (pre-BN) + partial bn2 stats."""
    m = ho * wo

    def kernel(y1_ref, w2_ref, ss1_ref, y2_ref, st2_ref, zpad_ref):
        z = jnp.maximum(y1_ref[...] * ss1_ref[0:1, :] + ss1_ref[1:2, :], 0.0)
        # zero-padded copy in VMEM so conv2 becomes 9 shifted slice+matmul terms
        zpad_ref[...] = jnp.zeros(zpad_ref.shape, zpad_ref.dtype)
        zpad_ref[1:ho + 1, 1:wo + 1, :] = z
        acc = jnp.zeros((m, cp), jnp.float32)
        for ky in range(3):
            for kx in range(3):
                zs = zpad_ref[ky:ky + ho, kx:kx + wo, :].reshape(m, cp)
                acc = acc + jnp.dot(zs.astype(jnp.bfloat16), w2_ref[ky * 3 + kx],
                                    preferred_element_type=jnp.float32)
        y2_ref[...] = acc
        _store_sum_sumsq(st2_ref, acc)
    return kernel


def _make_kernel_c(*, cp, gama, with_ds):
    """bn2+relu, image branch BN, downsample branch (or identity), residual add, relu."""
    def kernel(*refs):
        if with_ds:
            (y2_ref, xpool_ref, img_ref, wds_ref, wimg_ref,
             ss2_ref, ssi_ref, ssd_ref, out_ref) = refs
        else:
            (y2_ref, xid_ref, img_ref, wimg_ref, ss2_ref, ssi_ref, out_ref) = refs

        out = jnp.maximum(y2_ref[...] * ss2_ref[0:1, :] + ss2_ref[1:2, :], 0.0)  # relu(bn2(conv2))
        yi = _image_conv(img_ref[...], wimg_ref)
        out = out + gama * (yi * ssi_ref[0:1, :] + ssi_ref[1:2, :])              # + gama*bn(ImageProcess)
        if with_ds:
            yd = _downsample_conv(xpool_ref, wds_ref)
            out = out + (yd * ssd_ref[0:1, :] + ssd_ref[1:2, :])                 # + bn(downsample)
        else:
            out = out + xid_ref[...]                                             # + identity
        out_ref[...] = jnp.maximum(out, 0.0)
    return kernel


# ---------------------------------------------------------------------------
# Plain-JAX glue (layout plumbing only: transposes, polyphase split, nearest resize)
# ---------------------------------------------------------------------------
def _nearest_resize_nchw(img, size):
    # matches F.interpolate(img, size) with default mode='nearest'
    n, c, h, w = img.shape
    ri = (jnp.arange(size) * h) // size
    ci = (jnp.arange(size) * w) // size
    return img[:, :, ri, :][:, :, :, ci]


def neural_resnet34_bottleneck_forward(x, input_image, params, *, gama, image_size, stride):
    n, cin, h, w = x.shape
    planes = params["w1"].shape[0]
    s = int(stride)
    assert h % s == 0 and w % s == 0, "spatial dims must be divisible by stride"
    ho, wo = h // s, w // s
    # The residual add out + gama*ImageProcess(resize(img)) + identity requires all
    # three branches to share the same spatial size.
    assert ho == image_size and wo == image_size, \
        "image_size must equal H//stride (and W//stride) for the residual add"
    m = ho * wo
    cp = max(LANE, ((planes + LANE - 1) // LANE) * LANE)
    ds_identity = (s == 1 and cin == planes)
    f32, bf16 = jnp.float32, jnp.bfloat16

    x_nhwc = jnp.transpose(x, (0, 2, 3, 1)).astype(f32)

    # conv1 input: zero-pad spatially, then polyphase split so the strided 3x3 conv
    # becomes 9 unit-offset slice+matmul terms inside the kernel (no im2col in HBM).
    xpad = jnp.pad(x_nhwc, ((0, 0), (1, 1), (1, 1), (0, 0)))
    he = -((h + 2) // -s) * s
    we = -((w + 2) // -s) * s
    xpad = jnp.pad(xpad, ((0, 0), (0, he - (h + 2)), (0, we - (w + 2)), (0, 0)))
    hph, wph = he // s, we // s
    x_ph = (xpad.reshape(n, hph, s, wph, s, cin)
                .transpose(0, 2, 4, 1, 3, 5)
                .reshape(n * s * s, hph, wph, cin)
                .astype(bf16))

    # weights: channels-last, output channels zero-padded to cp, bf16 for the MXU
    w1 = _pad_last(jnp.transpose(params["w1"], (2, 3, 1, 0)).reshape(9, cin, planes), cp).astype(bf16)
    w2 = jnp.transpose(params["w2"], (2, 3, 1, 0)).reshape(9, planes, planes)
    w2 = jnp.pad(w2, ((0, 0), (0, cp - planes), (0, cp - planes))).astype(bf16)
    wimg = _pad_last(params["w_img"].reshape(planes, 3).T, cp).astype(f32)

    # ImageProcess input: nearest resize (F.interpolate default) then NHWC rows
    img_rs = _nearest_resize_nchw(input_image.astype(f32), image_size)
    img_flat = jnp.transpose(img_rs, (0, 2, 3, 1)).reshape(n, m, 3)

    # BN affine params padded to cp
    g1, b1 = _pad_gb(params["bn1_g"], params["bn1_b"], cp)
    g2, b2 = _pad_gb(params["bn2_g"], params["bn2_b"], cp)
    gi, bi = _pad_gb(params["bn_img_g"], params["bn_img_b"], cp)

    if ds_identity:
        x_id = _pad_last(x_nhwc.reshape(n, m, cin), cp)
        xpool = wds = gd = bd = None
    else:
        xpool = x_nhwc.reshape(n, ho, s, wo, s, cin).mean(axis=(2, 4)).reshape(n, m, cin)
        wds = _pad_last(params["w_ds"].reshape(planes, cin).T, cp).astype(bf16)
        gd, bd = _pad_gb(params["bn_ds_g"], params["bn_ds_b"], cp)
        x_id = None

    stat_shape = jax.ShapeDtypeStruct((n, 2, cp), f32)
    xph_spec = pl.BlockSpec((s * s, hph, wph, cin), lambda i: (i, 0, 0, 0))

    # ---- pass 1: conv1 + BN statistics (bn1 / ImageProcess-bn / downsample-bn) ----
    kernel_a = _make_kernel_a(stride=s, ho=ho, wo=wo, cp=cp, with_ds=not ds_identity)
    if ds_identity:
        a_args = (x_ph, img_flat, w1, wimg)
        a_in_specs = [xph_spec, _per_image_spec((m, 3)),
                      _resident_spec(w1.shape), _resident_spec(wimg.shape)]
        a_out_shape = (jax.ShapeDtypeStruct((n, ho, wo, cp), f32), stat_shape, stat_shape)
        a_out_specs = (_per_image_spec((ho, wo, cp)), _per_image_spec((2, cp)),
                       _per_image_spec((2, cp)))
    else:
        a_args = (x_ph, xpool, img_flat, w1, wds, wimg)
        a_in_specs = [xph_spec, _per_image_spec((m, cin)), _per_image_spec((m, 3)),
                      _resident_spec(w1.shape), _resident_spec(wds.shape),
                      _resident_spec(wimg.shape)]
        a_out_shape = (jax.ShapeDtypeStruct((n, ho, wo, cp), f32),
                       stat_shape, stat_shape, stat_shape)
        a_out_specs = (_per_image_spec((ho, wo, cp)), _per_image_spec((2, cp)),
                       _per_image_spec((2, cp)), _per_image_spec((2, cp)))

    flops_a = 2 * n * m * 9 * cin * cp + 2 * n * m * 3 * cp + 6 * n * m * cp
    if not ds_identity:
        flops_a += 2 * n * m * cin * cp
    cost_a = _cost(flops_a, [(a.shape, a.dtype) for a in a_args]
                   + [(o.shape, o.dtype) for o in a_out_shape])

    a_res = pl.pallas_call(
        kernel_a, grid=(n,),
        in_specs=a_in_specs, out_specs=a_out_specs, out_shape=a_out_shape,
        compiler_params=_COMPILER_PARAMS, cost_estimate=cost_a,
    )(*a_args)
    if ds_identity:
        y1, st1, sti = a_res
        std = None
    else:
        y1, st1, sti, std = a_res

    count = float(n * m)
    ss1 = _bn_scale_shift(st1, count, g1, b1)
    ssi = _bn_scale_shift(sti, count, gi, bi)

    # ---- pass 2: bn1+relu fused with conv2, plus bn2 statistics ----
    kernel_b = _make_kernel_b(ho=ho, wo=wo, cp=cp)
    flops_b = 2 * n * m * 9 * cp * cp + 8 * n * m * cp
    cost_b = _cost(flops_b, [(y1.shape, y1.dtype), (w2.shape, w2.dtype), ((2, cp), f32),
                             ((n, m, cp), f32), ((n, 2, cp), f32)])
    y2, st2 = pl.pallas_call(
        kernel_b, grid=(n,),
        in_specs=[_per_image_spec((ho, wo, cp)), _resident_spec(w2.shape),
                  _resident_spec((2, cp))],
        out_specs=(_per_image_spec((m, cp)), _per_image_spec((2, cp))),
        out_shape=(jax.ShapeDtypeStruct((n, m, cp), f32), stat_shape),
        scratch_shapes=[pltpu.VMEM((ho + 2, wo + 2, cp), f32)],
        compiler_params=_COMPILER_PARAMS, cost_estimate=cost_b,
    )(y1, w2, ss1)

    ss2 = _bn_scale_shift(st2, count, g2, b2)

    # ---- pass 3: bn2+relu, image branch, shortcut branch, residual add + relu ----
    kernel_c = _make_kernel_c(cp=cp, gama=float(gama), with_ds=not ds_identity)
    if ds_identity:
        c_args = (y2, x_id, img_flat, wimg, ss2, ssi)
        c_in_specs = [_per_image_spec((m, cp)), _per_image_spec((m, cp)),
                      _per_image_spec((m, 3)), _resident_spec(wimg.shape),
                      _resident_spec((2, cp)), _resident_spec((2, cp))]
    else:
        ssd = _bn_scale_shift(std, count, gd, bd)
        c_args = (y2, xpool, img_flat, wds, wimg, ss2, ssi, ssd)
        c_in_specs = [_per_image_spec((m, cp)), _per_image_spec((m, cin)),
                      _per_image_spec((m, 3)), _resident_spec(wds.shape),
                      _resident_spec(wimg.shape), _resident_spec((2, cp)),
                      _resident_spec((2, cp)), _resident_spec((2, cp))]
    flops_c = 2 * n * m * 3 * cp + 10 * n * m * cp
    if not ds_identity:
        flops_c += 2 * n * m * cin * cp
    cost_c = _cost(flops_c, [(a.shape, a.dtype) for a in c_args] + [((n, m, cp), f32)])

    out_flat = pl.pallas_call(
        kernel_c, grid=(n,),
        in_specs=c_in_specs, out_specs=_per_image_spec((m, cp)),
        out_shape=jax.ShapeDtypeStruct((n, m, cp), f32),
        compiler_params=_COMPILER_PARAMS, cost_estimate=cost_c,
    )(*c_args)

    out = out_flat.reshape(n, ho, wo, cp)[..., :planes]
    out = jnp.transpose(out, (0, 3, 1, 2))
    return out, input_image


# ---------------------------------------------------------------------------
# Deterministic parameter init (shapes from the module's __init__)
# ---------------------------------------------------------------------------
def init_params(key, inplanes, planes):
    ks = jax.random.split(key, 4)
    f = lambda k, shp: 0.1 * jax.random.normal(k, shp, jnp.float32)
    return {
        "w1": f(ks[0], (planes, inplanes, 3, 3)),
        "bn1_g": jnp.ones((planes,), jnp.float32), "bn1_b": jnp.zeros((planes,), jnp.float32),
        "w2": f(ks[1], (planes, planes, 3, 3)),
        "bn2_g": jnp.ones((planes,), jnp.float32), "bn2_b": jnp.zeros((planes,), jnp.float32),
        "w_ds": f(ks[2], (planes, inplanes, 1, 1)),
        "bn_ds_g": jnp.ones((planes,), jnp.float32), "bn_ds_b": jnp.zeros((planes,), jnp.float32),
        "w_img": f(ks[3], (planes, 3, 1, 1)),
        "bn_img_g": jnp.ones((planes,), jnp.float32), "bn_img_b": jnp.zeros((planes,), jnp.float32),
    }


# ---------------------------------------------------------------------------
# Pure-JAX reference (f32, HIGHEST precision) for a sanity check
# ---------------------------------------------------------------------------
def _bn_ref_nchw(y, gamma, beta):
    mean = y.mean(axis=(0, 2, 3), keepdims=True)
    var = ((y - mean) ** 2).mean(axis=(0, 2, 3), keepdims=True)
    return (y - mean) * jax.lax.rsqrt(var + EPS) * gamma.reshape(1, -1, 1, 1) + beta.reshape(1, -1, 1, 1)


def reference_forward(x, input_image, params, *, gama, image_size, stride):
    conv = functools.partial(jax.lax.conv_general_dilated, precision=jax.lax.Precision.HIGHEST)
    n, cin, h, w = x.shape
    planes = params["w1"].shape[0]
    out = jax.nn.relu(_bn_ref_nchw(conv(x, params["w1"], (stride, stride), ((1, 1), (1, 1))),
                                   params["bn1_g"], params["bn1_b"]))
    out = jax.nn.relu(_bn_ref_nchw(conv(out, params["w2"], (1, 1), ((1, 1), (1, 1))),
                                   params["bn2_g"], params["bn2_b"]))
    if stride > 1 or cin != planes:
        xp = x.reshape(n, cin, h // stride, stride, w // stride, stride).mean(axis=(3, 5))
        identity = _bn_ref_nchw(conv(xp, params["w_ds"], (1, 1), ((0, 0), (0, 0))),
                                params["bn_ds_g"], params["bn_ds_b"])
    else:
        identity = x
    img_rs = _nearest_resize_nchw(input_image, image_size)
    ip = _bn_ref_nchw(conv(img_rs, params["w_img"], (1, 1), ((0, 0), (0, 0))),
                      params["bn_img_g"], params["bn_img_b"])
    return jax.nn.relu(out + gama * ip + identity), input_image


if __name__ == "__main__":
    key = jax.random.PRNGKey(0)

    # Case 1: strided block with downsample branch (stage-transition configuration).
    N, INPLANES, PLANES, H = 2, 4, 8, 16
    STRIDE, IMAGE_SIZE, GAMA = 2, 8, 0.5
    kp, kx, ki = jax.random.split(key, 3)
    params = init_params(kp, INPLANES, PLANES)
    x = jax.random.normal(kx, (N, INPLANES, H, H), jnp.float32)
    input_image = jax.random.normal(ki, (N, 3, H, H), jnp.float32)

    fwd = jax.jit(functools.partial(neural_resnet34_bottleneck_forward,
                                    gama=GAMA, image_size=IMAGE_SIZE, stride=STRIDE))
    out, img_out = fwd(x, input_image, params)
    out = jax.block_until_ready(out)
    ref_out, _ = reference_forward(x, input_image, params,
                                   gama=GAMA, image_size=IMAGE_SIZE, stride=STRIDE)
    assert out.shape == (N, PLANES, IMAGE_SIZE, IMAGE_SIZE)
    # bf16 MXU inputs (f32 accumulation / BN) -> slightly wider tolerance vs f32 reference
    assert jnp.allclose(out, ref_out, atol=5e-2, rtol=5e-2)
    assert jnp.array_equal(img_out, input_image)

    # Case 2: identity shortcut (stride=1, inplanes == planes) -> specialized kernels.
    N2, C2, H2 = 2, 8, 16
    kp2, kx2, ki2 = jax.random.split(jax.random.PRNGKey(1), 3)
    params2 = init_params(kp2, C2, C2)
    x2 = jax.random.normal(kx2, (N2, C2, H2, H2), jnp.float32)
    img2 = jax.random.normal(ki2, (N2, 3, H2, H2), jnp.float32)

    fwd2 = jax.jit(functools.partial(neural_resnet34_bottleneck_forward,
                                     gama=0.3, image_size=H2, stride=1))
    out2, _ = fwd2(x2, img2, params2)
    out2 = jax.block_until_ready(out2)
    ref2, _ = reference_forward(x2, img2, params2, gama=0.3, image_size=H2, stride=1)
    assert out2.shape == (N2, C2, H2, H2)
    assert jnp.allclose(out2, ref2, atol=5e-2, rtol=5e-2)

    print("KERNEL_OK")
</pallas_src>

<mosaic_0001>
module attributes {stable_mosaic.version = 11 : i64} {
  func.func @kernel(%arg0: i32, %arg1: memref<4x9x9x4xbf16, #tpu.memory_space<vmem>>, %arg2: memref<1x64x4xf32, #tpu.memory_space<vmem>>, %arg3: memref<1x64x3xf32, #tpu.memory_space<vmem>>, %arg4: memref<9x4x128xbf16, #tpu.memory_space<vmem>>, %arg5: memref<4x128xbf16, #tpu.memory_space<vmem>>, %arg6: memref<3x128xf32, #tpu.memory_space<vmem>>, %arg7: memref<1x8x8x128xf32, #tpu.memory_space<vmem>>, %arg8: memref<1x2x128xf32, #tpu.memory_space<vmem>>, %arg9: memref<1x2x128xf32, #tpu.memory_space<vmem>>, %arg10: memref<1x2x128xf32, #tpu.memory_space<vmem>>) attributes {dimension_semantics = [#tpu.dimension_semantics<parallel>], iteration_bounds = array<i64: 2>, scalar_prefetch = 0 : i64, scratch_operands = 0 : i64, tpu.core_type = #tpu.core_type<tc>, window_params = [{transform_indices = @transform_0, window_bounds = array<i64: 4, 9, 9, 4>}, {transform_indices = @transform_1, window_bounds = array<i64: 1, 64, 4>}, {transform_indices = @transform_2, window_bounds = array<i64: 1, 64, 3>}, {pipeline_mode = #tpu.pipeline_mode<synchronous>, transform_indices = @transform_3, window_bounds = array<i64: 9, 4, 128>}, {pipeline_mode = #tpu.pipeline_mode<synchronous>, transform_indices = @transform_4, window_bounds = array<i64: 4, 128>}, {pipeline_mode = #tpu.pipeline_mode<synchronous>, transform_indices = @transform_5, window_bounds = array<i64: 3, 128>}, {transform_indices = @transform_6, window_bounds = array<i64: 1, 8, 8, 128>}, {transform_indices = @transform_7, window_bounds = array<i64: 1, 2, 128>}, {transform_indices = @transform_8, window_bounds = array<i64: 1, 2, 128>}, {transform_indices = @transform_9, window_bounds = array<i64: 1, 2, 128>}]} {
    %cst = arith.constant 0.000000e+00 : f32
    %0 = vector.broadcast %cst : f32 to vector<64x128xf32>
    %c0 = arith.constant 0 : index
    %c0_0 = arith.constant 0 : index
    %c0_1 = arith.constant 0 : index
    %c0_2 = arith.constant 0 : index
    %1 = vector.load %arg1[%c0, %c0_0, %c0_1, %c0_2] : memref<4x9x9x4xbf16, #tpu.memory_space<vmem>>, vector<1x8x8x4xbf16>
    %2 = vector.shape_cast %1 : vector<1x8x8x4xbf16> to vector<8x8x4xbf16>
    %3 = vector.shape_cast %2 : vector<8x8x4xbf16> to vector<64x4xbf16>
    %c0_3 = arith.constant 0 : index
    %c0_4 = arith.constant 0 : index
    %c0_5 = arith.constant 0 : index
    %4 = vector.load %arg4[%c0_3, %c0_4, %c0_5] : memref<9x4x128xbf16, #tpu.memory_space<vmem>>, vector<1x4x128xbf16>
    %5 = vector.shape_cast %4 : vector<1x4x128xbf16> to vector<4x128xbf16>
    %cst_6 = arith.constant dense<0.000000e+00> : vector<64x128xf32>
    %6 = tpu.matmul %3, %5, %cst_6 {dimension_numbers = #tpu.dot_dimension_numbers<[1], [0], [0], [1], [0, 0, 1, 1], [], []>} : vector<64x4xbf16>, vector<4x128xbf16>, vector<64x128xf32> -> vector<64x128xf32>
    %7 = arith.addf %0, %6 : vector<64x128xf32>
    %c1 = arith.constant 1 : index
    %c0_7 = arith.constant 0 : index
    %c0_8 = arith.constant 0 : index
    %c0_9 = arith.constant 0 : index
    %8 = vector.load %arg1[%c1, %c0_7, %c0_8, %c0_9] : memref<4x9x9x4xbf16, #tpu.memory_space<vmem>>, vector<1x8x8x4xbf16>
    %9 = vector.shape_cast %8 : vector<1x8x8x4xbf16> to vector<8x8x4xbf16>
    %10 = vector.shape_cast %9 : vector<8x8x4xbf16> to vector<64x4xbf16>
    %c1_10 = arith.constant 1 : index
    %c0_11 = arith.constant 0 : index
    %c0_12 = arith.constant 0 : index
    %11 = vector.load %arg4[%c1_10, %c0_11, %c0_12] : memref<9x4x128xbf16, #tpu.memory_space<vmem>>, vector<1x4x128xbf16>
    %12 = vector.shape_cast %11 : vector<1x4x128xbf16> to vector<4x128xbf16>
    %cst_13 = arith.constant dense<0.000000e+00> : vector<64x128xf32>
    %13 = tpu.matmul %10, %12, %cst_13 {dimension_numbers = #tpu.dot_dimension_numbers<[1], [0], [0], [1], [0, 0, 1, 1], [], []>} : vector<64x4xbf16>, vector<4x128xbf16>, vector<64x128xf32> -> vector<64x128xf32>
    %14 = arith.addf %7, %13 : vector<64x128xf32>
    %c0_14 = arith.constant 0 : index
    %c0_15 = arith.constant 0 : index
    %c1_16 = arith.constant 1 : index
    %c0_17 = arith.constant 0 : index
    %15 = vector.load %arg1[%c0_14, %c0_15, %c1_16, %c0_17] : memref<4x9x9x4xbf16, #tpu.memory_space<vmem>>, vector<1x8x8x4xbf16>
    %16 = vector.shape_cast %15 : vector<1x8x8x4xbf16> to vector<8x8x4xbf16>
    %17 = vector.shape_cast %16 : vector<8x8x4xbf16> to vector<64x4xbf16>
    %c2 = arith.constant 2 : index
    %c0_18 = arith.constant 0 : index
    %c0_19 = arith.constant 0 : index
    %18 = vector.load %arg4[%c2, %c0_18, %c0_19] : memref<9x4x128xbf16, #tpu.memory_space<vmem>>, vector<1x4x128xbf16>
    %19 = vector.shape_cast %18 : vector<1x4x128xbf16> to vector<4x128xbf16>
    %cst_20 = arith.constant dense<0.000000e+00> : vector<64x128xf32>
    %20 = tpu.matmul %17, %19, %cst_20 {dimension_numbers = #tpu.dot_dimension_numbers<[1], [0], [0], [1], [0, 0, 1, 1], [], []>} : vector<64x4xbf16>, vector<4x128xbf16>, vector<64x128xf32> -> vector<64x128xf32>
    %21 = arith.addf %14, %20 : vector<64x128xf32>
    %c2_21 = arith.constant 2 : index
    %c0_22 = arith.constant 0 : index
    %c0_23 = arith.constant 0 : index
    %c0_24 = arith.constant 0 : index
    %22 = vector.load %arg1[%c2_21, %c0_22, %c0_23, %c0_24] : memref<4x9x9x4xbf16, #tpu.memory_space<vmem>>, vector<1x8x8x4xbf16>
    %23 = vector.shape_cast %22 : vector<1x8x8x4xbf16> to vector<8x8x4xbf16>
    %24 = vector.shape_cast %23 : vector<8x8x4xbf16> to vector<64x4xbf16>
    %c3 = arith.constant 3 : index
    %c0_25 = arith.constant 0 : index
    %c0_26 = arith.constant 0 : index
    %25 = vector.load %arg4[%c3, %c0_25, %c0_26] : memref<9x4x128xbf16, #tpu.memory_space<vmem>>, vector<1x4x128xbf16>
    %26 = vector.shape_cast %25 : vector<1x4x128xbf16> to vector<4x128xbf16>
    %cst_27 = arith.constant dense<0.000000e+00> : vector<64x128xf32>
    %27 = tpu.matmul %24, %26, %cst_27 {dimension_numbers = #tpu.dot_dimension_numbers<[1], [0], [0], [1], [0, 0, 1, 1], [], []>} : vector<64x4xbf16>, vector<4x128xbf16>, vector<64x128xf32> -> vector<64x128xf32>
    %28 = arith.addf %21, %27 : vector<64x128xf32>
    %c3_28 = arith.constant 3 : index
    %c0_29 = arith.constant 0 : index
    %c0_30 = arith.constant 0 : index
    %c0_31 = arith.constant 0 : index
    %29 = vector.load %arg1[%c3_28, %c0_29, %c0_30, %c0_31] : memref<4x9x9x4xbf16, #tpu.memory_space<vmem>>, vector<1x8x8x4xbf16>
    %30 = vector.shape_cast %29 : vector<1x8x8x4xbf16> to vector<8x8x4xbf16>
    %31 = vector.shape_cast %30 : vector<8x8x4xbf16> to vector<64x4xbf16>
    %c4 = arith.constant 4 : index
    %c0_32 = arith.constant 0 : index
    %c0_33 = arith.constant 0 : index
    %32 = vector.load %arg4[%c4, %c0_32, %c0_33] : memref<9x4x128xbf16, #tpu.memory_space<vmem>>, vector<1x4x128xbf16>
    %33 = vector.shape_cast %32 : vector<1x4x128xbf16> to vector<4x128xbf16>
    %cst_34 = arith.constant dense<0.000000e+00> : vector<64x128xf32>
    %34 = tpu.matmul %31, %33, %cst_34 {dimension_numbers = #tpu.dot_dimension_numbers<[1], [0], [0], [1], [0, 0, 1, 1], [], []>} : vector<64x4xbf16>, vector<4x128xbf16>, vector<64x128xf32> -> vector<64x128xf32>
    %35 = arith.addf %28, %34 : vector<64x128xf32>
    %c2_35 = arith.constant 2 : index
    %c0_36 = arith.constant 0 : index
    %c1_37 = arith.constant 1 : index
    %c0_38 = arith.constant 0 : index
    %36 = vector.load %arg1[%c2_35, %c0_36, %c1_37, %c0_38] : memref<4x9x9x4xbf16, #tpu.memory_space<vmem>>, vector<1x8x8x4xbf16>
    %37 = vector.shape_cast %36 : vector<1x8x8x4xbf16> to vector<8x8x4xbf16>
    %38 = vector.shape_cast %37 : vector<8x8x4xbf16> to vector<64x4xbf16>
    %c5 = arith.constant 5 : index
    %c0_39 = arith.constant 0 : index
    %c0_40 = arith.constant 0 : index
    %39 = vector.load %arg4[%c5, %c0_39, %c0_40] : memref<9x4x128xbf16, #tpu.memory_space<vmem>>, vector<1x4x128xbf16>
    %40 = vector.shape_cast %39 : vector<1x4x128xbf16> to vector<4x128xbf16>
    %cst_41 = arith.constant dense<0.000000e+00> : vector<64x128xf32>
    %41 = tpu.matmul %38, %40, %cst_41 {dimension_numbers = #tpu.dot_dimension_numbers<[1], [0], [0], [1], [0, 0, 1, 1], [], []>} : vector<64x4xbf16>, vector<4x128xbf16>, vector<64x128xf32> -> vector<64x128xf32>
    %42 = arith.addf %35, %41 : vector<64x128xf32>
    %c0_42 = arith.constant 0 : index
    %c1_43 = arith.constant 1 : index
    %c0_44 = arith.constant 0 : index
    %c0_45 = arith.constant 0 : index
    %43 = vector.load %arg1[%c0_42, %c1_43, %c0_44, %c0_45] : memref<4x9x9x4xbf16, #tpu.memory_space<vmem>>, vector<1x8x8x4xbf16>
    %44 = vector.shape_cast %43 : vector<1x8x8x4xbf16> to vector<8x8x4xbf16>
    %45 = vector.shape_cast %44 : vector<8x8x4xbf16> to vector<64x4xbf16>
    %c6 = arith.constant 6 : index
    %c0_46 = arith.constant 0 : index
    %c0_47 = arith.constant 0 : index
    %46 = vector.load %arg4[%c6, %c0_46, %c0_47] : memref<9x4x128xbf16, #tpu.memory_space<vmem>>, vector<1x4x128xbf16>
    %47 = vector.shape_cast %46 : vector<1x4x128xbf16> to vector<4x128xbf16>
    %cst_48 = arith.constant dense<0.000000e+00> : vector<64x128xf32>
    %48 = tpu.matmul %45, %47, %cst_48 {dimension_numbers = #tpu.dot_dimension_numbers<[1], [0], [0], [1], [0, 0, 1, 1], [], []>} : vector<64x4xbf16>, vector<4x128xbf16>, vector<64x128xf32> -> vector<64x128xf32>
    %49 = arith.addf %42, %48 : vector<64x128xf32>
    %c1_49 = arith.constant 1 : index
    %c1_50 = arith.constant 1 : index
    %c0_51 = arith.constant 0 : index
    %c0_52 = arith.constant 0 : index
    %50 = vector.load %arg1[%c1_49, %c1_50, %c0_51, %c0_52] : memref<4x9x9x4xbf16, #tpu.memory_space<vmem>>, vector<1x8x8x4xbf16>
    %51 = vector.shape_cast %50 : vector<1x8x8x4xbf16> to vector<8x8x4xbf16>
    %52 = vector.shape_cast %51 : vector<8x8x4xbf16> to vector<64x4xbf16>
    %c7 = arith.constant 7 : index
    %c0_53 = arith.constant 0 : index
    %c0_54 = arith.constant 0 : index
    %53 = vector.load %arg4[%c7, %c0_53, %c0_54] : memref<9x4x128xbf16, #tpu.memory_space<vmem>>, vector<1x4x128xbf16>
    %54 = vector.shape_cast %53 : vector<1x4x128xbf16> to vector<4x128xbf16>
    %cst_55 = arith.constant dense<0.000000e+00> : vector<64x128xf32>
    %55 = tpu.matmul %52, %54, %cst_55 {dimension_numbers = #tpu.dot_dimension_numbers<[1], [0], [0], [1], [0, 0, 1, 1], [], []>} : vector<64x4xbf16>, vector<4x128xbf16>, vector<64x128xf32> -> vector<64x128xf32>
    %56 = arith.addf %49, %55 : vector<64x128xf32>
    %c0_56 = arith.constant 0 : index
    %c1_57 = arith.constant 1 : index
    %c1_58 = arith.constant 1 : index
    %c0_59 = arith.constant 0 : index
    %57 = vector.load %arg1[%c0_56, %c1_57, %c1_58, %c0_59] : memref<4x9x9x4xbf16, #tpu.memory_space<vmem>>, vector<1x8x8x4xbf16>
    %58 = vector.shape_cast %57 : vector<1x8x8x4xbf16> to vector<8x8x4xbf16>
    %59 = vector.shape_cast %58 : vector<8x8x4xbf16> to vector<64x4xbf16>
    %c8 = arith.constant 8 : index
    %c0_60 = arith.constant 0 : index
    %c0_61 = arith.constant 0 : index
    %60 = vector.load %arg4[%c8, %c0_60, %c0_61] : memref<9x4x128xbf16, #tpu.memory_space<vmem>>, vector<1x4x128xbf16>
    %61 = vector.shape_cast %60 : vector<1x4x128xbf16> to vector<4x128xbf16>
    %cst_62 = arith.constant dense<0.000000e+00> : vector<64x128xf32>
    %62 = tpu.matmul %59, %61, %cst_62 {dimension_numbers = #tpu.dot_dimension_numbers<[1], [0], [0], [1], [0, 0, 1, 1], [], []>} : vector<64x4xbf16>, vector<4x128xbf16>, vector<64x128xf32> -> vector<64x128xf32>
    %63 = arith.addf %56, %62 : vector<64x128xf32>
    %64 = vector.shape_cast %63 : vector<64x128xf32> to vector<8x8x128xf32>
    %c0_63 = arith.constant 0 : index
    %c0_64 = arith.constant 0 : index
    %c0_65 = arith.constant 0 : index
    %c0_66 = arith.constant 0 : index
    %65 = vector.load %arg7[%c0_63, %c0_64, %c0_65, %c0_66] : memref<1x8x8x128xf32, #tpu.memory_space<vmem>>, vector<1x8x8x128xf32>
    %66 = vector.shape_cast %65 : vector<1x8x8x128xf32> to vector<8x8x128xf32>
    %67 = vector.shape_cast %64 : vector<8x8x128xf32> to vector<1x8x8x128xf32>
    tpu.vector_store %arg7[%c0_63, %c0_64, %c0_65, %c0_66], %67 {strides = array<i32>} : memref<1x8x8x128xf32, #tpu.memory_space<vmem>>, vector<1x8x8x128xf32>,
    %cst_67 = arith.constant dense<0.000000e+00> : vector<128xf32>
    %68 = vector.multi_reduction <add>, %63, %cst_67 [0] : vector<64x128xf32> to vector<128xf32>
    %69 = vector.shape_cast %68 : vector<128xf32> to vector<1x128xf32>
    %c0_68 = arith.constant 0 : index
    %c0_69 = arith.constant 0 : index
    %c0_70 = arith.constant 0 : index
    %70 = vector.load %arg8[%c0_68, %c0_69, %c0_70] : memref<1x2x128xf32, #tpu.memory_space<vmem>>, vector<1x1x128xf32>
    %71 = vector.shape_cast %70 : vector<1x1x128xf32> to vector<1x128xf32>
    %72 = vector.shape_cast %69 : vector<1x128xf32> to vector<1x1x128xf32>
    tpu.vector_store %arg8[%c0_68, %c0_69, %c0_70], %72 {strides = array<i32>} : memref<1x2x128xf32, #tpu.memory_space<vmem>>, vector<1x1x128xf32>,
    %73 = arith.mulf %63, %63 : vector<64x128xf32>
    %cst_71 = arith.constant dense<0.000000e+00> : vector<128xf32>
    %74 = vector.multi_reduction <add>, %73, %cst_71 [0] : vector<64x128xf32> to vector<128xf32>
    %75 = vector.shape_cast %74 : vector<128xf32> to vector<1x128xf32>
    %c0_72 = arith.constant 0 : index
    %c1_73 = arith.constant 1 : index
    %c0_74 = arith.constant 0 : index
    %76 = vector.load %arg8[%c0_72, %c1_73, %c0_74] : memref<1x2x128xf32, #tpu.memory_space<vmem>>, vector<1x1x128xf32>
    %77 = vector.shape_cast %76 : vector<1x1x128xf32> to vector<1x128xf32>
    %78 = vector.shape_cast %75 : vector<1x128xf32> to vector<1x1x128xf32>
    tpu.vector_store %arg8[%c0_72, %c1_73, %c0_74], %78 {strides = array<i32>} : memref<1x2x128xf32, #tpu.memory_space<vmem>>, vector<1x1x128xf32>,
    %c0_75 = arith.constant 0 : index
    %c0_76 = arith.constant 0 : index
    %c0_77 = arith.constant 0 : index
    %79 = vector.load %arg3[%c0_75, %c0_76, %c0_77] : memref<1x64x3xf32, #tpu.memory_space<vmem>>, vector<1x64x3xf32>
    %80 = vector.shape_cast %79 : vector<1x64x3xf32> to vector<64x3xf32>
    %81 = vector.extract_strided_slice %80 {offsets = [0, 0], sizes = [64, 1], strides = [1, 1]} : vector<64x3xf32> to vector<64x1xf32>
    %c0_78 = arith.constant 0 : index
    %c0_79 = arith.constant 0 : index
    %82 = vector.load %arg6[%c0_78, %c0_79] : memref<3x128xf32, #tpu.memory_space<vmem>>, vector<1x128xf32>
    %83 = vector.broadcast %81 : vector<64x1xf32> to vector<64x128xf32>
    %84 = vector.broadcast %82 : vector<1x128xf32> to vector<64x128xf32>
    %85 = arith.mulf %83, %84 : vector<64x128xf32>
    %86 = vector.extract_strided_slice %80 {offsets = [0, 1], sizes = [64, 1], strides = [1, 1]} : vector<64x3xf32> to vector<64x1xf32>
    %c1_80 = arith.constant 1 : index
    %c0_81 = arith.constant 0 : index
    %87 = vector.load %arg6[%c1_80, %c0_81] : memref<3x128xf32, #tpu.memory_space<vmem>>, vector<1x128xf32>
    %88 = vector.broadcast %86 : vector<64x1xf32> to vector<64x128xf32>
    %89 = vector.broadcast %87 : vector<1x128xf32> to vector<64x128xf32>
    %90 = arith.mulf %88, %89 : vector<64x128xf32>
    %91 = arith.addf %85, %90 : vector<64x128xf32>
    %92 = vector.extract_strided_slice %80 {offsets = [0, 2], sizes = [64, 1], strides = [1, 1]} : vector<64x3xf32> to vector<64x1xf32>
    %c2_82 = arith.constant 2 : index
    %c0_83 = arith.constant 0 : index
    %93 = vector.load %arg6[%c2_82, %c0_83] : memref<3x128xf32, #tpu.memory_space<vmem>>, vector<1x128xf32>
    %94 = vector.broadcast %92 : vector<64x1xf32> to vector<64x128xf32>
    %95 = vector.broadcast %93 : vector<1x128xf32> to vector<64x128xf32>
    %96 = arith.mulf %94, %95 : vector<64x128xf32>
    %97 = arith.addf %91, %96 : vector<64x128xf32>
    %cst_84 = arith.constant dense<0.000000e+00> : vector<128xf32>
    %98 = vector.multi_reduction <add>, %97, %cst_84 [0] : vector<64x128xf32> to vector<128xf32>
    %99 = vector.shape_cast %98 : vector<128xf32> to vector<1x128xf32>
    %c0_85 = arith.constant 0 : index
    %c0_86 = arith.constant 0 : index
    %c0_87 = arith.constant 0 : index
    %100 = vector.load %arg9[%c0_85, %c0_86, %c0_87] : memref<1x2x128xf32, #tpu.memory_space<vmem>>, vector<1x1x128xf32>
    %101 = vector.shape_cast %100 : vector<1x1x128xf32> to vector<1x128xf32>
    %102 = vector.shape_cast %99 : vector<1x128xf32> to vector<1x1x128xf32>
    tpu.vector_store %arg9[%c0_85, %c0_86, %c0_87], %102 {strides = array<i32>} : memref<1x2x128xf32, #tpu.memory_space<vmem>>, vector<1x1x128xf32>,
    %103 = arith.mulf %97, %97 : vector<64x128xf32>
    %cst_88 = arith.constant dense<0.000000e+00> : vector<128xf32>
    %104 = vector.multi_reduction <add>, %103, %cst_88 [0] : vector<64x128xf32> to vector<128xf32>
    %105 = vector.shape_cast %104 : vector<128xf32> to vector<1x128xf32>
    %c0_89 = arith.constant 0 : index
    %c1_90 = arith.constant 1 : index
    %c0_91 = arith.constant 0 : index
    %106 = vector.load %arg9[%c0_89, %c1_90, %c0_91] : memref<1x2x128xf32, #tpu.memory_space<vmem>>, vector<1x1x128xf32>
    %107 = vector.shape_cast %106 : vector<1x1x128xf32> to vector<1x128xf32>
    %108 = vector.shape_cast %105 : vector<1x128xf32> to vector<1x1x128xf32>
    tpu.vector_store %arg9[%c0_89, %c1_90, %c0_91], %108 {strides = array<i32>} : memref<1x2x128xf32, #tpu.memory_space<vmem>>, vector<1x1x128xf32>,
    %c0_92 = arith.constant 0 : index
    %c0_93 = arith.constant 0 : index
    %c0_94 = arith.constant 0 : index
    %109 = vector.load %arg2[%c0_92, %c0_93, %c0_94] : memref<1x64x4xf32, #tpu.memory_space<vmem>>, vector<1x64x4xf32>
    %110 = vector.shape_cast %109 : vector<1x64x4xf32> to vector<64x4xf32>
    %111 = arith.truncf %110 : vector<64x4xf32> to vector<64x4xbf16>
    %c0_95 = arith.constant 0 : index
    %c0_96 = arith.constant 0 : index
    %112 = vector.load %arg5[%c0_95, %c0_96] : memref<4x128xbf16, #tpu.memory_space<vmem>>, vector<4x128xbf16>
    %cst_97 = arith.constant dense<0.000000e+00> : vector<64x128xf32>
    %113 = tpu.matmul %111, %112, %cst_97 {dimension_numbers = #tpu.dot_dimension_numbers<[1], [0], [0], [1], [0, 0, 1, 1], [], []>} : vector<64x4xbf16>, vector<4x128xbf16>, vector<64x128xf32> -> vector<64x128xf32>
    %cst_98 = arith.constant dense<0.000000e+00> : vector<128xf32>
    %114 = vector.multi_reduction <add>, %113, %cst_98 [0] : vector<64x128xf32> to vector<128xf32>
    %115 = vector.shape_cast %114 : vector<128xf32> to vector<1x128xf32>
    %c0_99 = arith.constant 0 : index
    %c0_100 = arith.constant 0 : index
    %c0_101 = arith.constant 0 : index
    %116 = vector.load %arg10[%c0_99, %c0_100, %c0_101] : memref<1x2x128xf32, #tpu.memory_space<vmem>>, vector<1x1x128xf32>
    %117 = vector.shape_cast %116 : vector<1x1x128xf32> to vector<1x128xf32>
    %118 = vector.shape_cast %115 : vector<1x128xf32> to vector<1x1x128xf32>
    tpu.vector_store %arg10[%c0_99, %c0_100, %c0_101], %118 {strides = array<i32>} : memref<1x2x128xf32, #tpu.memory_space<vmem>>, vector<1x1x128xf32>,
    %119 = arith.mulf %113, %113 : vector<64x128xf32>
    %cst_102 = arith.constant dense<0.000000e+00> : vector<128xf32>
    %120 = vector.multi_reduction <add>, %119, %cst_102 [0] : vector<64x128xf32> to vector<128xf32>
    %121 = vector.shape_cast %120 : vector<128xf32> to vector<1x128xf32>
    %c0_103 = arith.constant 0 : index
    %c1_104 = arith.constant 1 : index
    %c0_105 = arith.constant 0 : index
    %122 = vector.load %arg10[%c0_103, %c1_104, %c0_105] : memref<1x2x128xf32, #tpu.memory_space<vmem>>, vector<1x1x128xf32>
    %123 = vector.shape_cast %122 : vector<1x1x128xf32> to vector<1x128xf32>
    %124 = vector.shape_cast %121 : vector<1x128xf32> to vector<1x1x128xf32>
    tpu.vector_store %arg10[%c0_103, %c1_104, %c0_105], %124 {strides = array<i32>} : memref<1x2x128xf32, #tpu.memory_space<vmem>>, vector<1x1x128xf32>,
    return
  }
  func.func @transform_0(%arg0: i32) -> (i32, i32, i32, i32) {
    %c0_i32 = arith.constant 0 : i32
    %c0_i32_0 = arith.constant 0 : i32
    %c0_i32_1 = arith.constant 0 : i32
    %c0_i32_2 = arith.constant 0 : i32
    return %arg0, %c0_i32, %c0_i32_0, %c0_i32_1 : i32, i32, i32, i32
  }
  func.func @transform_1(%arg0: i32) -> (i32, i32, i32) {
    %c0_i32 = arith.constant 0 : i32
    %c0_i32_0 = arith.constant 0 : i32
    %c0_i32_1 = arith.constant 0 : i32
    return %arg0, %c0_i32, %c0_i32_0 : i32, i32, i32
  }
  func.func @transform_2(%arg0: i32) -> (i32, i32, i32) {
    %c0_i32 = arith.constant 0 : i32
    %c0_i32_0 = arith.constant 0 : i32
    %c0_i32_1 = arith.constant 0 : i32
    return %arg0, %c0_i32, %c0_i32_0 : i32, i32, i32
  }
  func.func @transform_3(%arg0: i32) -> (i32, i32, i32) {
    %c0_i32 = arith.constant 0 : i32
    %c0_i32_0 = arith.constant 0 : i32
    %c0_i32_1 = arith.constant 0 : i32
    %c0_i32_2 = arith.constant 0 : i32
    return %c0_i32, %c0_i32_0, %c0_i32_1 : i32, i32, i32
  }
  func.func @transform_4(%arg0: i32) -> (i32, i32) {
    %c0_i32 = arith.constant 0 : i32
    %c0_i32_0 = arith.constant 0 : i32
    %c0_i32_1 = arith.constant 0 : i32
    return %c0_i32, %c0_i32_0 : i32, i32
  }
  func.func @transform_5(%arg0: i32) -> (i32, i32) {
    %c0_i32 = arith.constant 0 : i32
    %c0_i32_0 = arith.constant 0 : i32
    %c0_i32_1 = arith.constant 0 : i32
    return %c0_i32, %c0_i32_0 : i32, i32
  }
  func.func @transform_6(%arg0: i32) -> (i32, i32, i32, i32) {
    %c0_i32 = arith.constant 0 : i32
    %c0_i32_0 = arith.constant 0 : i32
    %c0_i32_1 = arith.constant 0 : i32
    %c0_i32_2 = arith.constant 0 : i32
    return %arg0, %c0_i32, %c0_i32_0, %c0_i32_1 : i32, i32, i32, i32
  }
  func.func @transform_7(%arg0: i32) -> (i32, i32, i32) {
    %c0_i32 = arith.constant 0 : i32
    %c0_i32_0 = arith.constant 0 : i32
    %c0_i32_1 = arith.constant 0 : i32
    return %arg0, %c0_i32, %c0_i32_0 : i32, i32, i32
  }
  func.func @transform_8(%arg0: i32) -> (i32, i32, i32) {
    %c0_i32 = arith.constant 0 : i32
    %c0_i32_0 = arith.constant 0 : i32
    %c0_i32_1 = arith.constant 0 : i32
    return %arg0, %c0_i32, %c0_i32_0 : i32, i32, i32
  }
  func.func @transform_9(%arg0: i32) -> (i32, i32, i32) {
    %c0_i32 = arith.constant 0 : i32
    %c0_i32_0 = arith.constant 0 : i32
    %c0_i32_1 = arith.constant 0 : i32
    return %arg0, %c0_i32, %c0_i32_0 : i32, i32, i32
  }
}

module attributes {stable_mosaic.version = 11 : i64} {
  func.func @kernel(%arg0: i32, %arg1: memref<1x8x8x128xf32, #tpu.memory_space<vmem>>, %arg2: memref<9x128x128xbf16, #tpu.memory_space<vmem>>, %arg3: memref<2x128xf32, #tpu.memory_space<vmem>>, %arg4: memref<1x64x128xf32, #tpu.memory_space<vmem>>, %arg5: memref<1x2x128xf32, #tpu.memory_space<vmem>>, %arg6: memref<10x10x128xf32, #tpu.memory_space<vmem>>) attributes {dimension_semantics = [#tpu.dimension_semantics<parallel>], iteration_bounds = array<i64: 2>, scalar_prefetch = 0 : i64, scratch_operands = 1 : i64, tpu.core_type = #tpu.core_type<tc>, window_params = [{transform_indices = @transform_0, window_bounds = array<i64: 1, 8, 8, 128>}, {pipeline_mode = #tpu.pipeline_mode<synchronous>, transform_indices = @transform_1, window_bounds = array<i64: 9, 128, 128>}, {pipeline_mode = #tpu.pipeline_mode<synchronous>, transform_indices = @transform_2, window_bounds = array<i64: 2, 128>}, {transform_indices = @transform_3, window_bounds = array<i64: 1, 64, 128>}, {transform_indices = @transform_4, window_bounds = array<i64: 1, 2, 128>}]} {
    %c0 = arith.constant 0 : index
    %c0_0 = arith.constant 0 : index
    %c0_1 = arith.constant 0 : index
    %c0_2 = arith.constant 0 : index
    %0 = vector.load %arg1[%c0, %c0_0, %c0_1, %c0_2] : memref<1x8x8x128xf32, #tpu.memory_space<vmem>>, vector<1x8x8x128xf32>
    %1 = vector.shape_cast %0 : vector<1x8x8x128xf32> to vector<8x8x128xf32>
    %c0_3 = arith.constant 0 : index
    %c0_4 = arith.constant 0 : index
    %2 = vector.load %arg3[%c0_3, %c0_4] : memref<2x128xf32, #tpu.memory_space<vmem>>, vector<1x128xf32>
    %3 = vector.shape_cast %2 : vector<1x128xf32> to vector<1x1x128xf32>
    %4 = vector.broadcast %3 : vector<1x1x128xf32> to vector<8x8x128xf32>
    %5 = arith.mulf %1, %4 : vector<8x8x128xf32>
    %c1 = arith.constant 1 : index
    %c0_5 = arith.constant 0 : index
    %6 = vector.load %arg3[%c1, %c0_5] : memref<2x128xf32, #tpu.memory_space<vmem>>, vector<1x128xf32>
    %7 = vector.shape_cast %6 : vector<1x128xf32> to vector<1x1x128xf32>
    %8 = vector.broadcast %7 : vector<1x1x128xf32> to vector<8x8x128xf32>
    %9 = arith.addf %5, %8 : vector<8x8x128xf32>
    %cst = arith.constant 0.000000e+00 : f32
    %10 = vector.broadcast %cst : f32 to vector<8x8x128xf32>
    %11 = arith.maximumf %9, %10 : vector<8x8x128xf32>
    %cst_6 = arith.constant 0.000000e+00 : f32
    %12 = vector.broadcast %cst_6 : f32 to vector<10x10x128xf32>
    %c0_7 = arith.constant 0 : index
    %c0_8 = arith.constant 0 : index
    %c0_9 = arith.constant 0 : index
    %13 = vector.load %arg6[%c0_7, %c0_8, %c0_9] : memref<10x10x128xf32, #tpu.memory_space<vmem>>, vector<10x10x128xf32>
    tpu.vector_store %arg6[%c0_7, %c0_8, %c0_9], %12 {strides = array<i32>} : memref<10x10x128xf32, #tpu.memory_space<vmem>>, vector<10x10x128xf32>,
    %c1_10 = arith.constant 1 : index
    %c1_11 = arith.constant 1 : index
    %c0_12 = arith.constant 0 : index
    %14 = vector.load %arg6[%c1_10, %c1_11, %c0_12] : memref<10x10x128xf32, #tpu.memory_space<vmem>>, vector<8x8x128xf32>
    tpu.vector_store %arg6[%c1_10, %c1_11, %c0_12], %11 {strides = array<i32>} : memref<10x10x128xf32, #tpu.memory_space<vmem>>, vector<8x8x128xf32>,
    %cst_13 = arith.constant 0.000000e+00 : f32
    %15 = vector.broadcast %cst_13 : f32 to vector<64x128xf32>
    %c0_14 = arith.constant 0 : index
    %c0_15 = arith.constant 0 : index
    %c0_16 = arith.constant 0 : index
    %16 = vector.load %arg6[%c0_14, %c0_15, %c0_16] : memref<10x10x128xf32, #tpu.memory_space<vmem>>, vector<8x8x128xf32>
    %17 = vector.shape_cast %16 : vector<8x8x128xf32> to vector<64x128xf32>
    %18 = arith.truncf %17 : vector<64x128xf32> to vector<64x128xbf16>
    %c0_17 = arith.constant 0 : index
    %c0_18 = arith.constant 0 : index
    %c0_19 = arith.constant 0 : index
    %19 = vector.load %arg2[%c0_17, %c0_18, %c0_19] : memref<9x128x128xbf16, #tpu.memory_space<vmem>>, vector<1x128x128xbf16>
    %20 = vector.shape_cast %19 : vector<1x128x128xbf16> to vector<128x128xbf16>
    %cst_20 = arith.constant dense<0.000000e+00> : vector<64x128xf32>
    %21 = tpu.matmul %18, %20, %cst_20 {dimension_numbers = #tpu.dot_dimension_numbers<[1], [0], [0], [1], [0, 0, 1, 1], [], []>} : vector<64x128xbf16>, vector<128x128xbf16>, vector<64x128xf32> -> vector<64x128xf32>
    %22 = arith.addf %15, %21 : vector<64x128xf32>
    %c0_21 = arith.constant 0 : index
    %c1_22 = arith.constant 1 : index
    %c0_23 = arith.constant 0 : index
    %23 = vector.load %arg6[%c0_21, %c1_22, %c0_23] : memref<10x10x128xf32, #tpu.memory_space<vmem>>, vector<8x8x128xf32>
    %24 = vector.shape_cast %23 : vector<8x8x128xf32> to vector<64x128xf32>
    %25 = arith.truncf %24 : vector<64x128xf32> to vector<64x128xbf16>
    %c1_24 = arith.constant 1 : index
    %c0_25 = arith.constant 0 : index
    %c0_26 = arith.constant 0 : index
    %26 = vector.load %arg2[%c1_24, %c0_25, %c0_26] : memref<9x128x128xbf16, #tpu.memory_space<vmem>>, vector<1x128x128xbf16>
    %27 = vector.shape_cast %26 : vector<1x128x128xbf16> to vector<128x128xbf16>
    %cst_27 = arith.constant dense<0.000000e+00> : vector<64x128xf32>
    %28 = tpu.matmul %25, %27, %cst_27 {dimension_numbers = #tpu.dot_dimension_numbers<[1], [0], [0], [1], [0, 0, 1, 1], [], []>} : vector<64x128xbf16>, vector<128x128xbf16>, vector<64x128xf32> -> vector<64x128xf32>
    %29 = arith.addf %22, %28 : vector<64x128xf32>
    %c0_28 = arith.constant 0 : index
    %c2 = arith.constant 2 : index
    %c0_29 = arith.constant 0 : index
    %30 = vector.load %arg6[%c0_28, %c2, %c0_29] : memref<10x10x128xf32, #tpu.memory_space<vmem>>, vector<8x8x128xf32>
    %31 = vector.shape_cast %30 : vector<8x8x128xf32> to vector<64x128xf32>
    %32 = arith.truncf %31 : vector<64x128xf32> to vector<64x128xbf16>
    %c2_30 = arith.constant 2 : index
    %c0_31 = arith.constant 0 : index
    %c0_32 = arith.constant 0 : index
    %33 = vector.load %arg2[%c2_30, %c0_31, %c0_32] : memref<9x128x128xbf16, #tpu.memory_space<vmem>>, vector<1x128x128xbf16>
    %34 = vector.shape_cast %33 : vector<1x128x128xbf16> to vector<128x128xbf16>
    %cst_33 = arith.constant dense<0.000000e+00> : vector<64x128xf32>
    %35 = tpu.matmul %32, %34, %cst_33 {dimension_numbers = #tpu.dot_dimension_numbers<[1], [0], [0], [1], [0, 0, 1, 1], [], []>} : vector<64x128xbf16>, vector<128x128xbf16>, vector<64x128xf32> -> vector<64x128xf32>
    %36 = arith.addf %29, %35 : vector<64x128xf32>
    %c1_34 = arith.constant 1 : index
    %c0_35 = arith.constant 0 : index
    %c0_36 = arith.constant 0 : index
    %37 = vector.load %arg6[%c1_34, %c0_35, %c0_36] : memref<10x10x128xf32, #tpu.memory_space<vmem>>, vector<8x8x128xf32>
    %38 = vector.shape_cast %37 : vector<8x8x128xf32> to vector<64x128xf32>
    %39 = arith.truncf %38 : vector<64x128xf32> to vector<64x128xbf16>
    %c3 = arith.constant 3 : index
    %c0_37 = arith.constant 0 : index
    %c0_38 = arith.constant 0 : index
    %40 = vector.load %arg2[%c3, %c0_37, %c0_38] : memref<9x128x128xbf16, #tpu.memory_space<vmem>>, vector<1x128x128xbf16>
    %41 = vector.shape_cast %40 : vector<1x128x128xbf16> to vector<128x128xbf16>
    %cst_39 = arith.constant dense<0.000000e+00> : vector<64x128xf32>
    %42 = tpu.matmul %39, %41, %cst_39 {dimension_numbers = #tpu.dot_dimension_numbers<[1], [0], [0], [1], [0, 0, 1, 1], [], []>} : vector<64x128xbf16>, vector<128x128xbf16>, vector<64x128xf32> -> vector<64x128xf32>
    %43 = arith.addf %36, %42 : vector<64x128xf32>
    %c1_40 = arith.constant 1 : index
    %c1_41 = arith.constant 1 : index
    %c0_42 = arith.constant 0 : index
    %44 = vector.load %arg6[%c1_40, %c1_41, %c0_42] : memref<10x10x128xf32, #tpu.memory_space<vmem>>, vector<8x8x128xf32>
    %45 = vector.shape_cast %44 : vector<8x8x128xf32> to vector<64x128xf32>
    %46 = arith.truncf %45 : vector<64x128xf32> to vector<64x128xbf16>
    %c4 = arith.constant 4 : index
    %c0_43 = arith.constant 0 : index
    %c0_44 = arith.constant 0 : index
    %47 = vector.load %arg2[%c4, %c0_43, %c0_44] : memref<9x128x128xbf16, #tpu.memory_space<vmem>>, vector<1x128x128xbf16>
    %48 = vector.shape_cast %47 : vector<1x128x128xbf16> to vector<128x128xbf16>
    %cst_45 = arith.constant dense<0.000000e+00> : vector<64x128xf32>
    %49 = tpu.matmul %46, %48, %cst_45 {dimension_numbers = #tpu.dot_dimension_numbers<[1], [0], [0], [1], [0, 0, 1, 1], [], []>} : vector<64x128xbf16>, vector<128x128xbf16>, vector<64x128xf32> -> vector<64x128xf32>
    %50 = arith.addf %43, %49 : vector<64x128xf32>
    %c1_46 = arith.constant 1 : index
    %c2_47 = arith.constant 2 : index
    %c0_48 = arith.constant 0 : index
    %51 = vector.load %arg6[%c1_46, %c2_47, %c0_48] : memref<10x10x128xf32, #tpu.memory_space<vmem>>, vector<8x8x128xf32>
    %52 = vector.shape_cast %51 : vector<8x8x128xf32> to vector<64x128xf32>
    %53 = arith.truncf %52 : vector<64x128xf32> to vector<64x128xbf16>
    %c5 = arith.constant 5 : index
    %c0_49 = arith.constant 0 : index
    %c0_50 = arith.constant 0 : index
    %54 = vector.load %arg2[%c5, %c0_49, %c0_50] : memref<9x128x128xbf16, #tpu.memory_space<vmem>>, vector<1x128x128xbf16>
    %55 = vector.shape_cast %54 : vector<1x128x128xbf16> to vector<128x128xbf16>
    %cst_51 = arith.constant dense<0.000000e+00> : vector<64x128xf32>
    %56 = tpu.matmul %53, %55, %cst_51 {dimension_numbers = #tpu.dot_dimension_numbers<[1], [0], [0], [1], [0, 0, 1, 1], [], []>} : vector<64x128xbf16>, vector<128x128xbf16>, vector<64x128xf32> -> vector<64x128xf32>
    %57 = arith.addf %50, %56 : vector<64x128xf32>
    %c2_52 = arith.constant 2 : index
    %c0_53 = arith.constant 0 : index
    %c0_54 = arith.constant 0 : index
    %58 = vector.load %arg6[%c2_52, %c0_53, %c0_54] : memref<10x10x128xf32, #tpu.memory_space<vmem>>, vector<8x8x128xf32>
    %59 = vector.shape_cast %58 : vector<8x8x128xf32> to vector<64x128xf32>
    %60 = arith.truncf %59 : vector<64x128xf32> to vector<64x128xbf16>
    %c6 = arith.constant 6 : index
    %c0_55 = arith.constant 0 : index
    %c0_56 = arith.constant 0 : index
    %61 = vector.load %arg2[%c6, %c0_55, %c0_56] : memref<9x128x128xbf16, #tpu.memory_space<vmem>>, vector<1x128x128xbf16>
    %62 = vector.shape_cast %61 : vector<1x128x128xbf16> to vector<128x128xbf16>
    %cst_57 = arith.constant dense<0.000000e+00> : vector<64x128xf32>
    %63 = tpu.matmul %60, %62, %cst_57 {dimension_numbers = #tpu.dot_dimension_numbers<[1], [0], [0], [1], [0, 0, 1, 1], [], []>} : vector<64x128xbf16>, vector<128x128xbf16>, vector<64x128xf32> -> vector<64x128xf32>
    %64 = arith.addf %57, %63 : vector<64x128xf32>
    %c2_58 = arith.constant 2 : index
    %c1_59 = arith.constant 1 : index
    %c0_60 = arith.constant 0 : index
    %65 = vector.load %arg6[%c2_58, %c1_59, %c0_60] : memref<10x10x128xf32, #tpu.memory_space<vmem>>, vector<8x8x128xf32>
    %66 = vector.shape_cast %65 : vector<8x8x128xf32> to vector<64x128xf32>
    %67 = arith.truncf %66 : vector<64x128xf32> to vector<64x128xbf16>
    %c7 = arith.constant 7 : index
    %c0_61 = arith.constant 0 : index
    %c0_62 = arith.constant 0 : index
    %68 = vector.load %arg2[%c7, %c0_61, %c0_62] : memref<9x128x128xbf16, #tpu.memory_space<vmem>>, vector<1x128x128xbf16>
    %69 = vector.shape_cast %68 : vector<1x128x128xbf16> to vector<128x128xbf16>
    %cst_63 = arith.constant dense<0.000000e+00> : vector<64x128xf32>
    %70 = tpu.matmul %67, %69, %cst_63 {dimension_numbers = #tpu.dot_dimension_numbers<[1], [0], [0], [1], [0, 0, 1, 1], [], []>} : vector<64x128xbf16>, vector<128x128xbf16>, vector<64x128xf32> -> vector<64x128xf32>
    %71 = arith.addf %64, %70 : vector<64x128xf32>
    %c2_64 = arith.constant 2 : index
    %c2_65 = arith.constant 2 : index
    %c0_66 = arith.constant 0 : index
    %72 = vector.load %arg6[%c2_64, %c2_65, %c0_66] : memref<10x10x128xf32, #tpu.memory_space<vmem>>, vector<8x8x128xf32>
    %73 = vector.shape_cast %72 : vector<8x8x128xf32> to vector<64x128xf32>
    %74 = arith.truncf %73 : vector<64x128xf32> to vector<64x128xbf16>
    %c8 = arith.constant 8 : index
    %c0_67 = arith.constant 0 : index
    %c0_68 = arith.constant 0 : index
    %75 = vector.load %arg2[%c8, %c0_67, %c0_68] : memref<9x128x128xbf16, #tpu.memory_space<vmem>>, vector<1x128x128xbf16>
    %76 = vector.shape_cast %75 : vector<1x128x128xbf16> to vector<128x128xbf16>
    %cst_69 = arith.constant dense<0.000000e+00> : vector<64x128xf32>
    %77 = tpu.matmul %74, %76, %cst_69 {dimension_numbers = #tpu.dot_dimension_numbers<[1], [0], [0], [1], [0, 0, 1, 1], [], []>} : vector<64x128xbf16>, vector<128x128xbf16>, vector<64x128xf32> -> vector<64x128xf32>
    %78 = arith.addf %71, %77 : vector<64x128xf32>
    %c0_70 = arith.constant 0 : index
    %c0_71 = arith.constant 0 : index
    %c0_72 = arith.constant 0 : index
    %79 = vector.load %arg4[%c0_70, %c0_71, %c0_72] : memref<1x64x128xf32, #tpu.memory_space<vmem>>, vector<1x64x128xf32>
    %80 = vector.shape_cast %79 : vector<1x64x128xf32> to vector<64x128xf32>
    %81 = vector.shape_cast %78 : vector<64x128xf32> to vector<1x64x128xf32>
    tpu.vector_store %arg4[%c0_70, %c0_71, %c0_72], %81 {strides = array<i32>} : memref<1x64x128xf32, #tpu.memory_space<vmem>>, vector<1x64x128xf32>,
    %cst_73 = arith.constant dense<0.000000e+00> : vector<128xf32>
    %82 = vector.multi_reduction <add>, %78, %cst_73 [0] : vector<64x128xf32> to vector<128xf32>
    %83 = vector.shape_cast %82 : vector<128xf32> to vector<1x128xf32>
    %c0_74 = arith.constant 0 : index
    %c0_75 = arith.constant 0 : index
    %c0_76 = arith.constant 0 : index
    %84 = vector.load %arg5[%c0_74, %c0_75, %c0_76] : memref<1x2x128xf32, #tpu.memory_space<vmem>>, vector<1x1x128xf32>
    %85 = vector.shape_cast %84 : vector<1x1x128xf32> to vector<1x128xf32>
    %86 = vector.shape_cast %83 : vector<1x128xf32> to vector<1x1x128xf32>
    tpu.vector_store %arg5[%c0_74, %c0_75, %c0_76], %86 {strides = array<i32>} : memref<1x2x128xf32, #tpu.memory_space<vmem>>, vector<1x1x128xf32>,
    %87 = arith.mulf %78, %78 : vector<64x128xf32>
    %cst_77 = arith.constant dense<0.000000e+00> : vector<128xf32>
    %88 = vector.multi_reduction <add>, %87, %cst_77 [0] : vector<64x128xf32> to vector<128xf32>
    %89 = vector.shape_cast %88 : vector<128xf32> to vector<1x128xf32>
    %c0_78 = arith.constant 0 : index
    %c1_79 = arith.constant 1 : index
    %c0_80 = arith.constant 0 : index
    %90 = vector.load %arg5[%c0_78, %c1_79, %c0_80] : memref<1x2x128xf32, #tpu.memory_space<vmem>>, vector<1x1x128xf32>
    %91 = vector.shape_cast %90 : vector<1x1x128xf32> to vector<1x128xf32>
    %92 = vector.shape_cast %89 : vector<1x128xf32> to vector<1x1x128xf32>
    tpu.vector_store %arg5[%c0_78, %c1_79, %c0_80], %92 {strides = array<i32>} : memref<1x2x128xf32, #tpu.memory_space<vmem>>, vector<1x1x128xf32>,
    return
  }
  func.func @transform_0(%arg0: i32) -> (i32, i32, i32, i32) {
    %c0_i32 = arith.constant 0 : i32
    %c0_i32_0 = arith.constant 0 : i32
    %c0_i32_1 = arith.constant 0 : i32
    %c0_i32_2 = arith.constant 0 : i32
    return %arg0, %c0_i32, %c0_i32_0, %c0_i32_1 : i32, i32, i32, i32
  }
  func.func @transform_1(%arg0: i32) -> (i32, i32, i32) {
    %c0_i32 = arith.constant 0 : i32
    %c0_i32_0 = arith.constant 0 : i32
    %c0_i32_1 = arith.constant 0 : i32
    %c0_i32_2 = arith.constant 0 : i32
    return %c0_i32, %c0_i32_0, %c0_i32_1 : i32, i32, i32
  }
  func.func @transform_2(%arg0: i32) -> (i32, i32) {
    %c0_i32 = arith.constant 0 : i32
    %c0_i32_0 = arith.constant 0 : i32
    %c0_i32_1 = arith.constant 0 : i32
    return %c0_i32, %c0_i32_0 : i32, i32
  }
  func.func @transform_3(%arg0: i32) -> (i32, i32, i32) {
    %c0_i32 = arith.constant 0 : i32
    %c0_i32_0 = arith.constant 0 : i32
    %c0_i32_1 = arith.constant 0 : i32
    return %arg0, %c0_i32, %c0_i32_0 : i32, i32, i32
  }
  func.func @transform_4(%arg0: i32) -> (i32, i32, i32) {
    %c0_i32 = arith.constant 0 : i32
    %c0_i32_0 = arith.constant 0 : i32
    %c0_i32_1 = arith.constant 0 : i32
    return %arg0, %c0_i32, %c0_i32_0 : i32, i32, i32
  }
}

module attributes {stable_mosaic.version = 11 : i64} {
  func.func @kernel(%arg0: i32, %arg1: memref<1x64x128xf32, #tpu.memory_space<vmem>>, %arg2: memref<1x64x4xf32, #tpu.memory_space<vmem>>, %arg3: memref<1x64x3xf32, #tpu.memory_space<vmem>>, %arg4: memref<4x128xbf16, #tpu.memory_space<vmem>>, %arg5: memref<3x128xf32, #tpu.memory_space<vmem>>, %arg6: memref<2x128xf32, #tpu.memory_space<vmem>>, %arg7: memref<2x128xf32, #tpu.memory_space<vmem>>, %arg8: memref<2x128xf32, #tpu.memory_space<vmem>>, %arg9: memref<1x64x128xf32, #tpu.memory_space<vmem>>) attributes {dimension_semantics = [#tpu.dimension_semantics<parallel>], iteration_bounds = array<i64: 2>, scalar_prefetch = 0 : i64, scratch_operands = 0 : i64, tpu.core_type = #tpu.core_type<tc>, window_params = [{transform_indices = @transform_0, window_bounds = array<i64: 1, 64, 128>}, {transform_indices = @transform_1, window_bounds = array<i64: 1, 64, 4>}, {transform_indices = @transform_2, window_bounds = array<i64: 1, 64, 3>}, {pipeline_mode = #tpu.pipeline_mode<synchronous>, transform_indices = @transform_3, window_bounds = array<i64: 4, 128>}, {pipeline_mode = #tpu.pipeline_mode<synchronous>, transform_indices = @transform_4, window_bounds = array<i64: 3, 128>}, {pipeline_mode = #tpu.pipeline_mode<synchronous>, transform_indices = @transform_5, window_bounds = array<i64: 2, 128>}, {pipeline_mode = #tpu.pipeline_mode<synchronous>, transform_indices = @transform_6, window_bounds = array<i64: 2, 128>}, {pipeline_mode = #tpu.pipeline_mode<synchronous>, transform_indices = @transform_7, window_bounds = array<i64: 2, 128>}, {transform_indices = @transform_8, window_bounds = array<i64: 1, 64, 128>}]} {
    %c0 = arith.constant 0 : index
    %c0_0 = arith.constant 0 : index
    %c0_1 = arith.constant 0 : index
    %0 = vector.load %arg1[%c0, %c0_0, %c0_1] : memref<1x64x128xf32, #tpu.memory_space<vmem>>, vector<1x64x128xf32>
    %1 = vector.shape_cast %0 : vector<1x64x128xf32> to vector<64x128xf32>
    %c0_2 = arith.constant 0 : index
    %c0_3 = arith.constant 0 : index
    %2 = vector.load %arg6[%c0_2, %c0_3] : memref<2x128xf32, #tpu.memory_space<vmem>>, vector<1x128xf32>
    %3 = vector.broadcast %2 : vector<1x128xf32> to vector<64x128xf32>
    %4 = arith.mulf %1, %3 : vector<64x128xf32>
    %c1 = arith.constant 1 : index
    %c0_4 = arith.constant 0 : index
    %5 = vector.load %arg6[%c1, %c0_4] : memref<2x128xf32, #tpu.memory_space<vmem>>, vector<1x128xf32>
    %6 = vector.broadcast %5 : vector<1x128xf32> to vector<64x128xf32>
    %7 = arith.addf %4, %6 : vector<64x128xf32>
    %cst = arith.constant 0.000000e+00 : f32
    %8 = vector.broadcast %cst : f32 to vector<64x128xf32>
    %9 = arith.maximumf %7, %8 : vector<64x128xf32>
    %c0_5 = arith.constant 0 : index
    %c0_6 = arith.constant 0 : index
    %c0_7 = arith.constant 0 : index
    %10 = vector.load %arg3[%c0_5, %c0_6, %c0_7] : memref<1x64x3xf32, #tpu.memory_space<vmem>>, vector<1x64x3xf32>
    %11 = vector.shape_cast %10 : vector<1x64x3xf32> to vector<64x3xf32>
    %12 = vector.extract_strided_slice %11 {offsets = [0, 0], sizes = [64, 1], strides = [1, 1]} : vector<64x3xf32> to vector<64x1xf32>
    %c0_8 = arith.constant 0 : index
    %c0_9 = arith.constant 0 : index
    %13 = vector.load %arg5[%c0_8, %c0_9] : memref<3x128xf32, #tpu.memory_space<vmem>>, vector<1x128xf32>
    %14 = vector.broadcast %12 : vector<64x1xf32> to vector<64x128xf32>
    %15 = vector.broadcast %13 : vector<1x128xf32> to vector<64x128xf32>
    %16 = arith.mulf %14, %15 : vector<64x128xf32>
    %17 = vector.extract_strided_slice %11 {offsets = [0, 1], sizes = [64, 1], strides = [1, 1]} : vector<64x3xf32> to vector<64x1xf32>
    %c1_10 = arith.constant 1 : index
    %c0_11 = arith.constant 0 : index
    %18 = vector.load %arg5[%c1_10, %c0_11] : memref<3x128xf32, #tpu.memory_space<vmem>>, vector<1x128xf32>
    %19 = vector.broadcast %17 : vector<64x1xf32> to vector<64x128xf32>
    %20 = vector.broadcast %18 : vector<1x128xf32> to vector<64x128xf32>
    %21 = arith.mulf %19, %20 : vector<64x128xf32>
    %22 = arith.addf %16, %21 : vector<64x128xf32>
    %23 = vector.extract_strided_slice %11 {offsets = [0, 2], sizes = [64, 1], strides = [1, 1]} : vector<64x3xf32> to vector<64x1xf32>
    %c2 = arith.constant 2 : index
    %c0_12 = arith.constant 0 : index
    %24 = vector.load %arg5[%c2, %c0_12] : memref<3x128xf32, #tpu.memory_space<vmem>>, vector<1x128xf32>
    %25 = vector.broadcast %23 : vector<64x1xf32> to vector<64x128xf32>
    %26 = vector.broadcast %24 : vector<1x128xf32> to vector<64x128xf32>
    %27 = arith.mulf %25, %26 : vector<64x128xf32>
    %28 = arith.addf %22, %27 : vector<64x128xf32>
    %c0_13 = arith.constant 0 : index
    %c0_14 = arith.constant 0 : index
    %29 = vector.load %arg7[%c0_13, %c0_14] : memref<2x128xf32, #tpu.memory_space<vmem>>, vector<1x128xf32>
    %30 = vector.broadcast %29 : vector<1x128xf32> to vector<64x128xf32>
    %31 = arith.mulf %28, %30 : vector<64x128xf32>
    %c1_15 = arith.constant 1 : index
    %c0_16 = arith.constant 0 : index
    %32 = vector.load %arg7[%c1_15, %c0_16] : memref<2x128xf32, #tpu.memory_space<vmem>>, vector<1x128xf32>
    %33 = vector.broadcast %32 : vector<1x128xf32> to vector<64x128xf32>
    %34 = arith.addf %31, %33 : vector<64x128xf32>
    %cst_17 = arith.constant 5.000000e-01 : f32
    %35 = vector.broadcast %cst_17 : f32 to vector<64x128xf32>
    %36 = arith.mulf %35, %34 : vector<64x128xf32>
    %37 = arith.addf %9, %36 : vector<64x128xf32>
    %c0_18 = arith.constant 0 : index
    %c0_19 = arith.constant 0 : index
    %c0_20 = arith.constant 0 : index
    %38 = vector.load %arg2[%c0_18, %c0_19, %c0_20] : memref<1x64x4xf32, #tpu.memory_space<vmem>>, vector<1x64x4xf32>
    %39 = vector.shape_cast %38 : vector<1x64x4xf32> to vector<64x4xf32>
    %40 = arith.truncf %39 : vector<64x4xf32> to vector<64x4xbf16>
    %c0_21 = arith.constant 0 : index
    %c0_22 = arith.constant 0 : index
    %41 = vector.load %arg4[%c0_21, %c0_22] : memref<4x128xbf16, #tpu.memory_space<vmem>>, vector<4x128xbf16>
    %cst_23 = arith.constant dense<0.000000e+00> : vector<64x128xf32>
    %42 = tpu.matmul %40, %41, %cst_23 {dimension_numbers = #tpu.dot_dimension_numbers<[1], [0], [0], [1], [0, 0, 1, 1], [], []>} : vector<64x4xbf16>, vector<4x128xbf16>, vector<64x128xf32> -> vector<64x128xf32>
    %c0_24 = arith.constant 0 : index
    %c0_25 = arith.constant 0 : index
    %43 = vector.load %arg8[%c0_24, %c0_25] : memref<2x128xf32, #tpu.memory_space<vmem>>, vector<1x128xf32>
    %44 = vector.broadcast %43 : vector<1x128xf32> to vector<64x128xf32>
    %45 = arith.mulf %42, %44 : vector<64x128xf32>
    %c1_26 = arith.constant 1 : index
    %c0_27 = arith.constant 0 : index
    %46 = vector.load %arg8[%c1_26, %c0_27] : memref<2x128xf32, #tpu.memory_space<vmem>>, vector<1x128xf32>
    %47 = vector.broadcast %46 : vector<1x128xf32> to vector<64x128xf32>
    %48 = arith.addf %45, %47 : vector<64x128xf32>
    %49 = arith.addf %37, %48 : vector<64x128xf32>
    %cst_28 = arith.constant 0.000000e+00 : f32
    %50 = vector.broadcast %cst_28 : f32 to vector<64x128xf32>
    %51 = arith.maximumf %49, %50 : vector<64x128xf32>
    %c0_29 = arith.constant 0 : index
    %c0_30 = arith.constant 0 : index
    %c0_31 = arith.constant 0 : index
    %52 = vector.load %arg9[%c0_29, %c0_30, %c0_31] : memref<1x64x128xf32, #tpu.memory_space<vmem>>, vector<1x64x128xf32>
    %53 = vector.shape_cast %52 : vector<1x64x128xf32> to vector<64x128xf32>
    %54 = vector.shape_cast %51 : vector<64x128xf32> to vector<1x64x128xf32>
    tpu.vector_store %arg9[%c0_29, %c0_30, %c0_31], %54 {strides = array<i32>} : memref<1x64x128xf32, #tpu.memory_space<vmem>>, vector<1x64x128xf32>,
    return
  }
  func.func @transform_0(%arg0: i32) -> (i32, i32, i32) {
    %c0_i32 = arith.constant 0 : i32
    %c0_i32_0 = arith.constant 0 : i32
    %c0_i32_1 = arith.constant 0 : i32
    return %arg0, %c0_i32, %c0_i32_0 : i32, i32, i32
  }
  func.func @transform_1(%arg0: i32) -> (i32, i32, i32) {
    %c0_i32 = arith.constant 0 : i32
    %c0_i32_0 = arith.constant 0 : i32
    %c0_i32_1 = arith.constant 0 : i32
    return %arg0, %c0_i32, %c0_i32_0 : i32, i32, i32
  }
  func.func @transform_2(%arg0: i32) -> (i32, i32, i32) {
    %c0_i32 = arith.constant 0 : i32
    %c0_i32_0 = arith.constant 0 : i32
    %c0_i32_1 = arith.constant 0 : i32
    return %arg0, %c0_i32, %c0_i32_0 : i32, i32, i32
  }
  func.func @transform_3(%arg0: i32) -> (i32, i32) {
    %c0_i32 = arith.constant 0 : i32
    %c0_i32_0 = arith.constant 0 : i32
    %c0_i32_1 = arith.constant 0 : i32
    return %c0_i32, %c0_i32_0 : i32, i32
  }
  func.func @transform_4(%arg0: i32) -> (i32, i32) {
    %c0_i32 = arith.constant 0 : i32
    %c0_i32_0 = arith.constant 0 : i32
    %c0_i32_1 = arith.constant 0 : i32
    return %c0_i32, %c0_i32_0 : i32, i32
  }
  func.func @transform_5(%arg0: i32) -> (i32, i32) {
    %c0_i32 = arith.constant 0 : i32
    %c0_i32_0 = arith.constant 0 : i32
    %c0_i32_1 = arith.constant 0 : i32
    return %c0_i32, %c0_i32_0 : i32, i32
  }
  func.func @transform_6(%arg0: i32) -> (i32, i32) {
    %c0_i32 = arith.constant 0 : i32
    %c0_i32_0 = arith.constant 0 : i32
    %c0_i32_1 = arith.constant 0 : i32
    return %c0_i32, %c0_i32_0 : i32, i32
  }
  func.func @transform_7(%arg0: i32) -> (i32, i32) {
    %c0_i32 = arith.constant 0 : i32
    %c0_i32_0 = arith.constant 0 : i32
    %c0_i32_1 = arith.constant 0 : i32
    return %c0_i32, %c0_i32_0 : i32, i32
  }
  func.func @transform_8(%arg0: i32) -> (i32, i32, i32) {
    %c0_i32 = arith.constant 0 : i32
    %c0_i32_0 = arith.constant 0 : i32
    %c0_i32_1 = arith.constant 0 : i32
    return %arg0, %c0_i32, %c0_i32_0 : i32, i32, i32
  }
}

</mosaic_0001>

<llo_original>
// kernel: neural_resnet34_bottleneck_forward.5
$region0: #{neural_resnet34_bottleneck_forward.5}
  #allocation0 [shape = 'u32[]', space=smem, size = 0x4, offset = 0x4, fixed_abs, tag = 'smem constant byte address 0x4 - core index']
  #allocation1 [shape = 'u32[144,128]{1,0:T(1,128)}', space=vmem, size = 0x12000, scoped, tag = 'internal scratch']
  %s0 = inlined_call_operand.hbm [shape: f32[2,64,128], index: 0, kind: input, shape index: {}]
  %s1 = inlined_call_operand.hbm [shape: f32[2,64,4], index: 1, kind: input, shape index: {}]
  %s2 = inlined_call_operand.hbm [shape: f32[2,64,3], index: 2, kind: input, shape index: {}]
  %s3 = inlined_call_operand.hbm [shape: bf16[4,128], index: 3, kind: input, shape index: {}]
  %s4 = inlined_call_operand.hbm [shape: f32[3,128], index: 4, kind: input, shape index: {}]
  %s5 = inlined_call_operand.hbm [shape: f32[2,128], index: 5, kind: input, shape index: {}]
  %s6 = inlined_call_operand.hbm [shape: f32[2,128], index: 6, kind: input, shape index: {}]
  %s7 = inlined_call_operand.hbm [shape: f32[2,128], index: 7, kind: input, shape index: {}]
  %s8 = inlined_call_operand.hbm [shape: f32[2,64,128], index: 8, kind: output, shape index: {}]
  %s9 = sld [smem:[#allocation0]]
  $region97: #{neural_resnet34_bottleneck_forward.5} parent=0
    _
  %s11 = ssub.s32 1, %s9
  %s12 = scalar_select 0, %s11, %s9
  $region1: #{neural_resnet34_bottleneck_forward.5} parent=0
    #allocation2 [shape = 'u8[65536]{0}', space=vmem, size = 0x10000, scoped, tag = 'input window, operand 0']
    #allocation3 [shape = 's32[2]{0}', space=sflag, size = 0x8, scoped, tag = 'scoped memory for neural_resnet34_bottleneck_forward.5']
    #allocation4 [shape = 's32[2]{0}', space=sflag, size = 0x8, scoped, tag = 'scoped memory for neural_resnet34_bottleneck_forward.5']
    #allocation5 [shape = 'u8[65536]{0}', space=vmem, size = 0x10000, scoped, tag = 'input window, operand 1']
    #allocation6 [shape = 's32[2]{0}', space=sflag, size = 0x8, scoped, tag = 'scoped memory for neural_resnet34_bottleneck_forward.5']
    #allocation7 [shape = 'u8[65536]{0}', space=vmem, size = 0x10000, scoped, tag = 'input window, operand 2']
    #allocation8 [shape = 'u8[1024]{0}', space=vmem, size = 0x400, scoped, tag = 'input window, operand 3, single buffered']
    #allocation9 [shape = 's32[1]{0}', space=sflag, size = 0x4, scoped, tag = 'scoped memory for neural_resnet34_bottleneck_forward.5']
    #allocation10 [shape = 'u8[2048]{0}', space=vmem, size = 0x800, scoped, tag = 'input window, operand 4, single buffered']
    #allocation11 [shape = 'u8[1024]{0}', space=vmem, size = 0x400, scoped, tag = 'input window, operand 5, single buffered']
    #allocation12 [shape = 's32[1]{0}', space=sflag, size = 0x4, scoped, tag = 'scoped memory for neural_resnet34_bottleneck_forward.5']
    #allocation13 [shape = 'u8[1024]{0}', space=vmem, size = 0x400, scoped, tag = 'input window, operand 6, single buffered']
    #allocation14 [shape = 'u8[1024]{0}', space=vmem, size = 0x400, scoped, tag = 'input window, operand 7, single buffered']
    #allocation15 [shape = 's32[1]{0}', space=sflag, size = 0x4, scoped, tag = 'scoped memory for neural_resnet34_bottleneck_forward.5']
    #allocation16 [shape = 'u8[65536]{0}', space=vmem, size = 0x10000, scoped, tag = 'output window, operand 0']
    %13 = vsyncpa [#allocation3], 0
    %s14 = scalar_lea.sflag [#allocation3], 1
    %15 = vsyncpa %s14, 0
    %16 = vsyncpa [#allocation6], 0
    %s17 = scalar_lea.sflag [#allocation6], 1
    %18 = vsyncpa %s17, 0
    %19 = vsyncpa [#allocation9], 0
    %20 = vsyncpa [#allocation12], 0
    %21 = vsyncpa [#allocation15], 0
    %22 = vsyncpa [#allocation4], 0
    %s23 = scalar_lea.sflag [#allocation4], 1
    %24 = vsyncpa %s23, 0
    loop: start=0, step=1, limit=4
    $region2: #{neural_resnet34_bottleneck_forward.5} parent=1 // loop_pre_header
      _
    $region3: #{neural_resnet34_bottleneck_forward.5} parent=1 // loop_header
      %s26 = sphi 0, %s30
      %p27 = scmp.ge.s32.totalorder %s26, 4
      %s36 = sphi 0, %s38
      %s39 = sphi 0, %s36
      %s40 = sphi 0, %s39
      %s56 = sphi 0, %s40
      %s62 = sphi 0, %s64
      %s65 = sphi 0, %s62
      %s66 = sphi 0, %s65
      %s82 = sphi 0, %s66
      %s88 = sphi 0, %s90
      %s91 = sphi 0, %s88
      %s92 = sphi 0, %s91
      %s108 = sphi 0, %s92
      %s112 = sphi 0, %s112
      %s114 = sphi 0, %s112
      %s115 = sphi 0, %s114
      %s129 = sphi 0, %s115
      %s133 = sphi 0, %s133
      %s135 = sphi 0, %s133
      %s136 = sphi 0, %s135
      %s150 = sphi 0, %s136
      %s154 = sphi 0, %s154
      %s156 = sphi 0, %s154
      %s157 = sphi 0, %s156
      %s171 = sphi 0, %s157
      %s175 = sphi 0, %s175
      %s177 = sphi 0, %s175
      %s178 = sphi 0, %s177
      %s192 = sphi 0, %s178
      %s196 = sphi 0, %s196
      %s198 = sphi 0, %s196
      %s199 = sphi 0, %s198
      %s213 = sphi 0, %s199
      %s219 = sphi 0, %s221
      %s222 = sphi 0, %s219
      %s223 = sphi 0, %s222
      %s239 = sphi 0, %s223
    $region4: #{neural_resnet34_bottleneck_forward.5} parent=1 // loop_header_branch
      %29 = sbr.rel (%p27) target = $region8
    $region5: #{neural_resnet34_bottleneck_forward.5} parent=1 // loop_body
      %s31 = ssub.s32 %s26, 1
      %s32 = ssub.s32 %s26, 2
      %s33 = sadd.s32 %s26, 1
      %s34 = ssub.s32 %s26, %s33
      %p35 = scmp.eq.s32.totalorder %s34, 0
      %s37 = sadd.s32 %s36, 1
      %s38 = scalar_select %p35, %s36, %s37
      %p41 = pneg %p35
      %p42 = scmp.eq.s32.totalorder %s26, 1
      %p43 = por %p41, %p42
      %p44 = scmp.ne.s32.totalorder %s36, %s39
      %p45 = scmp.eq.s32.totalorder %s26, 0
      %p46 = por %p44, %p45
      %p47 = scmp.ne.s32.totalorder %s36, %s39
      %p48 = scmp.eq.s32.totalorder %s31, 1
      %p49 = por %p47, %p48
      %p50 = scmp.ne.s32.totalorder %s39, %s40
      %p51 = scmp.eq.s32.totalorder %s31, 0
      %p52 = por %p50, %p51
      %p53 = scmp.ne.s32.totalorder %s39, %s40
      %p54 = scmp.eq.s32.totalorder %s32, 1
      %p55 = por %p53, %p54
      %p57 = scmp.ne.s32.totalorder %s40, %s56
      %p58 = scmp.eq.s32.totalorder %s32, 0
      %p59 = por %p57, %p58
      %s60 = ssub.s32 %s26, %s33
      %p61 = scmp.eq.s32.totalorder %s60, 0
      %s63 = sadd.s32 %s62, 1
      %s64 = scalar_select %p61, %s62, %s63
      %p67 = pneg %p61
      %p68 = scmp.eq.s32.totalorder %s26, 1
      %p69 = por %p67, %p68
      %p70 = scmp.ne.s32.totalorder %s62, %s65
      %p71 = scmp.eq.s32.totalorder %s26, 0
      %p72 = por %p70, %p71
      %p73 = scmp.ne.s32.totalorder %s62, %s65
      %p74 = scmp.eq.s32.totalorder %s31, 1
      %p75 = por %p73, %p74
      %p76 = scmp.ne.s32.totalorder %s65, %s66
      %p77 = scmp.eq.s32.totalorder %s31, 0
      %p78 = por %p76, %p77
      %p79 = scmp.ne.s32.totalorder %s65, %s66
      %p80 = scmp.eq.s32.totalorder %s32, 1
      %p81 = por %p79, %p80
      %p83 = scmp.ne.s32.totalorder %s66, %s82
      %p84 = scmp.eq.s32.totalorder %s32, 0
      %p85 = por %p83, %p84
      %s86 = ssub.s32 %s26, %s33
      %p87 = scmp.eq.s32.totalorder %s86, 0
      %s89 = sadd.s32 %s88, 1
      %s90 = scalar_select %p87, %s88, %s89
      %p93 = pneg %p87
      %p94 = scmp.eq.s32.totalorder %s26, 1
      %p95 = por %p93, %p94
      %p96 = scmp.ne.s32.totalorder %s88, %s91
      %p97 = scmp.eq.s32.totalorder %s26, 0
      %p98 = por %p96, %p97
      %p99 = scmp.ne.s32.totalorder %s88, %s91
      %p100 = scmp.eq.s32.totalorder %s31, 1
      %p101 = por %p99, %p100
      %p102 = scmp.ne.s32.totalorder %s91, %s92
      %p103 = scmp.eq.s32.totalorder %s31, 0
      %p104 = por %p102, %p103
      %p105 = scmp.ne.s32.totalorder %s91, %s92
      %p106 = scmp.eq.s32.totalorder %s32, 1
      %p107 = por %p105, %p106
      %p109 = scmp.ne.s32.totalorder %s92, %s108
      %p110 = scmp.eq.s32.totalorder %s32, 0
      %p111 = por %p109, %p110
      %s113 = sadd.s32 %s112, 1
      %p116 = scmp.eq.s32.totalorder %s26, 1
      %p117 = scmp.ne.s32.totalorder %s112, %s114
      %p118 = scmp.eq.s32.totalorder %s26, 0
      %p119 = por %p117, %p118
      %p120 = scmp.ne.s32.totalorder %s112, %s114
      %p121 = scmp.eq.s32.totalorder %s31, 1
      %p122 = por %p120, %p121
      %p123 = scmp.ne.s32.totalorder %s114, %s115
      %p124 = scmp.eq.s32.totalorder %s31, 0
      %p125 = por %p123, %p124
      %p126 = scmp.ne.s32.totalorder %s114, %s115
      %p127 = scmp.eq.s32.totalorder %s32, 1
      %p128 = por %p126, %p127
      %p130 = scmp.ne.s32.totalorder %s115, %s129
      %p131 = scmp.eq.s32.totalorder %s32, 0
      %p132 = por %p130, %p131
      %s134 = sadd.s32 %s133, 1
      %p137 = scmp.eq.s32.totalorder %s26, 1
      %p138 = scmp.ne.s32.totalorder %s133, %s135
      %p139 = scmp.eq.s32.totalorder %s26, 0
      %p140 = por %p138, %p139
      %p141 = scmp.ne.s32.totalorder %s133, %s135
      %p142 = scmp.eq.s32.totalorder %s31, 1
      %p143 = por %p141, %p142
      %p144 = scmp.ne.s32.totalorder %s135, %s136
      %p145 = scmp.eq.s32.totalorder %s31, 0
      %p146 = por %p144, %p145
      %p147 = scmp.ne.s32.totalorder %s135, %s136
      %p148 = scmp.eq.s32.totalorder %s32, 1
      %p149 = por %p147, %p148
      %p151 = scmp.ne.s32.totalorder %s136, %s150
      %p152 = scmp.eq.s32.totalorder %s32, 0
      %p153 = por %p151, %p152
      %s155 = sadd.s32 %s154, 1
      %p158 = scmp.eq.s32.totalorder %s26, 1
      %p159 = scmp.ne.s32.totalorder %s154, %s156
      %p160 = scmp.eq.s32.totalorder %s26, 0
      %p161 = por %p159, %p160
      %p162 = scmp.ne.s32.totalorder %s154, %s156
      %p163 = scmp.eq.s32.totalorder %s31, 1
      %p164 = por %p162, %p163
      %p165 = scmp.ne.s32.totalorder %s156, %s157
      %p166 = scmp.eq.s32.totalorder %s31, 0
      %p167 = por %p165, %p166
      %p168 = scmp.ne.s32.totalorder %s156, %s157
      %p169 = scmp.eq.s32.totalorder %s32, 1
      %p170 = por %p168, %p169
      %p172 = scmp.ne.s32.totalorder %s157, %s171
      %p173 = scmp.eq.s32.totalorder %s32, 0
      %p174 = por %p172, %p173
      %s176 = sadd.s32 %s175, 1
      %p179 = scmp.eq.s32.totalorder %s26, 1
      %p180 = scmp.ne.s32.totalorder %s175, %s177
      %p181 = scmp.eq.s32.totalorder %s26, 0
      %p182 = por %p180, %p181
      %p183 = scmp.ne.s32.totalorder %s175, %s177
      %p184 = scmp.eq.s32.totalorder %s31, 1
      %p185 = por %p183, %p184
      %p186 = scmp.ne.s32.totalorder %s177, %s178
      %p187 = scmp.eq.s32.totalorder %s31, 0
      %p188 = por %p186, %p187
      %p189 = scmp.ne.s32.totalorder %s177, %s178
      %p190 = scmp.eq.s32.totalorder %s32, 1
      %p191 = por %p189, %p190
      %p193 = scmp.ne.s32.totalorder %s178, %s192
      %p194 = scmp.eq.s32.totalorder %s32, 0
      %p195 = por %p193, %p194
      %s197 = sadd.s32 %s196, 1
      %p200 = scmp.eq.s32.totalorder %s26, 1
      %p201 = scmp.ne.s32.totalorder %s196, %s198
      %p202 = scmp.eq.s32.totalorder %s26, 0
      %p203 = por %p201, %p202
      %p204 = scmp.ne.s32.totalorder %s196, %s198
      %p205 = scmp.eq.s32.totalorder %s31, 1
      %p206 = por %p204, %p205
      %p207 = scmp.ne.s32.totalorder %s198, %s199
      %p208 = scmp.eq.s32.totalorder %s31, 0
      %p209 = por %p207, %p208
      %p210 = scmp.ne.s32.totalorder %s198, %s199
      %p211 = scmp.eq.s32.totalorder %s32, 1
      %p212 = por %p210, %p211
      %p214 = scmp.ne.s32.totalorder %s199, %s213
      %p215 = scmp.eq.s32.totalorder %s32, 0
      %p216 = por %p214, %p215
      %s217 = ssub.s32 %s26, %s33
      %p218 = scmp.eq.s32.totalorder %s217, 0
      %s220 = sadd.s32 %s219, 1
      %s221 = scalar_select %p218, %s219, %s220
      %p224 = pneg %p218
      %p225 = scmp.eq.s32.totalorder %s26, 1
      %p226 = por %p224, %p225
      %p227 = scmp.ne.s32.totalorder %s219, %s222
      %p228 = scmp.eq.s32.totalorder %s26, 0
      %p229 = por %p227, %p228
      %p230 = scmp.ne.s32.totalorder %s219, %s222
      %p231 = scmp.eq.s32.totalorder %s31, 1
      %p232 = por %p230, %p231
      %p233 = scmp.ne.s32.totalorder %s222, %s223
      %p234 = scmp.eq.s32.totalorder %s31, 0
      %p235 = por %p233, %p234
      %p236 = scmp.ne.s32.totalorder %s222, %s223
      %p237 = scmp.eq.s32.totalorder %s32, 1
      %p238 = por %p236, %p237
      %p240 = scmp.ne.s32.totalorder %s223, %s239
      %p241 = scmp.eq.s32.totalorder %s32, 0
      %p242 = por %p240, %p241
      %p243 = scmp.le.s32.totalorder 1, %s26
      %p244 = scmp.lt.s32.totalorder %s26, 3
      %p245 = pnand %p243, %p244
      %p246 = pneg %p245
      // Predicated region
      $region9: #{neural_resnet34_bottleneck_forward.5} parent=5 // pred_check
        _
      $region10: #{neural_resnet34_bottleneck_forward.5} parent=5 // pred_check_branch
        %248 = sbr.rel (%p245) target = $region12
      $region11: #{neural_resnet34_bottleneck_forward.5} parent=5 // pred_region
        %s249 = ssub.s32 %s26, 1
        // Predicated region
        $region13: #{neural_resnet34_bottleneck_forward.5} parent=11 // pred_check
          %p250 = pneg %p125
        $region14: #{neural_resnet34_bottleneck_forward.5} parent=11 // pred_check_branch
          %252 = sbr.rel (%p250) target = $region16
        $region15: #{neural_resnet34_bottleneck_forward.5} parent=11 // pred_region
          %s254 = ssub.s32 32, 32
          %255 = vsyncadd [#allocation9], %s254
          %s257 = sshll.u32 [#allocation8], 4
          %s258 = int_to_ptr.vmem [resolvable:$true] %s257
          %260 = dma.hbm_to_vmem [thread:$0]  %s3, 32, %s258, [#allocation9]
        $region16: #{neural_resnet34_bottleneck_forward.5} parent=11 // pred_fallthru
          _
        // Predicated region
        $region17: #{neural_resnet34_bottleneck_forward.5} parent=11 // pred_check
          %p261 = pneg %p146
        $region18: #{neural_resnet34_bottleneck_forward.5} parent=11 // pred_check_branch
          %263 = sbr.rel (%p261) target = $region20
        $region19: #{neural_resnet34_bottleneck_forward.5} parent=11 // pred_region
          %s265 = ssub.s32 64, 64
          %266 = vsyncadd [#allocation9], %s265
          %s268 = sshll.u32 [#allocation10], 4
          %s269 = int_to_ptr.vmem [resolvable:$true] %s268
          %271 = dma.hbm_to_vmem [thread:$0]  %s4, 64, %s269, [#allocation9]
        $region20: #{neural_resnet34_bottleneck_forward.5} parent=11 // pred_fallthru
          _
        // Predicated region
        $region21: #{neural_resnet34_bottleneck_forward.5} parent=11 // pred_check
          %p272 = pneg %p167
        $region22: #{neural_resnet34_bottleneck_forward.5} parent=11 // pred_check_branch
          %274 = sbr.rel (%p272) target = $region24
        $region23: #{neural_resnet34_bottleneck_forward.5} parent=11 // pred_region
          %s276 = ssub.s32 32, 32
          %277 = vsyncadd [#allocation12], %s276
          %s279 = sshll.u32 [#allocation11], 4
          %s280 = int_to_ptr.vmem [resolvable:$true] %s279
          %282 = dma.hbm_to_vmem [thread:$0]  %s5, 32, %s280, [#allocation12]
        $region24: #{neural_resnet34_bottleneck_forward.5} parent=11 // pred_fallthru
          _
        // Predicated region
        $region25: #{neural_resnet34_bottleneck_forward.5} parent=11 // pred_check
          %p283 = pneg %p188
        $region26: #{neural_resnet34_bottleneck_forward.5} parent=11 // pred_check_branch
          %285 = sbr.rel (%p283) target = $region28
        $region27: #{neural_resnet34_bottleneck_forward.5} parent=11 // pred_region
          %s287 = ssub.s32 32, 32
          %288 = vsyncadd [#allocation12], %s287
          %s290 = sshll.u32 [#allocation13], 4
          %s291 = int_to_ptr.vmem [resolvable:$true] %s290
          %293 = dma.hbm_to_vmem [thread:$0]  %s6, 32, %s291, [#allocation12]
        $region28: #{neural_resnet34_bottleneck_forward.5} parent=11 // pred_fallthru
          _
        // Predicated region
        $region29: #{neural_resnet34_bottleneck_forward.5} parent=11 // pred_check
          %p294 = pneg %p209
        $region30: #{neural_resnet34_bottleneck_forward.5} parent=11 // pred_check_branch
          %296 = sbr.rel (%p294) target = $region32
        $region31: #{neural_resnet34_bottleneck_forward.5} parent=11 // pred_region
          %s298 = ssub.s32 32, 32
          %299 = vsyncadd [#allocation15], %s298
          %s301 = sshll.u32 [#allocation14], 4
          %s302 = int_to_ptr.vmem [resolvable:$true] %s301
          %304 = dma.hbm_to_vmem [thread:$0]  %s7, 32, %s302, [#allocation15]
        $region32: #{neural_resnet34_bottleneck_forward.5} parent=11 // pred_fallthru
          _
      $region12: #{neural_resnet34_bottleneck_forward.5} parent=5 // pred_fallthru
        _
      %p305 = scmp.lt.s32.totalorder %s26, 2
      // Predicated region
      $region33: #{neural_resnet34_bottleneck_forward.5} parent=5 // pred_check
        %p306 = pneg %p305
      $region34: #{neural_resnet34_bottleneck_forward.5} parent=5 // pred_check_branch
        %308 = sbr.rel (%p306) target = $region36
      $region35: #{neural_resnet34_bottleneck_forward.5} parent=5 // pred_region
        // Predicated region
        $region37: #{neural_resnet34_bottleneck_forward.5} parent=35 // pred_check
          %p309 = pneg %p46
        $region38: #{neural_resnet34_bottleneck_forward.5} parent=35 // pred_check_branch
          %311 = sbr.rel (%p309) target = $region40
        $region39: #{neural_resnet34_bottleneck_forward.5} parent=35 // pred_region
          %s312 = sand.u32 %s36, 1
          %s313 = scalar_lea.sflag [#allocation3], %s312
          %s314 = sand.u32 %s36, 1
          %s315 = smul.addr %s314, 64
          %s316 = scalar_lea.vmem [#allocation2], %s315
          %s318 = ssub.s32 1024, 1024
          %319 = vsyncadd %s313, %s318
          %s320 = smul.addr %s26, 8
          %s321 = smul.addr %s320, 128
          %s322 = scalar_lea.hbm %s0, %s321
          %s323 = sshll.u32 %s316, 4
          %s324 = int_to_ptr.vmem [resolvable:$true] %s323
          %329 = dma.hbm_to_vmem [thread:$0]  %s322, 1024, %s324, %s313, 128, 128, 8
        $region40: #{neural_resnet34_bottleneck_forward.5} parent=35 // pred_fallthru
          _
        // Predicated region
        $region41: #{neural_resnet34_bottleneck_forward.5} parent=35 // pred_check
          %p330 = pneg %p72
        $region42: #{neural_resnet34_bottleneck_forward.5} parent=35 // pred_check_branch
          %332 = sbr.rel (%p330) target = $region44
        $region43: #{neural_resnet34_bottleneck_forward.5} parent=35 // pred_region
          %s333 = sand.u32 %s26, 1
          %s334 = scalar_lea.sflag [#allocation6], %s333
          %s335 = sand.u32 %s62, 1
          %s336 = smul.addr %s335, 64
          %s337 = scalar_lea.vmem [#allocation5], %s336
          %s339 = ssub.s32 1024, 1024
          %340 = vsyncadd %s334, %s339
          %s341 = smul.addr %s26, 8
          %s342 = smul.addr %s341, 128
          %s343 = scalar_lea.hbm %s1, %s342
          %s344 = sshll.u32 %s337, 4
          %s345 = int_to_ptr.vmem [resolvable:$true] %s344
          %350 = dma.hbm_to_vmem [thread:$0]  %s343, 1024, %s345, %s334, 128, 128, 8
        $region44: #{neural_resnet34_bottleneck_forward.5} parent=35 // pred_fallthru
          _
        // Predicated region
        $region45: #{neural_resnet34_bottleneck_forward.5} parent=35 // pred_check
          %p351 = pneg %p98
        $region46: #{neural_resnet34_bottleneck_forward.5} parent=35 // pred_check_branch
          %353 = sbr.rel (%p351) target = $region48
        $region47: #{neural_resnet34_bottleneck_forward.5} parent=35 // pred_region
          %s354 = sand.u32 %s26, 1
          %s355 = scalar_lea.sflag [#allocation6], %s354
          %s356 = sand.u32 %s88, 1
          %s357 = smul.addr %s356, 64
          %s358 = scalar_lea.vmem [#allocation7], %s357
          %s360 = ssub.s32 1024, 1024
          %361 = vsyncadd %s355, %s360
          %s362 = smul.addr %s26, 8
          %s363 = smul.addr %s362, 128
          %s364 = scalar_lea.hbm %s2, %s363
          %s365 = sshll.u32 %s358, 4
          %s366 = int_to_ptr.vmem [resolvable:$true] %s365
          %371 = dma.hbm_to_vmem [thread:$0]  %s364, 1024, %s366, %s355, 128, 128, 8
        $region48: #{neural_resnet34_bottleneck_forward.5} parent=35 // pred_fallthru
          _
      $region36: #{neural_resnet34_bottleneck_forward.5} parent=5 // pred_fallthru
        _
      %p372 = scmp.le.s32.totalorder 1, %s26
      %p373 = scmp.lt.s32.totalorder %s26, 3
      %p374 = pnand %p372, %p373
      %p375 = pneg %p374
      // Predicated region
      $region49: #{neural_resnet34_bottleneck_forward.5} parent=5 // pred_check
        _
      $region50: #{neural_resnet34_bottleneck_forward.5} parent=5 // pred_check_branch
        %377 = sbr.rel (%p374) target = $region52
      $region51: #{neural_resnet34_bottleneck_forward.5} parent=5 // pred_region
        %s378 = ssub.s32 %s26, 1
        %s379 = sand.u32 %s39, 1
        %s380 = scalar_lea.sflag [#allocation3], %s379
        %s381 = sand.u32 %s39, 1
        %s382 = smul.addr %s381, 64
        %s383 = scalar_lea.vmem [#allocation2], %s382
        // Predicated region
        $region53: #{neural_resnet34_bottleneck_forward.5} parent=51 // pred_check
          %p384 = pneg %p52
        $region54: #{neural_resnet34_bottleneck_forward.5} parent=51 // pred_check_branch
          %386 = sbr.rel (%p384) target = $region56
        $region55: #{neural_resnet34_bottleneck_forward.5} parent=51 // pred_region
          %387 = dma.done %s380, 1024
        $region56: #{neural_resnet34_bottleneck_forward.5} parent=51 // pred_fallthru
          _
        %s388 = sand.u32 %s31, 1
        %s389 = scalar_lea.sflag [#allocation6], %s388
        %s390 = sand.u32 %s65, 1
        %s391 = smul.addr %s390, 64
        %s392 = scalar_lea.vmem [#allocation5], %s391
        // Predicated region
        $region57: #{neural_resnet34_bottleneck_forward.5} parent=51 // pred_check
          %p393 = pneg %p78
        $region58: #{neural_resnet34_bottleneck_forward.5} parent=51 // pred_check_branch
          %395 = sbr.rel (%p393) target = $region60
        $region59: #{neural_resnet34_bottleneck_forward.5} parent=51 // pred_region
          %396 = dma.done %s389, 1024
        $region60: #{neural_resnet34_bottleneck_forward.5} parent=51 // pred_fallthru
          _
        %s397 = sand.u32 %s31, 1
        %s398 = scalar_lea.sflag [#allocation6], %s397
        %s399 = sand.u32 %s91, 1
        %s400 = smul.addr %s399, 64
        %s401 = scalar_lea.vmem [#allocation7], %s400
        // Predicated region
        $region61: #{neural_resnet34_bottleneck_forward.5} parent=51 // pred_check
          %p402 = pneg %p104
        $region62: #{neural_resnet34_bottleneck_forward.5} parent=51 // pred_check_branch
          %404 = sbr.rel (%p402) target = $region64
        $region63: #{neural_resnet34_bottleneck_forward.5} parent=51 // pred_region
          %405 = dma.done %s398, 1024
        $region64: #{neural_resnet34_bottleneck_forward.5} parent=51 // pred_fallthru
          _
        // Predicated region
        $region65: #{neural_resnet34_bottleneck_forward.5} parent=51 // pred_check
          %p406 = pneg %p125
        $region66: #{neural_resnet34_bottleneck_forward.5} parent=51 // pred_check_branch
          %408 = sbr.rel (%p406) target = $region68
        $region67: #{neural_resnet34_bottleneck_forward.5} parent=51 // pred_region
          %409 = dma.done [#allocation9], 32
        $region68: #{neural_resnet34_bottleneck_forward.5} parent=51 // pred_fallthru
          _
        // Predicated region
        $region69: #{neural_resnet34_bottleneck_forward.5} parent=51 // pred_check
          %p410 = pneg %p146
        $region70: #{neural_resnet34_bottleneck_forward.5} parent=51 // pred_check_branch
          %412 = sbr.rel (%p410) target = $region72
        $region71: #{neural_resnet34_bottleneck_forward.5} parent=51 // pred_region
          %413 = dma.done [#allocation9], 64
        $region72: #{neural_resnet34_bottleneck_forward.5} parent=51 // pred_fallthru
          _
        // Predicated region
        $region73: #{neural_resnet34_bottleneck_forward.5} parent=51 // pred_check
          %p414 = pneg %p167
        $region74: #{neural_resnet34_bottleneck_forward.5} parent=51 // pred_check_branch
          %416 = sbr.rel (%p414) target = $region76
        $region75: #{neural_resnet34_bottleneck_forward.5} parent=51 // pred_region
          %417 = dma.done [#allocation12], 32
        $region76: #{neural_resnet34_bottleneck_forward.5} parent=51 // pred_fallthru
          _
        // Predicated region
        $region77: #{neural_resnet34_bottleneck_forward.5} parent=51 // pred_check
          %p418 = pneg %p188
        $region78: #{neural_resnet34_bottleneck_forward.5} parent=51 // pred_check_branch
          %420 = sbr.rel (%p418) target = $region80
        $region79: #{neural_resnet34_bottleneck_forward.5} parent=51 // pred_region
          %421 = dma.done [#allocation12], 32
        $region80: #{neural_resnet34_bottleneck_forward.5} parent=51 // pred_fallthru
          _
        // Predicated region
        $region81: #{neural_resnet34_bottleneck_forward.5} parent=51 // pred_check
          %p422 = pneg %p209
        $region82: #{neural_resnet34_bottleneck_forward.5} parent=51 // pred_check_branch
          %424 = sbr.rel (%p422) target = $region84
        $region83: #{neural_resnet34_bottleneck_forward.5} parent=51 // pred_region
          %425 = dma.done [#allocation15], 32
        $region84: #{neural_resnet34_bottleneck_forward.5} parent=51 // pred_fallthru
          _
        %s426 = sand.u32 %s39, 1
        %s427 = scalar_lea.sflag [#allocation3], %s426
        %s428 = sand.u32 %s39, 1
        %s429 = smul.addr %s428, 64
        %s430 = scalar_lea.vmem [#allocation2], %s429
        %p431 = pneg %p52
        %p432 = pneg %p49
        %s433 = sand.u32 %s31, 1
        %s434 = scalar_lea.sflag [#allocation6], %s433
        %s435 = sand.u32 %s65, 1
        %s436 = smul.addr %s435, 64
        %s437 = scalar_lea.vmem [#allocation5], %s436
        %p438 = pneg %p78
        %p439 = pneg %p75
        %s440 = sand.u32 %s31, 1
        %s441 = scalar_lea.sflag [#allocation6], %s440
        %s442 = sand.u32 %s91, 1
        %s443 = smul.addr %s442, 64
        %s444 = scalar_lea.vmem [#allocation7], %s443
        %p445 = pneg %p104
        %p446 = pneg %p101
        %p447 = pneg %p125
        %p448 = pneg %p122
        %p449 = pneg %p146
        %p450 = pneg %p143
        %p451 = pneg %p167
        %p452 = pneg %p164
        %p453 = pneg %p188
        %p454 = pneg %p185
        %p455 = pneg %p209
        %p456 = pneg %p206
        %p457 = pneg %p235
        %p458 = pneg %p232
        %s459 = sand.u32 %s222, 1
        %s460 = scalar_lea.sflag [#allocation4], %s459
        %s461 = sand.u32 %s222, 1
        %s462 = smul.addr %s461, 64
        %s463 = scalar_lea.vmem [#allocation16], %s462
        %v465 = vld [vmem:[%s383] sm:$0xff]
        %v466 = vld [vmem:[%s383 + $0x8] sm:$0xff]
        %v467 = vld [vmem:[%s383 + $0x10] sm:$0xff]
        %v468 = vld [vmem:[%s383 + $0x18] sm:$0xff]
        %v469 = vld [vmem:[%s383 + $0x20] sm:$0xff]
        %v470 = vld [vmem:[%s383 + $0x28] sm:$0xff]
        %v471 = vld [vmem:[%s383 + $0x30] sm:$0xff]
        %v472 = vld [vmem:[%s383 + $0x38] sm:$0xff]
        %v473 = vld [vmem:[#allocation11] sm:$0x1]
        %v474 = vlaneseq
        %v475 = vshrl.u32 %v474, 7
        %v476 = vsub.s32 0, %v475
        %v477 = vrot.slane %v473, %v476
        %v478 = vmul.f32 %v465, %v477
        %v479 = vmul.f32 %v466, %v477
        %v480 = vmul.f32 %v467, %v477
        %v481 = vmul.f32 %v468, %v477
        %v482 = vmul.f32 %v469, %v477
        %v483 = vmul.f32 %v470, %v477
        %v484 = vmul.f32 %v471, %v477
        %v485 = vmul.f32 %v472, %v477
        %v486 = vld [vmem:[#allocation11 + $0x1] sm:$0x1]
        %v487 = vlaneseq
        %v488 = vshrl.u32 %v487, 7
        %v489 = vsub.s32 0, %v488
        %v490 = vrot.slane %v486, %v489
        %v491 = vadd.f32 %v478, %v490
        %v492 = vadd.f32 %v479, %v490
        %v493 = vadd.f32 %v480, %v490
        %v494 = vadd.f32 %v481, %v490
        %v495 = vadd.f32 %v482, %v490
        %v496 = vadd.f32 %v483, %v490
        %v497 = vadd.f32 %v484, %v490
        %v498 = vadd.f32 %v485, %v490
        %v499 = vmax.f32 %v491, 0.0
        %v500 = vmax.f32 %v492, 0.0
        %v501 = vmax.f32 %v493, 0.0
        %v502 = vmax.f32 %v494, 0.0
        %v503 = vmax.f32 %v495, 0.0
        %v504 = vmax.f32 %v496, 0.0
        %v505 = vmax.f32 %v497, 0.0
        %v506 = vmax.f32 %v498, 0.0
        %v507 = vld [vmem:[%s401] sm:$0xff]
        %v508 = vld [vmem:[%s401 + $0x8] sm:$0xff]
        %v509 = vld [vmem:[%s401 + $0x10] sm:$0xff]
        %v510 = vld [vmem:[%s401 + $0x18] sm:$0xff]
        %v511 = vld [vmem:[%s401 + $0x20] sm:$0xff]
        %v512 = vld [vmem:[%s401 + $0x28] sm:$0xff]
        %v513 = vld [vmem:[%s401 + $0x30] sm:$0xff]
        %v514 = vld [vmem:[%s401 + $0x38] sm:$0xff]
        %v515 = vld [vmem:[#allocation10] sm:$0x1]
        %517 = vset.pattern.permute.xlu0 0
        %518 = vperm.xlu0 %517, %v507
        %v519 = vpop.permute.xlu0 %518
        %522 = vset.pattern.permute.xlu0 0
        %523 = vperm.xlu0 %522, %v508
        %v524 = vpop.permute.xlu0 %523
        %527 = vset.pattern.permute.xlu0 0
        %528 = vperm.xlu0 %527, %v509
        %v529 = vpop.permute.xlu0 %528
        %532 = vset.pattern.permute.xlu0 0
        %533 = vperm.xlu0 %532, %v510
        %v534 = vpop.permute.xlu0 %533
        %537 = vset.pattern.permute.xlu0 0
        %538 = vperm.xlu0 %537, %v511
        %v539 = vpop.permute.xlu0 %538
        %542 = vset.pattern.permute.xlu0 0
        %543 = vperm.xlu0 %542, %v512
        %v544 = vpop.permute.xlu0 %543
        %547 = vset.pattern.permute.xlu0 0
        %548 = vperm.xlu0 %547, %v513
        %v549 = vpop.permute.xlu0 %548
        %552 = vset.pattern.permute.xlu0 0
        %553 = vperm.xlu0 %552, %v514
        %v554 = vpop.permute.xlu0 %553
        %v556 = vlaneseq
        %v557 = vshrl.u32 %v556, 7
        %v558 = vsub.s32 0, %v557
        %v559 = vrot.slane %v515, %v558
        %v560 = vmul.f32 %v519, %v559
        %v561 = vmul.f32 %v524, %v559
        %v562 = vmul.f32 %v529, %v559
        %v563 = vmul.f32 %v534, %v559
        %v564 = vmul.f32 %v539, %v559
        %v565 = vmul.f32 %v544, %v559
        %v566 = vmul.f32 %v549, %v559
        %v567 = vmul.f32 %v554, %v559
        %v568 = vld [vmem:[#allocation10 + $0x1] sm:$0x1]
        %569 = vset.pattern.permute.xlu0 1
        %570 = vperm.xlu0 %569, %v507
        %v571 = vpop.permute.xlu0 %570
        %573 = vset.pattern.permute.xlu0 1
        %574 = vperm.xlu0 %573, %v508
        %v575 = vpop.permute.xlu0 %574
        %577 = vset.pattern.permute.xlu0 1
        %578 = vperm.xlu0 %577, %v509
        %v579 = vpop.permute.xlu0 %578
        %581 = vset.pattern.permute.xlu0 1
        %582 = vperm.xlu0 %581, %v510
        %v583 = vpop.permute.xlu0 %582
        %585 = vset.pattern.permute.xlu0 1
        %586 = vperm.xlu0 %585, %v511
        %v587 = vpop.permute.xlu0 %586
        %589 = vset.pattern.permute.xlu0 1
        %590 = vperm.xlu0 %589, %v512
        %v591 = vpop.permute.xlu0 %590
        %593 = vset.pattern.permute.xlu0 1
        %594 = vperm.xlu0 %593, %v513
        %v595 = vpop.permute.xlu0 %594
        %597 = vset.pattern.permute.xlu0 1
        %598 = vperm.xlu0 %597, %v514
        %v599 = vpop.permute.xlu0 %598
        %v601 = vlaneseq
        %v602 = vshrl.u32 %v601, 7
        %v603 = vsub.s32 0, %v602
        %v604 = vrot.slane %v568, %v603
        %v605 = vmul.f32 %v571, %v604
        %v606 = vmul.f32 %v575, %v604
        %v607 = vmul.f32 %v579, %v604
        %v608 = vmul.f32 %v583, %v604
        %v609 = vmul.f32 %v587, %v604
        %v610 = vmul.f32 %v591, %v604
        %v611 = vmul.f32 %v595, %v604
        %v612 = vmul.f32 %v599, %v604
        %v613 = vadd.f32 %v560, %v605
        %v614 = vadd.f32 %v561, %v606
        %v615 = vadd.f32 %v562, %v607
        %v616 = vadd.f32 %v563, %v608
        %v617 = vadd.f32 %v564, %v609
        %v618 = vadd.f32 %v565, %v610
        %v619 = vadd.f32 %v566, %v611
        %v620 = vadd.f32 %v567, %v612
        %v621 = vld [vmem:[#allocation10 + $0x2] sm:$0x1]
        %622 = vset.pattern.permute.xlu0 2
        %623 = vperm.xlu0 %622, %v507
        %v624 = vpop.permute.xlu0 %623
        %626 = vset.pattern.permute.xlu0 2
        %627 = vperm.xlu0 %626, %v508
        %v628 = vpop.permute.xlu0 %627
        %630 = vset.pattern.permute.xlu0 2
        %631 = vperm.xlu0 %630, %v509
        %v632 = vpop.permute.xlu0 %631
        %634 = vset.pattern.permute.xlu0 2
        %635 = vperm.xlu0 %634, %v510
        %v636 = vpop.permute.xlu0 %635
        %638 = vset.pattern.permute.xlu0 2
        %639 = vperm.xlu0 %638, %v511
        %v640 = vpop.permute.xlu0 %639
        %642 = vset.pattern.permute.xlu0 2
        %643 = vperm.xlu0 %642, %v512
        %v644 = vpop.permute.xlu0 %643
        %646 = vset.pattern.permute.xlu0 2
        %647 = vperm.xlu0 %646, %v513
        %v648 = vpop.permute.xlu0 %647
        %650 = vset.pattern.permute.xlu0 2
        %651 = vperm.xlu0 %650, %v514
        %v652 = vpop.permute.xlu0 %651
        %v654 = vlaneseq
        %v655 = vshrl.u32 %v654, 7
        %v656 = vsub.s32 0, %v655
        %v657 = vrot.slane %v621, %v656
        %v658 = vmul.f32 %v624, %v657
        %v659 = vmul.f32 %v628, %v657
        %v660 = vmul.f32 %v632, %v657
        %v661 = vmul.f32 %v636, %v657
        %v662 = vmul.f32 %v640, %v657
        %v663 = vmul.f32 %v644, %v657
        %v664 = vmul.f32 %v648, %v657
        %v665 = vmul.f32 %v652, %v657
        %v666 = vadd.f32 %v613, %v658
        %v667 = vadd.f32 %v614, %v659
        %v668 = vadd.f32 %v615, %v660
        %v669 = vadd.f32 %v616, %v661
        %v670 = vadd.f32 %v617, %v662
        %v671 = vadd.f32 %v618, %v663
        %v672 = vadd.f32 %v619, %v664
        %v673 = vadd.f32 %v620, %v665
        %v674 = vld [vmem:[#allocation13] sm:$0x1]
        %v675 = vlaneseq
        %v676 = vshrl.u32 %v675, 7
        %v677 = vsub.s32 0, %v676
        %v678 = vrot.slane %v674, %v677
        %v679 = vmul.f32 %v666, %v678
        %v680 = vmul.f32 %v667, %v678
        %v681 = vmul.f32 %v668, %v678
        %v682 = vmul.f32 %v669, %v678
        %v683 = vmul.f32 %v670, %v678
        %v684 = vmul.f32 %v671, %v678
        %v685 = vmul.f32 %v672, %v678
        %v686 = vmul.f32 %v673, %v678
        %v687 = vld [vmem:[#allocation13 + $0x1] sm:$0x1]
        %v688 = vlaneseq
        %v689 = vshrl.u32 %v688, 7
        %v690 = vsub.s32 0, %v689
        %v691 = vrot.slane %v687, %v690
        %v692 = vadd.f32 %v679, %v691
        %v693 = vadd.f32 %v680, %v691
        %v694 = vadd.f32 %v681, %v691
        %v695 = vadd.f32 %v682, %v691
        %v696 = vadd.f32 %v683, %v691
        %v697 = vadd.f32 %v684, %v691
        %v698 = vadd.f32 %v685, %v691
        %v699 = vadd.f32 %v686, %v691
        %v700 = vmul.f32 %v692, 0.5
        %v701 = vmul.f32 %v693, 0.5
        %v702 = vmul.f32 %v694, 0.5
        %v703 = vmul.f32 %v695, 0.5
        %v704 = vmul.f32 %v696, 0.5
        %v705 = vmul.f32 %v697, 0.5
        %v706 = vmul.f32 %v698, 0.5
        %v707 = vmul.f32 %v699, 0.5
        %v708 = vadd.f32 %v499, %v700
        %v709 = vadd.f32 %v500, %v701
        %v710 = vadd.f32 %v501, %v702
        %v711 = vadd.f32 %v502, %v703
        %v712 = vadd.f32 %v503, %v704
        %v713 = vadd.f32 %v504, %v705
        %v714 = vadd.f32 %v505, %v706
        %v715 = vadd.f32 %v506, %v707
        %v716 = vld [vmem:[%s392] sm:$0xff]
        %v717 = vld [vmem:[%s392 + $0x8] sm:$0xff]
        %v718 = vld [vmem:[%s392 + $0x10] sm:$0xff]
        %v719 = vld [vmem:[%s392 + $0x18] sm:$0xff]
        %v720 = vld [vmem:[%s392 + $0x20] sm:$0xff]
        %v721 = vld [vmem:[%s392 + $0x28] sm:$0xff]
        %v722 = vld [vmem:[%s392 + $0x30] sm:$0xff]
        %v723 = vld [vmem:[%s392 + $0x38] sm:$0xff]
        %v724 = vpack.c.bf16 %v717, %v716
        %v725 = vpack.c.bf16 %v719, %v718
        %v726 = vpack.c.bf16 %v721, %v720
        %v727 = vpack.c.bf16 %v723, %v722
        %v728 = vld [vmem:[#allocation8] sm:$0x3]
        %vm729 = vcmask 31744
        %v731 = vsel %vm729, %v724, 0
        %v734 = vsel %vm729, %v725, 0
        %v737 = vsel %vm729, %v726, 0
        %v740 = vsel %vm729, %v727, 0
        %vm742 = vcmask 1041408
        %v744 = vsel %vm742, %v728, 0
        %746 = vmatprep.subr.bf16.mxu0 0
        %747 = vmatpush1.bf16.msra.mxu0 %v744
        %748 = vmatprep.subr.bf16.mxu0 0
        %749 = vmatpush1.bf16.msra.mxu0 0
        %750 = vmatprep.subr.bf16.mxu0 0
        %751 = vmatpush1.bf16.msra.mxu0 0
        %752 = vmatprep.subr.bf16.mxu0 0
        %753 = vmatpush1.bf16.msra.mxu0 0
        %754 = vmatprep.subr.bf16.mxu0 0
        %755 = vmatpush1.bf16.msra.mxu0 0
        %756 = vmatprep.subr.bf16.mxu0 0
        %757 = vmatpush1.bf16.msra.mxu0 0
        %758 = vmatprep.subr.bf16.mxu0 0
        %759 = vmatpush1.bf16.msra.mxu0 0
        %760 = vmatprep.subr.bf16.mxu0 0
        %761 = vmatpush1.bf16.msra.mxu0 0
        %762 = vmatprep.subr.bf16.mxu0 0
        %763 = vmatpush1.bf16.msra.mxu0 0
        %764 = vmatprep.subr.bf16.mxu0 0
        %765 = vmatpush1.bf16.msra.mxu0 0
        %766 = vmatprep.subr.bf16.mxu0 0
        %767 = vmatpush1.bf16.msra.mxu0 0
        %768 = vmatprep.subr.bf16.mxu0 0
        %769 = vmatpush1.bf16.msra.mxu0 0
        %770 = vmatprep.subr.bf16.mxu0 0
        %771 = vmatpush1.bf16.msra.mxu0 0
        %772 = vmatprep.subr.bf16.mxu0 0
        %773 = vmatpush1.bf16.msra.mxu0 0
        %774 = vmatprep.subr.bf16.mxu0 0
        %775 = vmatpush1.bf16.msra.mxu0 0
        %776 = vmatprep.subr.bf16.mxu0 0
        %777 = vmatpush1.bf16.msra.mxu0 0
        %778 = vmatprep.mubr.bf16.mxu0 0
        %779 = vmatmul.mubr.bf16.gmra.mrb[0].mxu0 %v731
        %v780 = vpop.f32.mrb[0].mxu0
        %v781 = vadd.f32 0.0, %v780
        %v782 = vpop.f32.mrb[0].mxu0
        %v783 = vpop.f32.mrb[0].mxu0
        %v784 = vadd.f32 0.0, %v783
        %v785 = vpop.f32.mrb[0].mxu0
        %786 = vmatprep.mubr.bf16.mxu0 0
        %787 = vmatmul.mubr.bf16.gmra.mrb[0].mxu0 %v734
        %v788 = vpop.f32.mrb[0].mxu0
        %v789 = vadd.f32 0.0, %v788
        %v790 = vpop.f32.mrb[0].mxu0
        %v791 = vpop.f32.mrb[0].mxu0
        %v792 = vadd.f32 0.0, %v791
        %v793 = vpop.f32.mrb[0].mxu0
        %794 = vmatprep.mubr.bf16.mxu0 0
        %795 = vmatmul.mubr.bf16.gmra.mrb[0].mxu0 %v737
        %v796 = vpop.f32.mrb[0].mxu0
        %v797 = vadd.f32 0.0, %v796
        %v798 = vpop.f32.mrb[0].mxu0
        %v799 = vpop.f32.mrb[0].mxu0
        %v800 = vadd.f32 0.0, %v799
        %v801 = vpop.f32.mrb[0].mxu0
        %802 = vmatprep.mubr.bf16.mxu0 0
        %803 = vmatmul.mubr.bf16.gmra.mrb[0].mxu0 %v740
        %v804 = vpop.f32.mrb[0].mxu0
        %v805 = vadd.f32 0.0, %v804
        %v806 = vpop.f32.mrb[0].mxu0
        %v807 = vpop.f32.mrb[0].mxu0
        %v808 = vadd.f32 0.0, %v807
        %v809 = vpop.f32.mrb[0].mxu0
        %810 = vdwg.mxu0
        %v811 = vld [vmem:[#allocation14] sm:$0x1]
        %v812 = vlaneseq
        %v813 = vshrl.u32 %v812, 7
        %v814 = vsub.s32 0, %v813
        %v815 = vrot.slane %v811, %v814
        %v816 = vmul.f32 %v781, %v815
        %v817 = vmul.f32 %v784, %v815
        %v818 = vmul.f32 %v789, %v815
        %v819 = vmul.f32 %v792, %v815
        %v820 = vmul.f32 %v797, %v815
        %v821 = vmul.f32 %v800, %v815
        %v822 = vmul.f32 %v805, %v815
        %v823 = vmul.f32 %v808, %v815
        %v824 = vld [vmem:[#allocation14 + $0x1] sm:$0x1]
        %v825 = vlaneseq
        %v826 = vshrl.u32 %v825, 7
        %v827 = vsub.s32 0, %v826
        %v828 = vrot.slane %v824, %v827
        %v829 = vadd.f32 %v816, %v828
        %v830 = vadd.f32 %v817, %v828
        %v831 = vadd.f32 %v818, %v828
        %v832 = vadd.f32 %v819, %v828
        %v833 = vadd.f32 %v820, %v828
        %v834 = vadd.f32 %v821, %v828
        %v835 = vadd.f32 %v822, %v828
        %v836 = vadd.f32 %v823, %v828
        %v837 = vadd.f32 %v708, %v829
        %v838 = vadd.f32 %v709, %v830
        %v839 = vadd.f32 %v710, %v831
        %v840 = vadd.f32 %v711, %v832
        %v841 = vadd.f32 %v712, %v833
        %v842 = vadd.f32 %v713, %v834
        %v843 = vadd.f32 %v714, %v835
        %v844 = vadd.f32 %v715, %v836
        %v845 = vmax.f32 %v837, 0.0
        %v846 = vmax.f32 %v838, 0.0
        %v847 = vmax.f32 %v839, 0.0
        %v848 = vmax.f32 %v840, 0.0
        %v849 = vmax.f32 %v841, 0.0
        %v850 = vmax.f32 %v842, 0.0
        %v851 = vmax.f32 %v843, 0.0
        %v852 = vmax.f32 %v844, 0.0
        %853 = vst [vmem:[%s463] sm:$0xff] %v845
        %854 = vst [vmem:[%s463 + $0x8] sm:$0xff] %v846
        %855 = vst [vmem:[%s463 + $0x10] sm:$0xff] %v847
        %856 = vst [vmem:[%s463 + $0x18] sm:$0xff] %v848
        %857 = vst [vmem:[%s463 + $0x20] sm:$0xff] %v849
        %858 = vst [vmem:[%s463 + $0x28] sm:$0xff] %v850
        %859 = vst [vmem:[%s463 + $0x30] sm:$0xff] %v851
        %860 = vst [vmem:[%s463 + $0x38] sm:$0xff] %v852
        %s861 = sand.u32 %s222, 1
        %s862 = scalar_lea.sflag [#allocation4], %s861
        %s863 = sand.u32 %s222, 1
        %s864 = smul.addr %s863, 64
        %s865 = scalar_lea.vmem [#allocation16], %s864
        // Predicated region
        $region85: #{neural_resnet34_bottleneck_forward.5} parent=51 // pred_check
          %p866 = pneg %p232
        $region86: #{neural_resnet34_bottleneck_forward.5} parent=51 // pred_check_branch
          %868 = sbr.rel (%p866) target = $region88
        $region87: #{neural_resnet34_bottleneck_forward.5} parent=51 // pred_region
          %s870 = ssub.s32 1024, 1024
          %871 = vsyncadd %s862, %s870
          %s872 = smul.addr %s31, 8
          %s873 = smul.addr %s872, 128
          %s874 = scalar_lea.hbm %s8, %s873
          %s875 = sshll.u32 %s865, 4
          %s876 = int_to_ptr.vmem [resolvable:$true] %s875
          %881 = dma.vmem_to_hbm [thread:$0]  %s876, 1024, %s874, %s862, 128, 128, 8
        $region88: #{neural_resnet34_bottleneck_forward.5} parent=51 // pred_fallthru
          _
      $region52: #{neural_resnet34_bottleneck_forward.5} parent=5 // pred_fallthru
        _
      %p882 = scmp.le.s32.totalorder 2, %s26
      // Predicated region
      $region89: #{neural_resnet34_bottleneck_forward.5} parent=5 // pred_check
        %p883 = pneg %p882
      $region90: #{neural_resnet34_bottleneck_forward.5} parent=5 // pred_check_branch
        %885 = sbr.rel (%p883) target = $region92
      $region91: #{neural_resnet34_bottleneck_forward.5} parent=5 // pred_region
        %s886 = ssub.s32 %s26, 2
        // Predicated region
        $region93: #{neural_resnet34_bottleneck_forward.5} parent=91 // pred_check
          %p887 = pneg %p238
        $region94: #{neural_resnet34_bottleneck_forward.5} parent=91 // pred_check_branch
          %889 = sbr.rel (%p887) target = $region96
        $region95: #{neural_resnet34_bottleneck_forward.5} parent=91 // pred_region
          %s890 = sand.u32 %s223, 1
          %s891 = scalar_lea.sflag [#allocation4], %s890
          %s892 = sand.u32 %s223, 1
          %s893 = smul.addr %s892, 64
          %s894 = scalar_lea.vmem [#allocation16], %s893
          %895 = dma.done %s891, 1024
        $region96: #{neural_resnet34_bottleneck_forward.5} parent=91 // pred_fallthru
          _
      $region92: #{neural_resnet34_bottleneck_forward.5} parent=5 // pred_fallthru
        _
    $region6: #{neural_resnet34_bottleneck_forward.5} parent=1 // loop_footer
      %s30 = sadd.s32 1, %s26
    $region7: #{neural_resnet34_bottleneck_forward.5} parent=1 // loop_footer_branch
      %25 = sbr.rel target = $region3
    $region8: #{neural_resnet34_bottleneck_forward.5} parent=1 // loop_exit
      _
    %896 = vsyncpa [#allocation3], 1
    %s897 = scalar_lea.sflag [#allocation3], 1
    %898 = vsyncpa %s897, 1
    %899 = vsyncpa [#allocation6], 1
    %s900 = scalar_lea.sflag [#allocation6], 1
    %901 = vsyncpa %s900, 1
    %902 = vsyncpa [#allocation9], 1
    %903 = vsyncpa [#allocation12], 1
    %904 = vsyncpa [#allocation15], 1
    %905 = vsyncpa [#allocation4], 1
    %s906 = scalar_lea.sflag [#allocation4], 1
    %907 = vsyncpa %s906, 1

// kernel: neural_resnet34_bottleneck_forward.3
$region0: #{neural_resnet34_bottleneck_forward.3}
  #allocation0 [shape = 'u32[]', space=smem, size = 0x4, offset = 0x4, fixed_abs, tag = 'smem constant byte address 0x4 - core index']
  #allocation1 [shape = 'u32[144,128]{1,0:T(1,128)}', space=vmem, size = 0x12000, scoped, tag = 'internal scratch']
  %s0 = inlined_call_operand.hbm [shape: bf16[8,9,9,4], index: 0, kind: input, shape index: {}]
  %s1 = inlined_call_operand.hbm [shape: f32[2,64,4], index: 1, kind: input, shape index: {}]
  %s2 = inlined_call_operand.hbm [shape: f32[2,64,3], index: 2, kind: input, shape index: {}]
  %s3 = inlined_call_operand.hbm [shape: bf16[9,4,128], index: 3, kind: input, shape index: {}]
  %s4 = inlined_call_operand.hbm [shape: bf16[4,128], index: 4, kind: input, shape index: {}]
  %s5 = inlined_call_operand.hbm [shape: f32[3,128], index: 5, kind: input, shape index: {}]
  %s6 = inlined_call_operand.hbm [shape: f32[2,8,8,128], index: 6, kind: output, shape index: {0}]
  %s7 = inlined_call_operand.hbm [shape: f32[2,2,128], index: 7, kind: output, shape index: {1}]
  %s8 = inlined_call_operand.hbm [shape: f32[2,2,128], index: 8, kind: output, shape index: {2}]
  %s9 = inlined_call_operand.hbm [shape: f32[2,2,128], index: 9, kind: output, shape index: {3}]
  %10 = xla_tuple %s6, %s7, %s8, %s9
  %s11 = sld [smem:[#allocation0]]
  $region105: #{neural_resnet34_bottleneck_forward.3} parent=0
    _
  %s13 = ssub.s32 1, %s11
  %s14 = scalar_select 0, %s13, %s11
  $region1: #{neural_resnet34_bottleneck_forward.3} parent=0
    #allocation2 [shape = 'u8[294912]{0}', space=vmem, size = 0x48000, scoped, tag = 'input window, operand 0']
    #allocation3 [shape = 's32[2]{0}', space=sflag, size = 0x8, scoped, tag = 'scoped memory for neural_resnet34_bottleneck_forward.3']
    #allocation4 [shape = 's32[2]{0}', space=sflag, size = 0x8, scoped, tag = 'scoped memory for neural_resnet34_bottleneck_forward.3']
    #allocation5 [shape = 'u8[65536]{0}', space=vmem, size = 0x10000, scoped, tag = 'input window, operand 1']
    #allocation6 [shape = 's32[2]{0}', space=sflag, size = 0x8, scoped, tag = 'scoped memory for neural_resnet34_bottleneck_forward.3']
    #allocation7 [shape = 'u8[65536]{0}', space=vmem, size = 0x10000, scoped, tag = 'input window, operand 2']
    #allocation8 [shape = 'u8[9216]{0}', space=vmem, size = 0x2400, scoped, tag = 'input window, operand 3, single buffered']
    #allocation9 [shape = 's32[1]{0}', space=sflag, size = 0x4, scoped, tag = 'scoped memory for neural_resnet34_bottleneck_forward.3']
    #allocation10 [shape = 'u8[1024]{0}', space=vmem, size = 0x400, scoped, tag = 'input window, operand 4, single buffered']
    #allocation11 [shape = 'u8[2048]{0}', space=vmem, size = 0x800, scoped, tag = 'input window, operand 5, single buffered']
    #allocation12 [shape = 's32[1]{0}', space=sflag, size = 0x4, scoped, tag = 'scoped memory for neural_resnet34_bottleneck_forward.3']
    #allocation13 [shape = 'u8[65536]{0}', space=vmem, size = 0x10000, scoped, tag = 'output window, operand 0']
    #allocation14 [shape = 'u8[2048]{0}', space=vmem, size = 0x800, scoped, tag = 'output window, operand 1']
    #allocation15 [shape = 's32[2]{0}', space=sflag, size = 0x8, scoped, tag = 'scoped memory for neural_resnet34_bottleneck_forward.3']
    #allocation16 [shape = 'u8[2048]{0}', space=vmem, size = 0x800, scoped, tag = 'output window, operand 2']
    #allocation17 [shape = 'u8[2048]{0}', space=vmem, size = 0x800, scoped, tag = 'output window, operand 3']
    #allocation18 [shape = 's32[2]{0}', space=sflag, size = 0x8, scoped, tag = 'scoped memory for neural_resnet34_bottleneck_forward.3']
    %15 = vsyncpa [#allocation3], 0
    %s16 = scalar_lea.sflag [#allocation3], 1
    %17 = vsyncpa %s16, 0
    %18 = vsyncpa [#allocation6], 0
    %s19 = scalar_lea.sflag [#allocation6], 1
    %20 = vsyncpa %s19, 0
    %21 = vsyncpa [#allocation9], 0
    %22 = vsyncpa [#allocation12], 0
    %23 = vsyncpa [#allocation4], 0
    %s24 = scalar_lea.sflag [#allocation4], 1
    %25 = vsyncpa %s24, 0
    %26 = vsyncpa [#allocation15], 0
    %s27 = scalar_lea.sflag [#allocation15], 1
    %28 = vsyncpa %s27, 0
    %29 = vsyncpa [#allocation18], 0
    %s30 = scalar_lea.sflag [#allocation18], 1
    %31 = vsyncpa %s30, 0
    loop: start=0, step=1, limit=4
    $region2: #{neural_resnet34_bottleneck_forward.3} parent=1 // loop_pre_header
      _
    $region3: #{neural_resnet34_bottleneck_forward.3} parent=1 // loop_header
      %s33 = sphi 0, %s37
      %p34 = scmp.ge.s32.totalorder %s33, 4
      %s43 = sphi 0, %s45
      %s46 = sphi 0, %s43
      %s47 = sphi 0, %s46
      %s63 = sphi 0, %s47
      %s69 = sphi 0, %s71
      %s72 = sphi 0, %s69
      %s73 = sphi 0, %s72
      %s89 = sphi 0, %s73
      %s95 = sphi 0, %s97
      %s98 = sphi 0, %s95
      %s99 = sphi 0, %s98
      %s115 = sphi 0, %s99
      %s119 = sphi 0, %s119
      %s121 = sphi 0, %s119
      %s122 = sphi 0, %s121
      %s136 = sphi 0, %s122
      %s140 = sphi 0, %s140
      %s142 = sphi 0, %s140
      %s143 = sphi 0, %s142
      %s157 = sphi 0, %s143
      %s161 = sphi 0, %s161
      %s163 = sphi 0, %s161
      %s164 = sphi 0, %s163
      %s178 = sphi 0, %s164
      %s184 = sphi 0, %s186
      %s187 = sphi 0, %s184
      %s188 = sphi 0, %s187
      %s204 = sphi 0, %s188
      %s210 = sphi 0, %s212
      %s213 = sphi 0, %s210
      %s214 = sphi 0, %s213
      %s230 = sphi 0, %s214
      %s236 = sphi 0, %s238
      %s239 = sphi 0, %s236
      %s240 = sphi 0, %s239
      %s256 = sphi 0, %s240
      %s262 = sphi 0, %s264
      %s265 = sphi 0, %s262
      %s266 = sphi 0, %s265
      %s282 = sphi 0, %s266
    $region4: #{neural_resnet34_bottleneck_forward.3} parent=1 // loop_header_branch
      %36 = sbr.rel (%p34) target = $region8
    $region5: #{neural_resnet34_bottleneck_forward.3} parent=1 // loop_body
      %s38 = ssub.s32 %s33, 1
      %s39 = ssub.s32 %s33, 2
      %s40 = sadd.s32 %s33, 1
      %s41 = ssub.s32 %s33, %s40
      %p42 = scmp.eq.s32.totalorder %s41, 0
      %s44 = sadd.s32 %s43, 1
      %s45 = scalar_select %p42, %s43, %s44
      %p48 = pneg %p42
      %p49 = scmp.eq.s32.totalorder %s33, 1
      %p50 = por %p48, %p49
      %p51 = scmp.ne.s32.totalorder %s43, %s46
      %p52 = scmp.eq.s32.totalorder %s33, 0
      %p53 = por %p51, %p52
      %p54 = scmp.ne.s32.totalorder %s43, %s46
      %p55 = scmp.eq.s32.totalorder %s38, 1
      %p56 = por %p54, %p55
      %p57 = scmp.ne.s32.totalorder %s46, %s47
      %p58 = scmp.eq.s32.totalorder %s38, 0
      %p59 = por %p57, %p58
      %p60 = scmp.ne.s32.totalorder %s46, %s47
      %p61 = scmp.eq.s32.totalorder %s39, 1
      %p62 = por %p60, %p61
      %p64 = scmp.ne.s32.totalorder %s47, %s63
      %p65 = scmp.eq.s32.totalorder %s39, 0
      %p66 = por %p64, %p65
      %s67 = ssub.s32 %s33, %s40
      %p68 = scmp.eq.s32.totalorder %s67, 0
      %s70 = sadd.s32 %s69, 1
      %s71 = scalar_select %p68, %s69, %s70
      %p74 = pneg %p68
      %p75 = scmp.eq.s32.totalorder %s33, 1
      %p76 = por %p74, %p75
      %p77 = scmp.ne.s32.totalorder %s69, %s72
      %p78 = scmp.eq.s32.totalorder %s33, 0
      %p79 = por %p77, %p78
      %p80 = scmp.ne.s32.totalorder %s69, %s72
      %p81 = scmp.eq.s32.totalorder %s38, 1
      %p82 = por %p80, %p81
      %p83 = scmp.ne.s32.totalorder %s72, %s73
      %p84 = scmp.eq.s32.totalorder %s38, 0
      %p85 = por %p83, %p84
      %p86 = scmp.ne.s32.totalorder %s72, %s73
      %p87 = scmp.eq.s32.totalorder %s39, 1
      %p88 = por %p86, %p87
      %p90 = scmp.ne.s32.totalorder %s73, %s89
      %p91 = scmp.eq.s32.totalorder %s39, 0
      %p92 = por %p90, %p91
      %s93 = ssub.s32 %s33, %s40
      %p94 = scmp.eq.s32.totalorder %s93, 0
      %s96 = sadd.s32 %s95, 1
      %s97 = scalar_select %p94, %s95, %s96
      %p100 = pneg %p94
      %p101 = scmp.eq.s32.totalorder %s33, 1
      %p102 = por %p100, %p101
      %p103 = scmp.ne.s32.totalorder %s95, %s98
      %p104 = scmp.eq.s32.totalorder %s33, 0
      %p105 = por %p103, %p104
      %p106 = scmp.ne.s32.totalorder %s95, %s98
      %p107 = scmp.eq.s32.totalorder %s38, 1
      %p108 = por %p106, %p107
      %p109 = scmp.ne.s32.totalorder %s98, %s99
      %p110 = scmp.eq.s32.totalorder %s38, 0
      %p111 = por %p109, %p110
      %p112 = scmp.ne.s32.totalorder %s98, %s99
      %p113 = scmp.eq.s32.totalorder %s39, 1
      %p114 = por %p112, %p113
      %p116 = scmp.ne.s32.totalorder %s99, %s115
      %p117 = scmp.eq.s32.totalorder %s39, 0
      %p118 = por %p116, %p117
      %s120 = sadd.s32 %s119, 1
      %p123 = scmp.eq.s32.totalorder %s33, 1
      %p124 = scmp.ne.s32.totalorder %s119, %s121
      %p125 = scmp.eq.s32.totalorder %s33, 0
      %p126 = por %p124, %p125
      %p127 = scmp.ne.s32.totalorder %s119, %s121
      %p128 = scmp.eq.s32.totalorder %s38, 1
      %p129 = por %p127, %p128
      %p130 = scmp.ne.s32.totalorder %s121, %s122
      %p131 = scmp.eq.s32.totalorder %s38, 0
      %p132 = por %p130, %p131
      %p133 = scmp.ne.s32.totalorder %s121, %s122
      %p134 = scmp.eq.s32.totalorder %s39, 1
      %p135 = por %p133, %p134
      %p137 = scmp.ne.s32.totalorder %s122, %s136
      %p138 = scmp.eq.s32.totalorder %s39, 0
      %p139 = por %p137, %p138
      %s141 = sadd.s32 %s140, 1
      %p144 = scmp.eq.s32.totalorder %s33, 1
      %p145 = scmp.ne.s32.totalorder %s140, %s142
      %p146 = scmp.eq.s32.totalorder %s33, 0
      %p147 = por %p145, %p146
      %p148 = scmp.ne.s32.totalorder %s140, %s142
      %p149 = scmp.eq.s32.totalorder %s38, 1
      %p150 = por %p148, %p149
      %p151 = scmp.ne.s32.totalorder %s142, %s143
      %p152 = scmp.eq.s32.totalorder %s38, 0
      %p153 = por %p151, %p152
      %p154 = scmp.ne.s32.totalorder %s142, %s143
      %p155 = scmp.eq.s32.totalorder %s39, 1
      %p156 = por %p154, %p155
      %p158 = scmp.ne.s32.totalorder %s143, %s157
      %p159 = scmp.eq.s32.totalorder %s39, 0
      %p160 = por %p158, %p159
      %s162 = sadd.s32 %s161, 1
      %p165 = scmp.eq.s32.totalorder %s33, 1
      %p166 = scmp.ne.s32.totalorder %s161, %s163
      %p167 = scmp.eq.s32.totalorder %s33, 0
      %p168 = por %p166, %p167
      %p169 = scmp.ne.s32.totalorder %s161, %s163
      %p170 = scmp.eq.s32.totalorder %s38, 1
      %p171 = por %p169, %p170
      %p172 = scmp.ne.s32.totalorder %s163, %s164
      %p173 = scmp.eq.s32.totalorder %s38, 0
      %p174 = por %p172, %p173
      %p175 = scmp.ne.s32.totalorder %s163, %s164
      %p176 = scmp.eq.s32.totalorder %s39, 1
      %p177 = por %p175, %p176
      %p179 = scmp.ne.s32.totalorder %s164, %s178
      %p180 = scmp.eq.s32.totalorder %s39, 0
      %p181 = por %p179, %p180
      %s182 = ssub.s32 %s33, %s40
      %p183 = scmp.eq.s32.totalorder %s182, 0
      %s185 = sadd.s32 %s184, 1
      %s186 = scalar_select %p183, %s184, %s185
      %p189 = pneg %p183
      %p190 = scmp.eq.s32.totalorder %s33, 1
      %p191 = por %p189, %p190
      %p192 = scmp.ne.s32.totalorder %s184, %s187
      %p193 = scmp.eq.s32.totalorder %s33, 0
      %p194 = por %p192, %p193
      %p195 = scmp.ne.s32.totalorder %s184, %s187
      %p196 = scmp.eq.s32.totalorder %s38, 1
      %p197 = por %p195, %p196
      %p198 = scmp.ne.s32.totalorder %s187, %s188
      %p199 = scmp.eq.s32.totalorder %s38, 0
      %p200 = por %p198, %p199
      %p201 = scmp.ne.s32.totalorder %s187, %s188
      %p202 = scmp.eq.s32.totalorder %s39, 1
      %p203 = por %p201, %p202
      %p205 = scmp.ne.s32.totalorder %s188, %s204
      %p206 = scmp.eq.s32.totalorder %s39, 0
      %p207 = por %p205, %p206
      %s208 = ssub.s32 %s33, %s40
      %p209 = scmp.eq.s32.totalorder %s208, 0
      %s211 = sadd.s32 %s210, 1
      %s212 = scalar_select %p209, %s210, %s211
      %p215 = pneg %p209
      %p216 = scmp.eq.s32.totalorder %s33, 1
      %p217 = por %p215, %p216
      %p218 = scmp.ne.s32.totalorder %s210, %s213
      %p219 = scmp.eq.s32.totalorder %s33, 0
      %p220 = por %p218, %p219
      %p221 = scmp.ne.s32.totalorder %s210, %s213
      %p222 = scmp.eq.s32.totalorder %s38, 1
      %p223 = por %p221, %p222
      %p224 = scmp.ne.s32.totalorder %s213, %s214
      %p225 = scmp.eq.s32.totalorder %s38, 0
      %p226 = por %p224, %p225
      %p227 = scmp.ne.s32.totalorder %s213, %s214
      %p228 = scmp.eq.s32.totalorder %s39, 1
      %p229 = por %p227, %p228
      %p231 = scmp.ne.s32.totalorder %s214, %s230
      %p232 = scmp.eq.s32.totalorder %s39, 0
      %p233 = por %p231, %p232
      %s234 = ssub.s32 %s33, %s40
      %p235 = scmp.eq.s32.totalorder %s234, 0
      %s237 = sadd.s32 %s236, 1
      %s238 = scalar_select %p235, %s236, %s237
      %p241 = pneg %p235
      %p242 = scmp.eq.s32.totalorder %s33, 1
      %p243 = por %p241, %p242
      %p244 = scmp.ne.s32.totalorder %s236, %s239
      %p245 = scmp.eq.s32.totalorder %s33, 0
      %p246 = por %p244, %p245
      %p247 = scmp.ne.s32.totalorder %s236, %s239
      %p248 = scmp.eq.s32.totalorder %s38, 1
      %p249 = por %p247, %p248
      %p250 = scmp.ne.s32.totalorder %s239, %s240
      %p251 = scmp.eq.s32.totalorder %s38, 0
      %p252 = por %p250, %p251
      %p253 = scmp.ne.s32.totalorder %s239, %s240
      %p254 = scmp.eq.s32.totalorder %s39, 1
      %p255 = por %p253, %p254
      %p257 = scmp.ne.s32.totalorder %s240, %s256
      %p258 = scmp.eq.s32.totalorder %s39, 0
      %p259 = por %p257, %p258
      %s260 = ssub.s32 %s33, %s40
      %p261 = scmp.eq.s32.totalorder %s260, 0
      %s263 = sadd.s32 %s262, 1
      %s264 = scalar_select %p261, %s262, %s263
      %p267 = pneg %p261
      %p268 = scmp.eq.s32.totalorder %s33, 1
      %p269 = por %p267, %p268
      %p270 = scmp.ne.s32.totalorder %s262, %s265
      %p271 = scmp.eq.s32.totalorder %s33, 0
      %p272 = por %p270, %p271
      %p273 = scmp.ne.s32.totalorder %s262, %s265
      %p274 = scmp.eq.s32.totalorder %s38, 1
      %p275 = por %p273, %p274
      %p276 = scmp.ne.s32.totalorder %s265, %s266
      %p277 = scmp.eq.s32.totalorder %s38, 0
      %p278 = por %p276, %p277
      %p279 = scmp.ne.s32.totalorder %s265, %s266
      %p280 = scmp.eq.s32.totalorder %s39, 1
      %p281 = por %p279, %p280
      %p283 = scmp.ne.s32.totalorder %s266, %s282
      %p284 = scmp.eq.s32.totalorder %s39, 0
      %p285 = por %p283, %p284
      %p286 = scmp.le.s32.totalorder 1, %s33
      %p287 = scmp.lt.s32.totalorder %s33, 3
      %p288 = pnand %p286, %p287
      %p289 = pneg %p288
      // Predicated region
      $region9: #{neural_resnet34_bottleneck_forward.3} parent=5 // pred_check
        _
      $region10: #{neural_resnet34_bottleneck_forward.3} parent=5 // pred_check_branch
        %291 = sbr.rel (%p288) target = $region12
      $region11: #{neural_resnet34_bottleneck_forward.3} parent=5 // pred_region
        %s292 = ssub.s32 %s33, 1
        // Predicated region
        $region13: #{neural_resnet34_bottleneck_forward.3} parent=11 // pred_check
          %p293 = pneg %p132
        $region14: #{neural_resnet34_bottleneck_forward.3} parent=11 // pred_check_branch
          %295 = sbr.rel (%p293) target = $region16
        $region15: #{neural_resnet34_bottleneck_forward.3} parent=11 // pred_region
          %s297 = ssub.s32 288, 288
          %298 = vsyncadd [#allocation9], %s297
          %s299 = sshll.u32 [#allocation8], 4
          %s300 = int_to_ptr.vmem [resolvable:$true] %s299
          %305 = dma.hbm_to_vmem [thread:$0]  %s3, 288, %s300, [#allocation9], 32, 32, 2
        $region16: #{neural_resnet34_bottleneck_forward.3} parent=11 // pred_fallthru
          _
        // Predicated region
        $region17: #{neural_resnet34_bottleneck_forward.3} parent=11 // pred_check
          %p306 = pneg %p153
        $region18: #{neural_resnet34_bottleneck_forward.3} parent=11 // pred_check_branch
          %308 = sbr.rel (%p306) target = $region20
        $region19: #{neural_resnet34_bottleneck_forward.3} parent=11 // pred_region
          %s310 = ssub.s32 32, 32
          %311 = vsyncadd [#allocation9], %s310
          %s313 = sshll.u32 [#allocation10], 4
          %s314 = int_to_ptr.vmem [resolvable:$true] %s313
          %316 = dma.hbm_to_vmem [thread:$0]  %s4, 32, %s314, [#allocation9]
        $region20: #{neural_resnet34_bottleneck_forward.3} parent=11 // pred_fallthru
          _
        // Predicated region
        $region21: #{neural_resnet34_bottleneck_forward.3} parent=11 // pred_check
          %p317 = pneg %p174
        $region22: #{neural_resnet34_bottleneck_forward.3} parent=11 // pred_check_branch
          %319 = sbr.rel (%p317) target = $region24
        $region23: #{neural_resnet34_bottleneck_forward.3} parent=11 // pred_region
          %s321 = ssub.s32 64, 64
          %322 = vsyncadd [#allocation12], %s321
          %s324 = sshll.u32 [#allocation11], 4
          %s325 = int_to_ptr.vmem [resolvable:$true] %s324
          %327 = dma.hbm_to_vmem [thread:$0]  %s5, 64, %s325, [#allocation12]
        $region24: #{neural_resnet34_bottleneck_forward.3} parent=11 // pred_fallthru
          _
      $region12: #{neural_resnet34_bottleneck_forward.3} parent=5 // pred_fallthru
        _
      %p328 = scmp.lt.s32.totalorder %s33, 2
      // Predicated region
      $region25: #{neural_resnet34_bottleneck_forward.3} parent=5 // pred_check
        %p329 = pneg %p328
      $region26: #{neural_resnet34_bottleneck_forward.3} parent=5 // pred_check_branch
        %331 = sbr.rel (%p329) target = $region28
      $region27: #{neural_resnet34_bottleneck_forward.3} parent=5 // pred_region
        // Predicated region
        $region29: #{neural_resnet34_bottleneck_forward.3} parent=27 // pred_check
          %p332 = pneg %p53
        $region30: #{neural_resnet34_bottleneck_forward.3} parent=27 // pred_check_branch
          %334 = sbr.rel (%p332) target = $region32
        $region31: #{neural_resnet34_bottleneck_forward.3} parent=27 // pred_region
          %s335 = sand.u32 %s43, 1
          %s336 = scalar_lea.sflag [#allocation3], %s335
          %s337 = sand.u32 %s43, 1
          %s338 = smul.addr %s337, 288
          %s339 = scalar_lea.vmem [#allocation2], %s338
          %s340 = smul.u32 4, %s33
          %s342 = ssub.s32 4608, 4608
          %343 = vsyncadd %s336, %s342
          %s344 = smul.addr %s340, 18
          %s345 = smul.addr %s344, 64
          %s346 = scalar_lea.hbm %s0, %s345
          %s347 = sshll.u32 %s339, 4
          %s348 = int_to_ptr.vmem [resolvable:$true] %s347
          %353 = dma.hbm_to_vmem [thread:$0]  %s346, 4608, %s348, %s336, 64, 64, 4
        $region32: #{neural_resnet34_bottleneck_forward.3} parent=27 // pred_fallthru
          _
        // Predicated region
        $region33: #{neural_resnet34_bottleneck_forward.3} parent=27 // pred_check
          %p354 = pneg %p79
        $region34: #{neural_resnet34_bottleneck_forward.3} parent=27 // pred_check_branch
          %356 = sbr.rel (%p354) target = $region36
        $region35: #{neural_resnet34_bottleneck_forward.3} parent=27 // pred_region
          %s357 = sand.u32 %s33, 1
          %s358 = scalar_lea.sflag [#allocation6], %s357
          %s359 = sand.u32 %s69, 1
          %s360 = smul.addr %s359, 64
          %s361 = scalar_lea.vmem [#allocation5], %s360
          %s363 = ssub.s32 1024, 1024
          %364 = vsyncadd %s358, %s363
          %s365 = smul.addr %s33, 8
          %s366 = smul.addr %s365, 128
          %s367 = scalar_lea.hbm %s1, %s366
          %s368 = sshll.u32 %s361, 4
          %s369 = int_to_ptr.vmem [resolvable:$true] %s368
          %374 = dma.hbm_to_vmem [thread:$0]  %s367, 1024, %s369, %s358, 128, 128, 8
        $region36: #{neural_resnet34_bottleneck_forward.3} parent=27 // pred_fallthru
          _
        // Predicated region
        $region37: #{neural_resnet34_bottleneck_forward.3} parent=27 // pred_check
          %p375 = pneg %p105
        $region38: #{neural_resnet34_bottleneck_forward.3} parent=27 // pred_check_branch
          %377 = sbr.rel (%p375) target = $region40
        $region39: #{neural_resnet34_bottleneck_forward.3} parent=27 // pred_region
          %s378 = sand.u32 %s33, 1
          %s379 = scalar_lea.sflag [#allocation6], %s378
          %s380 = sand.u32 %s95, 1
          %s381 = smul.addr %s380, 64
          %s382 = scalar_lea.vmem [#allocation7], %s381
          %s384 = ssub.s32 1024, 1024
          %385 = vsyncadd %s379, %s384
          %s386 = smul.addr %s33, 8
          %s387 = smul.addr %s386, 128
          %s388 = scalar_lea.hbm %s2, %s387
          %s389 = sshll.u32 %s382, 4
          %s390 = int_to_ptr.vmem [resolvable:$true] %s389
          %395 = dma.hbm_to_vmem [thread:$0]  %s388, 1024, %s390, %s379, 128, 128, 8
        $region40: #{neural_resnet34_bottleneck_forward.3} parent=27 // pred_fallthru
          _
      $region28: #{neural_resnet34_bottleneck_forward.3} parent=5 // pred_fallthru
        _
      %p396 = scmp.le.s32.totalorder 1, %s33
      %p397 = scmp.lt.s32.totalorder %s33, 3
      %p398 = pnand %p396, %p397
      %p399 = pneg %p398
      // Predicated region
      $region41: #{neural_resnet34_bottleneck_forward.3} parent=5 // pred_check
        _
      $region42: #{neural_resnet34_bottleneck_forward.3} parent=5 // pred_check_branch
        %401 = sbr.rel (%p398) target = $region44
      $region43: #{neural_resnet34_bottleneck_forward.3} parent=5 // pred_region
        %s402 = ssub.s32 %s33, 1
        %s403 = sand.u32 %s46, 1
        %s404 = scalar_lea.sflag [#allocation3], %s403
        %s405 = sand.u32 %s46, 1
        %s406 = smul.addr %s405, 288
        %s407 = scalar_lea.vmem [#allocation2], %s406
        // Predicated region
        $region45: #{neural_resnet34_bottleneck_forward.3} parent=43 // pred_check
          %p408 = pneg %p59
        $region46: #{neural_resnet34_bottleneck_forward.3} parent=43 // pred_check_branch
          %410 = sbr.rel (%p408) target = $region48
        $region47: #{neural_resnet34_bottleneck_forward.3} parent=43 // pred_region
          %411 = dma.done %s404, 4608
        $region48: #{neural_resnet34_bottleneck_forward.3} parent=43 // pred_fallthru
          _
        %s412 = sand.u32 %s38, 1
        %s413 = scalar_lea.sflag [#allocation6], %s412
        %s414 = sand.u32 %s72, 1
        %s415 = smul.addr %s414, 64
        %s416 = scalar_lea.vmem [#allocation5], %s415
        // Predicated region
        $region49: #{neural_resnet34_bottleneck_forward.3} parent=43 // pred_check
          %p417 = pneg %p85
        $region50: #{neural_resnet34_bottleneck_forward.3} parent=43 // pred_check_branch
          %419 = sbr.rel (%p417) target = $region52
        $region51: #{neural_resnet34_bottleneck_forward.3} parent=43 // pred_region
          %420 = dma.done %s413, 1024
        $region52: #{neural_resnet34_bottleneck_forward.3} parent=43 // pred_fallthru
          _
        %s421 = sand.u32 %s38, 1
        %s422 = scalar_lea.sflag [#allocation6], %s421
        %s423 = sand.u32 %s98, 1
        %s424 = smul.addr %s423, 64
        %s425 = scalar_lea.vmem [#allocation7], %s424
        // Predicated region
        $region53: #{neural_resnet34_bottleneck_forward.3} parent=43 // pred_check
          %p426 = pneg %p111
        $region54: #{neural_resnet34_bottleneck_forward.3} parent=43 // pred_check_branch
          %428 = sbr.rel (%p426) target = $region56
        $region55: #{neural_resnet34_bottleneck_forward.3} parent=43 // pred_region
          %429 = dma.done %s422, 1024
        $region56: #{neural_resnet34_bottleneck_forward.3} parent=43 // pred_fallthru
          _
        // Predicated region
        $region57: #{neural_resnet34_bottleneck_forward.3} parent=43 // pred_check
          %p430 = pneg %p132
        $region58: #{neural_resnet34_bottleneck_forward.3} parent=43 // pred_check_branch
          %432 = sbr.rel (%p430) target = $region60
        $region59: #{neural_resnet34_bottleneck_forward.3} parent=43 // pred_region
          %433 = dma.done [#allocation9], 288
        $region60: #{neural_resnet34_bottleneck_forward.3} parent=43 // pred_fallthru
          _
        // Predicated region
        $region61: #{neural_resnet34_bottleneck_forward.3} parent=43 // pred_check
          %p434 = pneg %p153
        $region62: #{neural_resnet34_bottleneck_forward.3} parent=43 // pred_check_branch
          %436 = sbr.rel (%p434) target = $region64
        $region63: #{neural_resnet34_bottleneck_forward.3} parent=43 // pred_region
          %437 = dma.done [#allocation9], 32
        $region64: #{neural_resnet34_bottleneck_forward.3} parent=43 // pred_fallthru
          _
        // Predicated region
        $region65: #{neural_resnet34_bottleneck_forward.3} parent=43 // pred_check
          %p438 = pneg %p174
        $region66: #{neural_resnet34_bottleneck_forward.3} parent=43 // pred_check_branch
          %440 = sbr.rel (%p438) target = $region68
        $region67: #{neural_resnet34_bottleneck_forward.3} parent=43 // pred_region
          %441 = dma.done [#allocation12], 64
        $region68: #{neural_resnet34_bottleneck_forward.3} parent=43 // pred_fallthru
          _
        %s442 = sand.u32 %s46, 1
        %s443 = scalar_lea.sflag [#allocation3], %s442
        %s444 = sand.u32 %s46, 1
        %s445 = smul.addr %s444, 288
        %s446 = scalar_lea.vmem [#allocation2], %s445
        %p447 = pneg %p59
        %p448 = pneg %p56
        %s449 = sand.u32 %s38, 1
        %s450 = scalar_lea.sflag [#allocation6], %s449
        %s451 = sand.u32 %s72, 1
        %s452 = smul.addr %s451, 64
        %s453 = scalar_lea.vmem [#allocation5], %s452
        %p454 = pneg %p85
        %p455 = pneg %p82
        %s456 = sand.u32 %s38, 1
        %s457 = scalar_lea.sflag [#allocation6], %s456
        %s458 = sand.u32 %s98, 1
        %s459 = smul.addr %s458, 64
        %s460 = scalar_lea.vmem [#allocation7], %s459
        %p461 = pneg %p111
        %p462 = pneg %p108
        %p463 = pneg %p132
        %p464 = pneg %p129
        %p465 = pneg %p153
        %p466 = pneg %p150
        %p467 = pneg %p174
        %p468 = pneg %p171
        %p469 = pneg %p200
        %p470 = pneg %p197
        %s471 = sand.u32 %s187, 1
        %s472 = scalar_lea.sflag [#allocation4], %s471
        %s473 = sand.u32 %s187, 1
        %s474 = smul.addr %s473, 64
        %s475 = scalar_lea.vmem [#allocation13], %s474
        %p476 = pneg %p226
        %p477 = pneg %p223
        %s478 = sand.u32 %s38, 1
        %s479 = scalar_lea.sflag [#allocation15], %s478
        %s480 = sand.u32 %s213, 1
        %s481 = smul.addr %s480, 2
        %s482 = scalar_lea.vmem [#allocation14], %s481
        %p483 = pneg %p252
        %p484 = pneg %p249
        %s485 = sand.u32 %s38, 1
        %s486 = scalar_lea.sflag [#allocation15], %s485
        %s487 = sand.u32 %s239, 1
        %s488 = smul.addr %s487, 2
        %s489 = scalar_lea.vmem [#allocation16], %s488
        %p490 = pneg %p278
        %p491 = pneg %p275
        %s492 = sand.u32 %s265, 1
        %s493 = scalar_lea.sflag [#allocation18], %s492
        %s494 = sand.u32 %s265, 1
        %s495 = smul.addr %s494, 2
        %s496 = scalar_lea.vmem [#allocation17], %s495
        %s497 = smul.u32 4, %s38
        %v499 = vld [vmem:[%s407] sm:$0xf]
        %v500 = vld [vmem:[%s407 + $0x8] sm:$0xf]
        %v501 = vld [vmem:[%s407 + $0x10] sm:$0xf]
        %v502 = vld [vmem:[%s407 + $0x18] sm:$0xf]
        %v503 = vld [vmem:[%s407 + $0x20] sm:$0xf]
        %v504 = vld [vmem:[%s407 + $0x28] sm:$0xf]
        %v505 = vld [vmem:[%s407 + $0x30] sm:$0xf]
        %v506 = vld [vmem:[%s407 + $0x38] sm:$0xf]
        %v507 = vld [vmem:[#allocation8] sm:$0x3]
        %s508 = scalar_lea.vmem %s407, 72 [#allocation2]
        %v509 = vld [vmem:[%s508] sm:$0xf]
        %v510 = vld [vmem:[%s508 + $0x8] sm:$0xf]
        %v511 = vld [vmem:[%s508 + $0x10] sm:$0xf]
        %v512 = vld [vmem:[%s508 + $0x18] sm:$0xf]
        %v513 = vld [vmem:[%s508 + $0x20] sm:$0xf]
        %v514 = vld [vmem:[%s508 + $0x28] sm:$0xf]
        %v515 = vld [vmem:[%s508 + $0x30] sm:$0xf]
        %v516 = vld [vmem:[%s508 + $0x38] sm:$0xf]
        %s517 = scalar_lea.vmem [#allocation8], 2
        %v518 = vld [vmem:[%s517] sm:$0x3]
        %v527 = vunpack.c.l.b16 %v509
        %v528 = vunpack.c.l.b16 %v510
        %v529 = vunpack.c.l.b16 %v511
        %v530 = vunpack.c.l.b16 %v512
        %v531 = vunpack.c.l.b16 %v513
        %v532 = vunpack.c.l.b16 %v514
        %v533 = vunpack.c.l.b16 %v515
        %v534 = vunpack.c.l.b16 %v516
        %v535 = vpack.c.b16 %v528, %v527
        %v536 = vpack.c.b16 %v530, %v529
        %v537 = vpack.c.b16 %v532, %v531
        %v538 = vpack.c.b16 %v534, %v533
        %vm539 = vcmask 31744
        %v541 = vsel %vm539, %v535, 0
        %v544 = vsel %vm539, %v536, 0
        %v547 = vsel %vm539, %v537, 0
        %v550 = vsel %vm539, %v538, 0
        %vm552 = vcmask 1041408
        %v554 = vsel %vm552, %v518, 0
        %556 = vmatprep.subr.bf16.mxu0 0
        %557 = vmatpush1.bf16.msra.mxu0 %v554
        %558 = vmatprep.subr.bf16.mxu0 0
        %559 = vmatpush1.bf16.msra.mxu0 0
        %560 = vmatprep.subr.bf16.mxu0 0
        %561 = vmatpush1.bf16.msra.mxu0 0
        %562 = vmatprep.subr.bf16.mxu0 0
        %563 = vmatpush1.bf16.msra.mxu0 0
        %564 = vmatprep.subr.bf16.mxu0 0
        %565 = vmatpush1.bf16.msra.mxu0 0
        %566 = vmatprep.subr.bf16.mxu0 0
        %567 = vmatpush1.bf16.msra.mxu0 0
        %568 = vmatprep.subr.bf16.mxu0 0
        %569 = vmatpush1.bf16.msra.mxu0 0
        %570 = vmatprep.subr.bf16.mxu0 0
        %571 = vmatpush1.bf16.msra.mxu0 0
        %572 = vmatprep.subr.bf16.mxu0 0
        %573 = vmatpush1.bf16.msra.mxu0 0
        %574 = vmatprep.subr.bf16.mxu0 0
        %575 = vmatpush1.bf16.msra.mxu0 0
        %576 = vmatprep.subr.bf16.mxu0 0
        %577 = vmatpush1.bf16.msra.mxu0 0
        %578 = vmatprep.subr.bf16.mxu0 0
        %579 = vmatpush1.bf16.msra.mxu0 0
        %580 = vmatprep.subr.bf16.mxu0 0
        %581 = vmatpush1.bf16.msra.mxu0 0
        %582 = vmatprep.subr.bf16.mxu0 0
        %583 = vmatpush1.bf16.msra.mxu0 0
        %584 = vmatprep.subr.bf16.mxu0 0
        %585 = vmatpush1.bf16.msra.mxu0 0
        %586 = vmatprep.subr.bf16.mxu0 0
        %587 = vmatpush1.bf16.msra.mxu0 0
        %588 = vmatprep.mubr.bf16.mxu0 0
        %589 = vmatmul.mubr.bf16.gmra.mrb[0].mxu0 %v541
        %v590 = vpop.f32.mrb[0].mxu0
        %v591 = vadd.f32 0.0, %v590
        %v592 = vpop.f32.mrb[0].mxu0
        %v593 = vpop.f32.mrb[0].mxu0
        %v594 = vadd.f32 0.0, %v593
        %v595 = vpop.f32.mrb[0].mxu0
        %596 = vmatprep.mubr.bf16.mxu0 0
        %597 = vmatmul.mubr.bf16.gmra.mrb[0].mxu0 %v544
        %v598 = vpop.f32.mrb[0].mxu0
        %v599 = vadd.f32 0.0, %v598
        %v600 = vpop.f32.mrb[0].mxu0
        %v601 = vpop.f32.mrb[0].mxu0
        %v602 = vadd.f32 0.0, %v601
        %v603 = vpop.f32.mrb[0].mxu0
        %604 = vmatprep.mubr.bf16.mxu0 0
        %605 = vmatmul.mubr.bf16.gmra.mrb[0].mxu0 %v547
        %v606 = vpop.f32.mrb[0].mxu0
        %v607 = vadd.f32 0.0, %v606
        %v608 = vpop.f32.mrb[0].mxu0
        %v609 = vpop.f32.mrb[0].mxu0
        %v610 = vadd.f32 0.0, %v609
        %v611 = vpop.f32.mrb[0].mxu0
        %612 = vmatprep.mubr.bf16.mxu0 0
        %613 = vmatmul.mubr.bf16.gmra.mrb[0].mxu0 %v550
        %v614 = vpop.f32.mrb[0].mxu0
        %v615 = vadd.f32 0.0, %v614
        %v616 = vpop.f32.mrb[0].mxu0
        %v617 = vpop.f32.mrb[0].mxu0
        %v618 = vadd.f32 0.0, %v617
        %v619 = vpop.f32.mrb[0].mxu0
        %620 = vdwg.mxu0
        %v629 = vunpack.c.l.b16 %v499
        %v630 = vunpack.c.l.b16 %v500
        %v631 = vunpack.c.l.b16 %v501
        %v632 = vunpack.c.l.b16 %v502
        %v633 = vunpack.c.l.b16 %v503
        %v634 = vunpack.c.l.b16 %v504
        %v635 = vunpack.c.l.b16 %v505
        %v636 = vunpack.c.l.b16 %v506
        %v637 = vpack.c.b16 %v630, %v629
        %v638 = vpack.c.b16 %v632, %v631
        %v639 = vpack.c.b16 %v634, %v633
        %v640 = vpack.c.b16 %v636, %v635
        %v642 = vsel %vm539, %v637, 0
        %v645 = vsel %vm539, %v638, 0
        %v648 = vsel %vm539, %v639, 0
        %v651 = vsel %vm539, %v640, 0
        %v654 = vsel %vm552, %v507, 0
        %656 = vmatprep.subr.bf16.mxu0 0
        %657 = vmatpush1.bf16.msra.mxu0 %v654
        %658 = vmatprep.subr.bf16.mxu0 0
        %659 = vmatpush1.bf16.msra.mxu0 0
        %660 = vmatprep.subr.bf16.mxu0 0
        %661 = vmatpush1.bf16.msra.mxu0 0
        %662 = vmatprep.subr.bf16.mxu0 0
        %663 = vmatpush1.bf16.msra.mxu0 0
        %664 = vmatprep.subr.bf16.mxu0 0
        %665 = vmatpush1.bf16.msra.mxu0 0
        %666 = vmatprep.subr.bf16.mxu0 0
        %667 = vmatpush1.bf16.msra.mxu0 0
        %668 = vmatprep.subr.bf16.mxu0 0
        %669 = vmatpush1.bf16.msra.mxu0 0
        %670 = vmatprep.subr.bf16.mxu0 0
        %671 = vmatpush1.bf16.msra.mxu0 0
        %672 = vmatprep.subr.bf16.mxu0 0
        %673 = vmatpush1.bf16.msra.mxu0 0
        %674 = vmatprep.subr.bf16.mxu0 0
        %675 = vmatpush1.bf16.msra.mxu0 0
        %676 = vmatprep.subr.bf16.mxu0 0
        %677 = vmatpush1.bf16.msra.mxu0 0
        %678 = vmatprep.subr.bf16.mxu0 0
        %679 = vmatpush1.bf16.msra.mxu0 0
        %680 = vmatprep.subr.bf16.mxu0 0
        %681 = vmatpush1.bf16.msra.mxu0 0
        %682 = vmatprep.subr.bf16.mxu0 0
        %683 = vmatpush1.bf16.msra.mxu0 0
        %684 = vmatprep.subr.bf16.mxu0 0
        %685 = vmatpush1.bf16.msra.mxu0 0
        %686 = vmatprep.subr.bf16.mxu0 0
        %687 = vmatpush1.bf16.msra.mxu0 0
        %688 = vmatprep.mubr.bf16.mxu0 0
        %689 = vmatmul.mubr.bf16.gmra.mrb[0].mxu0 %v642
        %v690 = vpop.f32.mrb[0].mxu0
        %v691 = vadd.f32 %v591, %v690
        %v692 = vpop.f32.mrb[0].mxu0
        %v693 = vpop.f32.mrb[0].mxu0
        %v694 = vadd.f32 %v594, %v693
        %v695 = vpop.f32.mrb[0].mxu0
        %696 = vmatprep.mubr.bf16.mxu0 0
        %697 = vmatmul.mubr.bf16.gmra.mrb[0].mxu0 %v645
        %v698 = vpop.f32.mrb[0].mxu0
        %v699 = vadd.f32 %v599, %v698
        %v700 = vpop.f32.mrb[0].mxu0
        %v701 = vpop.f32.mrb[0].mxu0
        %v702 = vadd.f32 %v602, %v701
        %v703 = vpop.f32.mrb[0].mxu0
        %704 = vmatprep.mubr.bf16.mxu0 0
        %705 = vmatmul.mubr.bf16.gmra.mrb[0].mxu0 %v648
        %v706 = vpop.f32.mrb[0].mxu0
        %v707 = vadd.f32 %v607, %v706
        %v708 = vpop.f32.mrb[0].mxu0
        %v709 = vpop.f32.mrb[0].mxu0
        %v710 = vadd.f32 %v610, %v709
        %v711 = vpop.f32.mrb[0].mxu0
        %712 = vmatprep.mubr.bf16.mxu0 0
        %713 = vmatmul.mubr.bf16.gmra.mrb[0].mxu0 %v651
        %v714 = vpop.f32.mrb[0].mxu0
        %v715 = vadd.f32 %v615, %v714
        %v716 = vpop.f32.mrb[0].mxu0
        %v717 = vpop.f32.mrb[0].mxu0
        %v718 = vadd.f32 %v618, %v717
        %v719 = vpop.f32.mrb[0].mxu0
        %720 = vdwg.mxu0
        %v721 = vld [vmem:[%s407] sm:$0xf]
        %v722 = vld [vmem:[%s407 + $0x4] sm:$0x1]
        %v723 = vld [vmem:[%s407 + $0x8] sm:$0xf]
        %v724 = vld [vmem:[%s407 + $0xc] sm:$0x1]
        %v725 = vld [vmem:[%s407 + $0x10] sm:$0xf]
        %v726 = vld [vmem:[%s407 + $0x14] sm:$0x1]
        %v727 = vld [vmem:[%s407 + $0x18] sm:$0xf]
        %v728 = vld [vmem:[%s407 + $0x1c] sm:$0x1]
        %v729 = vld [vmem:[%s407 + $0x20] sm:$0xf]
        %v730 = vld [vmem:[%s407 + $0x24] sm:$0x1]
        %v731 = vld [vmem:[%s407 + $0x28] sm:$0xf]
        %v732 = vld [vmem:[%s407 + $0x2c] sm:$0x1]
        %v733 = vld [vmem:[%s407 + $0x30] sm:$0xf]
        %v734 = vld [vmem:[%s407 + $0x34] sm:$0x1]
        %v735 = vld [vmem:[%s407 + $0x38] sm:$0xf]
        %v736 = vld [vmem:[%s407 + $0x3c] sm:$0x1]
        %vm737 = vsmask.f32 3328
        %vm738 = vsmask.f32 7440
        %vm739 = vmor %vm737, %vm738
        %v741 = vshrl.u32 %v721, 16
        %v743 = vrot.slane %v741, 4
        %v744 = vshll.u32 %v721, 16
        %v746 = vrot.slane %v744, 5
        %v747 = vor.u32 %v743, %v746
        %v748 = vrot.slane %v747, 4
        %v750 = vshll.u32 %v722, 16
        %v752 = vrot.slane %v750, 5
        %v753 = vsel %vm739, %v748, %v752
        %v755 = vshrl.u32 %v723, 16
        %v757 = vrot.slane %v755, 4
        %v758 = vshll.u32 %v723, 16
        %v760 = vrot.slane %v758, 5
        %v761 = vor.u32 %v757, %v760
        %v762 = vrot.slane %v761, 4
        %v764 = vshll.u32 %v724, 16
        %v766 = vrot.slane %v764, 5
        %v767 = vsel %vm739, %v762, %v766
        %v769 = vshrl.u32 %v725, 16
        %v771 = vrot.slane %v769, 4
        %v772 = vshll.u32 %v725, 16
        %v774 = vrot.slane %v772, 5
        %v775 = vor.u32 %v771, %v774
        %v776 = vrot.slane %v775, 4
        %v778 = vshll.u32 %v726, 16
        %v780 = vrot.slane %v778, 5
        %v781 = vsel %vm739, %v776, %v780
        %v783 = vshrl.u32 %v727, 16
        %v785 = vrot.slane %v783, 4
        %v786 = vshll.u32 %v727, 16
        %v788 = vrot.slane %v786, 5
        %v789 = vor.u32 %v785, %v788
        %v790 = vrot.slane %v789, 4
        %v792 = vshll.u32 %v728, 16
        %v794 = vrot.slane %v792, 5
        %v795 = vsel %vm739, %v790, %v794
        %v797 = vshrl.u32 %v729, 16
        %v799 = vrot.slane %v797, 4
        %v800 = vshll.u32 %v729, 16
        %v802 = vrot.slane %v800, 5
        %v803 = vor.u32 %v799, %v802
        %v804 = vrot.slane %v803, 4
        %v806 = vshll.u32 %v730, 16
        %v808 = vrot.slane %v806, 5
        %v809 = vsel %vm739, %v804, %v808
        %v811 = vshrl.u32 %v731, 16
        %v813 = vrot.slane %v811, 4
        %v814 = vshll.u32 %v731, 16
        %v816 = vrot.slane %v814, 5
        %v817 = vor.u32 %v813, %v816
        %v818 = vrot.slane %v817, 4
        %v820 = vshll.u32 %v732, 16
        %v822 = vrot.slane %v820, 5
        %v823 = vsel %vm739, %v818, %v822
        %v825 = vshrl.u32 %v733, 16
        %v827 = vrot.slane %v825, 4
        %v828 = vshll.u32 %v733, 16
        %v830 = vrot.slane %v828, 5
        %v831 = vor.u32 %v827, %v830
        %v832 = vrot.slane %v831, 4
        %v834 = vshll.u32 %v734, 16
        %v836 = vrot.slane %v834, 5
        %v837 = vsel %vm739, %v832, %v836
        %v839 = vshrl.u32 %v735, 16
        %v841 = vrot.slane %v839, 4
        %v842 = vshll.u32 %v735, 16
        %v844 = vrot.slane %v842, 5
        %v845 = vor.u32 %v841, %v844
        %v846 = vrot.slane %v845, 4
        %v848 = vshll.u32 %v736, 16
        %v850 = vrot.slane %v848, 5
        %v851 = vsel %vm739, %v846, %v850
        %s852 = scalar_lea.vmem [#allocation8], 4
        %v853 = vld [vmem:[%s852] sm:$0x3]
        %v854 = vunpack.c.l.b16 %v753
        %v855 = vunpack.c.l.b16 %v767
        %v856 = vunpack.c.l.b16 %v781
        %v857 = vunpack.c.l.b16 %v795
        %v858 = vunpack.c.l.b16 %v809
        %v859 = vunpack.c.l.b16 %v823
        %v860 = vunpack.c.l.b16 %v837
        %v861 = vunpack.c.l.b16 %v851
        %v862 = vpack.c.b16 %v855, %v854
        %v863 = vpack.c.b16 %v857, %v856
        %v864 = vpack.c.b16 %v859, %v858
        %v865 = vpack.c.b16 %v861, %v860
        %v867 = vsel %vm539, %v862, 0
        %v870 = vsel %vm539, %v863, 0
        %v873 = vsel %vm539, %v864, 0
        %v876 = vsel %vm539, %v865, 0
        %v879 = vsel %vm552, %v853, 0
        %881 = vmatprep.subr.bf16.mxu0 0
        %882 = vmatpush1.bf16.msra.mxu0 %v879
        %883 = vmatprep.subr.bf16.mxu0 0
        %884 = vmatpush1.bf16.msra.mxu0 0
        %885 = vmatprep.subr.bf16.mxu0 0
        %886 = vmatpush1.bf16.msra.mxu0 0
        %887 = vmatprep.subr.bf16.mxu0 0
        %888 = vmatpush1.bf16.msra.mxu0 0
        %889 = vmatprep.subr.bf16.mxu0 0
        %890 = vmatpush1.bf16.msra.mxu0 0
        %891 = vmatprep.subr.bf16.mxu0 0
        %892 = vmatpush1.bf16.msra.mxu0 0
        %893 = vmatprep.subr.bf16.mxu0 0
        %894 = vmatpush1.bf16.msra.mxu0 0
        %895 = vmatprep.subr.bf16.mxu0 0
        %896 = vmatpush1.bf16.msra.mxu0 0
        %897 = vmatprep.subr.bf16.mxu0 0
        %898 = vmatpush1.bf16.msra.mxu0 0
        %899 = vmatprep.subr.bf16.mxu0 0
        %900 = vmatpush1.bf16.msra.mxu0 0
        %901 = vmatprep.subr.bf16.mxu0 0
        %902 = vmatpush1.bf16.msra.mxu0 0
        %903 = vmatprep.subr.bf16.mxu0 0
        %904 = vmatpush1.bf16.msra.mxu0 0
        %905 = vmatprep.subr.bf16.mxu0 0
        %906 = vmatpush1.bf16.msra.mxu0 0
        %907 = vmatprep.subr.bf16.mxu0 0
        %908 = vmatpush1.bf16.msra.mxu0 0
        %909 = vmatprep.subr.bf16.mxu0 0
        %910 = vmatpush1.bf16.msra.mxu0 0
        %911 = vmatprep.subr.bf16.mxu0 0
        %912 = vmatpush1.bf16.msra.mxu0 0
        %913 = vmatprep.mubr.bf16.mxu0 0
        %914 = vmatmul.mubr.bf16.gmra.mrb[0].mxu0 %v867
        %v915 = vpop.f32.mrb[0].mxu0
        %v916 = vadd.f32 0.0, %v915
        %v917 = vpop.f32.mrb[0].mxu0
        %v918 = vpop.f32.mrb[0].mxu0
        %v919 = vadd.f32 0.0, %v918
        %v920 = vpop.f32.mrb[0].mxu0
        %921 = vmatprep.mubr.bf16.mxu0 0
        %922 = vmatmul.mubr.bf16.gmra.mrb[0].mxu0 %v870
        %v923 = vpop.f32.mrb[0].mxu0
        %v924 = vadd.f32 0.0, %v923
        %v925 = vpop.f32.mrb[0].mxu0
        %v926 = vpop.f32.mrb[0].mxu0
        %v927 = vadd.f32 0.0, %v926
        %v928 = vpop.f32.mrb[0].mxu0
        %929 = vmatprep.mubr.bf16.mxu0 0
        %930 = vmatmul.mubr.bf16.gmra.mrb[0].mxu0 %v873
        %v931 = vpop.f32.mrb[0].mxu0
        %v932 = vadd.f32 0.0, %v931
        %v933 = vpop.f32.mrb[0].mxu0
        %v934 = vpop.f32.mrb[0].mxu0
        %v935 = vadd.f32 0.0, %v934
        %v936 = vpop.f32.mrb[0].mxu0
        %937 = vmatprep.mubr.bf16.mxu0 0
        %938 = vmatmul.mubr.bf16.gmra.mrb[0].mxu0 %v876
        %v939 = vpop.f32.mrb[0].mxu0
        %v940 = vadd.f32 0.0, %v939
        %v941 = vpop.f32.mrb[0].mxu0
        %v942 = vpop.f32.mrb[0].mxu0
        %v943 = vadd.f32 0.0, %v942
        %v944 = vpop.f32.mrb[0].mxu0
        %945 = vdwg.mxu0
        %v946 = vadd.f32 %v691, %v916
        %v947 = vadd.f32 %v694, %v919
        %v948 = vadd.f32 %v699, %v924
        %v949 = vadd.f32 %v702, %v927
        %v950 = vadd.f32 %v707, %v932
        %v951 = vadd.f32 %v710, %v935
        %v952 = vadd.f32 %v715, %v940
        %v953 = vadd.f32 %v718, %v943
        %s954 = scalar_lea.vmem %s407, 144 [#allocation2]
        %v955 = vld [vmem:[%s954] sm:$0xf]
        %v956 = vld [vmem:[%s954 + $0x8] sm:$0xf]
        %v957 = vld [vmem:[%s954 + $0x10] sm:$0xf]
        %v958 = vld [vmem:[%s954 + $0x18] sm:$0xf]
        %v959 = vld [vmem:[%s954 + $0x20] sm:$0xf]
        %v960 = vld [vmem:[%s954 + $0x28] sm:$0xf]
        %v961 = vld [vmem:[%s954 + $0x30] sm:$0xf]
        %v962 = vld [vmem:[%s954 + $0x38] sm:$0xf]
        %s963 = scalar_lea.vmem [#allocation8], 6
        %v964 = vld [vmem:[%s963] sm:$0x3]
        %v973 = vunpack.c.l.b16 %v955
        %v974 = vunpack.c.l.b16 %v956
        %v975 = vunpack.c.l.b16 %v957
        %v976 = vunpack.c.l.b16 %v958
        %v977 = vunpack.c.l.b16 %v959
        %v978 = vunpack.c.l.b16 %v960
        %v979 = vunpack.c.l.b16 %v961
        %v980 = vunpack.c.l.b16 %v962
        %v981 = vpack.c.b16 %v974, %v973
        %v982 = vpack.c.b16 %v976, %v975
        %v983 = vpack.c.b16 %v978, %v977
        %v984 = vpack.c.b16 %v980, %v979
        %v986 = vsel %vm539, %v981, 0
        %v989 = vsel %vm539, %v982, 0
        %v992 = vsel %vm539, %v983, 0
        %v995 = vsel %vm539, %v984, 0
        %v998 = vsel %vm552, %v964, 0
        %1000 = vmatprep.subr.bf16.mxu0 0
        %1001 = vmatpush1.bf16.msra.mxu0 %v998
        %1002 = vmatprep.subr.bf16.mxu0 0
        %1003 = vmatpush1.bf16.msra.mxu0 0
        %1004 = vmatprep.subr.bf16.mxu0 0
        %1005 = vmatpush1.bf16.msra.mxu0 0
        %1006 = vmatprep.subr.bf16.mxu0 0
        %1007 = vmatpush1.bf16.msra.mxu0 0
        %1008 = vmatprep.subr.bf16.mxu0 0
        %1009 = vmatpush1.bf16.msra.mxu0 0
        %1010 = vmatprep.subr.bf16.mxu0 0
        %1011 = vmatpush1.bf16.msra.mxu0 0
        %1012 = vmatprep.subr.bf16.mxu0 0
        %1013 = vmatpush1.bf16.msra.mxu0 0
        %1014 = vmatprep.subr.bf16.mxu0 0
        %1015 = vmatpush1.bf16.msra.mxu0 0
        %1016 = vmatprep.subr.bf16.mxu0 0
        %1017 = vmatpush1.bf16.msra.mxu0 0
        %1018 = vmatprep.subr.bf16.mxu0 0
        %1019 = vmatpush1.bf16.msra.mxu0 0
        %1020 = vmatprep.subr.bf16.mxu0 0
        %1021 = vmatpush1.bf16.msra.mxu0 0
        %1022 = vmatprep.subr.bf16.mxu0 0
        %1023 = vmatpush1.bf16.msra.mxu0 0
        %1024 = vmatprep.subr.bf16.mxu0 0
        %1025 = vmatpush1.bf16.msra.mxu0 0
        %1026 = vmatprep.subr.bf16.mxu0 0
        %1027 = vmatpush1.bf16.msra.mxu0 0
        %1028 = vmatprep.subr.bf16.mxu0 0
        %1029 = vmatpush1.bf16.msra.mxu0 0
        %1030 = vmatprep.subr.bf16.mxu0 0
        %1031 = vmatpush1.bf16.msra.mxu0 0
        %1032 = vmatprep.mubr.bf16.mxu0 0
        %1033 = vmatmul.mubr.bf16.gmra.mrb[0].mxu0 %v986
        %v1034 = vpop.f32.mrb[0].mxu0
        %v1035 = vadd.f32 0.0, %v1034
        %v1036 = vpop.f32.mrb[0].mxu0
        %v1037 = vpop.f32.mrb[0].mxu0
        %v1038 = vadd.f32 0.0, %v1037
        %v1039 = vpop.f32.mrb[0].mxu0
        %1040 = vmatprep.mubr.bf16.mxu0 0
        %1041 = vmatmul.mubr.bf16.gmra.mrb[0].mxu0 %v989
        %v1042 = vpop.f32.mrb[0].mxu0
        %v1043 = vadd.f32 0.0, %v1042
        %v1044 = vpop.f32.mrb[0].mxu0
        %v1045 = vpop.f32.mrb[0].mxu0
        %v1046 = vadd.f32 0.0, %v1045
        %v1047 = vpop.f32.mrb[0].mxu0
        %1048 = vmatprep.mubr.bf16.mxu0 0
        %1049 = vmatmul.mubr.bf16.gmra.mrb[0].mxu0 %v992
        %v1050 = vpop.f32.mrb[0].mxu0
        %v1051 = vadd.f32 0.0, %v1050
        %v1052 = vpop.f32.mrb[0].mxu0
        %v1053 = vpop.f32.mrb[0].mxu0
        %v1054 = vadd.f32 0.0, %v1053
        %v1055 = vpop.f32.mrb[0].mxu0
        %1056 = vmatprep.mubr.bf16.mxu0 0
        %1057 = vmatmul.mubr.bf16.gmra.mrb[0].mxu0 %v995
        %v1058 = vpop.f32.mrb[0].mxu0
        %v1059 = vadd.f32 0.0, %v1058
        %v1060 = vpop.f32.mrb[0].mxu0
        %v1061 = vpop.f32.mrb[0].mxu0
        %v1062 = vadd.f32 0.0, %v1061
        %v1063 = vpop.f32.mrb[0].mxu0
        %1064 = vdwg.mxu0
        %v1065 = vadd.f32 %v946, %v1035
        %v1066 = vadd.f32 %v947, %v1038
        %v1067 = vadd.f32 %v948, %v1043
        %v1068 = vadd.f32 %v949, %v1046
        %v1069 = vadd.f32 %v950, %v1051
        %v1070 = vadd.f32 %v951, %v1054
        %v1071 = vadd.f32 %v952, %v1059
        %v1072 = vadd.f32 %v953, %v1062
        %s1073 = scalar_lea.vmem %s407, 216 [#allocation2]
        %v1074 = vld [vmem:[%s1073] sm:$0xf]
        %v1075 = vld [vmem:[%s1073 + $0x8] sm:$0xf]
        %v1076 = vld [vmem:[%s1073 + $0x10] sm:$0xf]
        %v1077 = vld [vmem:[%s1073 + $0x18] sm:$0xf]
        %v1078 = vld [vmem:[%s1073 + $0x20] sm:$0xf]
        %v1079 = vld [vmem:[%s1073 + $0x28] sm:$0xf]
        %v1080 = vld [vmem:[%s1073 + $0x30] sm:$0xf]
        %v1081 = vld [vmem:[%s1073 + $0x38] sm:$0xf]
        %s1082 = scalar_lea.vmem [#allocation8], 8
        %v1083 = vld [vmem:[%s1082] sm:$0x3]
        %v1092 = vunpack.c.l.b16 %v1074
        %v1093 = vunpack.c.l.b16 %v1075
        %v1094 = vunpack.c.l.b16 %v1076
        %v1095 = vunpack.c.l.b16 %v1077
        %v1096 = vunpack.c.l.b16 %v1078
        %v1097 = vunpack.c.l.b16 %v1079
        %v1098 = vunpack.c.l.b16 %v1080
        %v1099 = vunpack.c.l.b16 %v1081
        %v1100 = vpack.c.b16 %v1093, %v1092
        %v1101 = vpack.c.b16 %v1095, %v1094
        %v1102 = vpack.c.b16 %v1097, %v1096
        %v1103 = vpack.c.b16 %v1099, %v1098
        %v1105 = vsel %vm539, %v1100, 0
        %v1108 = vsel %vm539, %v1101, 0
        %v1111 = vsel %vm539, %v1102, 0
        %v1114 = vsel %vm539, %v1103, 0
        %v1117 = vsel %vm552, %v1083, 0
        %1119 = vmatprep.subr.bf16.mxu0 0
        %1120 = vmatpush1.bf16.msra.mxu0 %v1117
        %1121 = vmatprep.subr.bf16.mxu0 0
        %1122 = vmatpush1.bf16.msra.mxu0 0
        %1123 = vmatprep.subr.bf16.mxu0 0
        %1124 = vmatpush1.bf16.msra.mxu0 0
        %1125 = vmatprep.subr.bf16.mxu0 0
        %1126 = vmatpush1.bf16.msra.mxu0 0
        %1127 = vmatprep.subr.bf16.mxu0 0
        %1128 = vmatpush1.bf16.msra.mxu0 0
        %1129 = vmatprep.subr.bf16.mxu0 0
        %1130 = vmatpush1.bf16.msra.mxu0 0
        %1131 = vmatprep.subr.bf16.mxu0 0
        %1132 = vmatpush1.bf16.msra.mxu0 0
        %1133 = vmatprep.subr.bf16.mxu0 0
        %1134 = vmatpush1.bf16.msra.mxu0 0
        %1135 = vmatprep.subr.bf16.mxu0 0
        %1136 = vmatpush1.bf16.msra.mxu0 0
        %1137 = vmatprep.subr.bf16.mxu0 0
        %1138 = vmatpush1.bf16.msra.mxu0 0
        %1139 = vmatprep.subr.bf16.mxu0 0
        %1140 = vmatpush1.bf16.msra.mxu0 0
        %1141 = vmatprep.subr.bf16.mxu0 0
        %1142 = vmatpush1.bf16.msra.mxu0 0
        %1143 = vmatprep.subr.bf16.mxu0 0
        %1144 = vmatpush1.bf16.msra.mxu0 0
        %1145 = vmatprep.subr.bf16.mxu0 0
        %1146 = vmatpush1.bf16.msra.mxu0 0
        %1147 = vmatprep.subr.bf16.mxu0 0
        %1148 = vmatpush1.bf16.msra.mxu0 0
        %1149 = vmatprep.subr.bf16.mxu0 0
        %1150 = vmatpush1.bf16.msra.mxu0 0
        %1151 = vmatprep.mubr.bf16.mxu0 0
        %1152 = vmatmul.mubr.bf16.gmra.mrb[0].mxu0 %v1105
        %v1153 = vpop.f32.mrb[0].mxu0
        %v1154 = vadd.f32 0.0, %v1153
        %v1155 = vpop.f32.mrb[0].mxu0
        %v1156 = vpop.f32.mrb[0].mxu0
        %v1157 = vadd.f32 0.0, %v1156
        %v1158 = vpop.f32.mrb[0].mxu0
        %1159 = vmatprep.mubr.bf16.mxu0 0
        %1160 = vmatmul.mubr.bf16.gmra.mrb[0].mxu0 %v1108
        %v1161 = vpop.f32.mrb[0].mxu0
        %v1162 = vadd.f32 0.0, %v1161
        %v1163 = vpop.f32.mrb[0].mxu0
        %v1164 = vpop.f32.mrb[0].mxu0
        %v1165 = vadd.f32 0.0, %v1164
        %v1166 = vpop.f32.mrb[0].mxu0
        %1167 = vmatprep.mubr.bf16.mxu0 0
        %1168 = vmatmul.mubr.bf16.gmra.mrb[0].mxu0 %v1111
        %v1169 = vpop.f32.mrb[0].mxu0
        %v1170 = vadd.f32 0.0, %v1169
        %v1171 = vpop.f32.mrb[0].mxu0
        %v1172 = vpop.f32.mrb[0].mxu0
        %v1173 = vadd.f32 0.0, %v1172
        %v1174 = vpop.f32.mrb[0].mxu0
        %1175 = vmatprep.mubr.bf16.mxu0 0
        %1176 = vmatmul.mubr.bf16.gmra.mrb[0].mxu0 %v1114
        %v1177 = vpop.f32.mrb[0].mxu0
        %v1178 = vadd.f32 0.0, %v1177
        %v1179 = vpop.f32.mrb[0].mxu0
        %v1180 = vpop.f32.mrb[0].mxu0
        %v1181 = vadd.f32 0.0, %v1180
        %v1182 = vpop.f32.mrb[0].mxu0
        %1183 = vdwg.mxu0
        %v1184 = vadd.f32 %v1065, %v1154
        %v1185 = vadd.f32 %v1066, %v1157
        %v1186 = vadd.f32 %v1067, %v1162
        %v1187 = vadd.f32 %v1068, %v1165
        %v1188 = vadd.f32 %v1069, %v1170
        %v1189 = vadd.f32 %v1070, %v1173
        %v1190 = vadd.f32 %v1071, %v1178
        %v1191 = vadd.f32 %v1072, %v1181
        %v1192 = vld [vmem:[%s954] sm:$0xf]
        %v1193 = vld [vmem:[%s954 + $0x4] sm:$0x1]
        %v1194 = vld [vmem:[%s954 + $0x8] sm:$0xf]
        %v1195 = vld [vmem:[%s954 + $0xc] sm:$0x1]
        %v1196 = vld [vmem:[%s954 + $0x10] sm:$0xf]
        %v1197 = vld [vmem:[%s954 + $0x14] sm:$0x1]
        %v1198 = vld [vmem:[%s954 + $0x18] sm:$0xf]
        %v1199 = vld [vmem:[%s954 + $0x1c] sm:$0x1]
        %v1200 = vld [vmem:[%s954 + $0x20] sm:$0xf]
        %v1201 = vld [vmem:[%s954 + $0x24] sm:$0x1]
        %v1202 = vld [vmem:[%s954 + $0x28] sm:$0xf]
        %v1203 = vld [vmem:[%s954 + $0x2c] sm:$0x1]
        %v1204 = vld [vmem:[%s954 + $0x30] sm:$0xf]
        %v1205 = vld [vmem:[%s954 + $0x34] sm:$0x1]
        %v1206 = vld [vmem:[%s954 + $0x38] sm:$0xf]
        %v1207 = vld [vmem:[%s954 + $0x3c] sm:$0x1]
        %v1209 = vshrl.u32 %v1192, 16
        %v1211 = vrot.slane %v1209, 4
        %v1212 = vshll.u32 %v1192, 16
        %v1214 = vrot.slane %v1212, 5
        %v1215 = vor.u32 %v1211, %v1214
        %v1216 = vrot.slane %v1215, 4
        %v1218 = vshll.u32 %v1193, 16
        %v1220 = vrot.slane %v1218, 5
        %v1221 = vsel %vm739, %v1216, %v1220
        %v1223 = vshrl.u32 %v1194, 16
        %v1225 = vrot.slane %v1223, 4
        %v1226 = vshll.u32 %v1194, 16
        %v1228 = vrot.slane %v1226, 5
        %v1229 = vor.u32 %v1225, %v1228
        %v1230 = vrot.slane %v1229, 4
        %v1232 = vshll.u32 %v1195, 16
        %v1234 = vrot.slane %v1232, 5
        %v1235 = vsel %vm739, %v1230, %v1234
        %v1237 = vshrl.u32 %v1196, 16
        %v1239 = vrot.slane %v1237, 4
        %v1240 = vshll.u32 %v1196, 16
        %v1242 = vrot.slane %v1240, 5
        %v1243 = vor.u32 %v1239, %v1242
        %v1244 = vrot.slane %v1243, 4
        %v1246 = vshll.u32 %v1197, 16
        %v1248 = vrot.slane %v1246, 5
        %v1249 = vsel %vm739, %v1244, %v1248
        %v1251 = vshrl.u32 %v1198, 16
        %v1253 = vrot.slane %v1251, 4
        %v1254 = vshll.u32 %v1198, 16
        %v1256 = vrot.slane %v1254, 5
        %v1257 = vor.u32 %v1253, %v1256
        %v1258 = vrot.slane %v1257, 4
        %v1260 = vshll.u32 %v1199, 16
        %v1262 = vrot.slane %v1260, 5
        %v1263 = vsel %vm739, %v1258, %v1262
        %v1265 = vshrl.u32 %v1200, 16
        %v1267 = vrot.slane %v1265, 4
        %v1268 = vshll.u32 %v1200, 16
        %v1270 = vrot.slane %v1268, 5
        %v1271 = vor.u32 %v1267, %v1270
        %v1272 = vrot.slane %v1271, 4
        %v1274 = vshll.u32 %v1201, 16
        %v1276 = vrot.slane %v1274, 5
        %v1277 = vsel %vm739, %v1272, %v1276
        %v1279 = vshrl.u32 %v1202, 16
        %v1281 = vrot.slane %v1279, 4
        %v1282 = vshll.u32 %v1202, 16
        %v1284 = vrot.slane %v1282, 5
        %v1285 = vor.u32 %v1281, %v1284
        %v1286 = vrot.slane %v1285, 4
        %v1288 = vshll.u32 %v1203, 16
        %v1290 = vrot.slane %v1288, 5
        %v1291 = vsel %vm739, %v1286, %v1290
        %v1293 = vshrl.u32 %v1204, 16
        %v1295 = vrot.slane %v1293, 4
        %v1296 = vshll.u32 %v1204, 16
        %v1298 = vrot.slane %v1296, 5
        %v1299 = vor.u32 %v1295, %v1298
        %v1300 = vrot.slane %v1299, 4
        %v1302 = vshll.u32 %v1205, 16
        %v1304 = vrot.slane %v1302, 5
        %v1305 = vsel %vm739, %v1300, %v1304
        %v1307 = vshrl.u32 %v1206, 16
        %v1309 = vrot.slane %v1307, 4
        %v1310 = vshll.u32 %v1206, 16
        %v1312 = vrot.slane %v1310, 5
        %v1313 = vor.u32 %v1309, %v1312
        %v1314 = vrot.slane %v1313, 4
        %v1316 = vshll.u32 %v1207, 16
        %v1318 = vrot.slane %v1316, 5
        %v1319 = vsel %vm739, %v1314, %v1318
        %s1320 = scalar_lea.vmem [#allocation8], 10
        %v1321 = vld [vmem:[%s1320] sm:$0x3]
        %v1322 = vunpack.c.l.b16 %v1221
        %v1323 = vunpack.c.l.b16 %v1235
        %v1324 = vunpack.c.l.b16 %v1249
        %v1325 = vunpack.c.l.b16 %v1263
        %v1326 = vunpack.c.l.b16 %v1277
        %v1327 = vunpack.c.l.b16 %v1291
        %v1328 = vunpack.c.l.b16 %v1305
        %v1329 = vunpack.c.l.b16 %v1319
        %v1330 = vpack.c.b16 %v1323, %v1322
        %v1331 = vpack.c.b16 %v1325, %v1324
        %v1332 = vpack.c.b16 %v1327, %v1326
        %v1333 = vpack.c.b16 %v1329, %v1328
        %v1335 = vsel %vm539, %v1330, 0
        %v1338 = vsel %vm539, %v1331, 0
        %v1341 = vsel %vm539, %v1332, 0
        %v1344 = vsel %vm539, %v1333, 0
        %v1347 = vsel %vm552, %v1321, 0
        %1349 = vmatprep.subr.bf16.mxu0 0
        %1350 = vmatpush1.bf16.msra.mxu0 %v1347
        %1351 = vmatprep.subr.bf16.mxu0 0
        %1352 = vmatpush1.bf16.msra.mxu0 0
        %1353 = vmatprep.subr.bf16.mxu0 0
        %1354 = vmatpush1.bf16.msra.mxu0 0
        %1355 = vmatprep.subr.bf16.mxu0 0
        %1356 = vmatpush1.bf16.msra.mxu0 0
        %1357 = vmatprep.subr.bf16.mxu0 0
        %1358 = vmatpush1.bf16.msra.mxu0 0
        %1359 = vmatprep.subr.bf16.mxu0 0
        %1360 = vmatpush1.bf16.msra.mxu0 0
        %1361 = vmatprep.subr.bf16.mxu0 0
        %1362 = vmatpush1.bf16.msra.mxu0 0
        %1363 = vmatprep.subr.bf16.mxu0 0
        %1364 = vmatpush1.bf16.msra.mxu0 0
        %1365 = vmatprep.subr.bf16.mxu0 0
        %1366 = vmatpush1.bf16.msra.mxu0 0
        %1367 = vmatprep.subr.bf16.mxu0 0
        %1368 = vmatpush1.bf16.msra.mxu0 0
        %1369 = vmatprep.subr.bf16.mxu0 0
        %1370 = vmatpush1.bf16.msra.mxu0 0
        %1371 = vmatprep.subr.bf16.mxu0 0
        %1372 = vmatpush1.bf16.msra.mxu0 0
        %1373 = vmatprep.subr.bf16.mxu0 0
        %1374 = vmatpush1.bf16.msra.mxu0 0
        %1375 = vmatprep.subr.bf16.mxu0 0
        %1376 = vmatpush1.bf16.msra.mxu0 0
        %1377 = vmatprep.subr.bf16.mxu0 0
        %1378 = vmatpush1.bf16.msra.mxu0 0
        %1379 = vmatprep.subr.bf16.mxu0 0
        %1380 = vmatpush1.bf16.msra.mxu0 0
        %1381 = vmatprep.mubr.bf16.mxu0 0
        %1382 = vmatmul.mubr.bf16.gmra.mrb[0].mxu0 %v1335
        %v1383 = vpop.f32.mrb[0].mxu0
        %v1384 = vadd.f32 0.0, %v1383
        %v1385 = vpop.f32.mrb[0].mxu0
        %v1386 = vpop.f32.mrb[0].mxu0
        %v1387 = vadd.f32 0.0, %v1386
        %v1388 = vpop.f32.mrb[0].mxu0
        %1389 = vmatprep.mubr.bf16.mxu0 0
        %1390 = vmatmul.mubr.bf16.gmra.mrb[0].mxu0 %v1338
        %v1391 = vpop.f32.mrb[0].mxu0
        %v1392 = vadd.f32 0.0, %v1391
        %v1393 = vpop.f32.mrb[0].mxu0
        %v1394 = vpop.f32.mrb[0].mxu0
        %v1395 = vadd.f32 0.0, %v1394
        %v1396 = vpop.f32.mrb[0].mxu0
        %1397 = vmatprep.mubr.bf16.mxu0 0
        %1398 = vmatmul.mubr.bf16.gmra.mrb[0].mxu0 %v1341
        %v1399 = vpop.f32.mrb[0].mxu0
        %v1400 = vadd.f32 0.0, %v1399
        %v1401 = vpop.f32.mrb[0].mxu0
        %v1402 = vpop.f32.mrb[0].mxu0
        %v1403 = vadd.f32 0.0, %v1402
        %v1404 = vpop.f32.mrb[0].mxu0
        %1405 = vmatprep.mubr.bf16.mxu0 0
        %1406 = vmatmul.mubr.bf16.gmra.mrb[0].mxu0 %v1344
        %v1407 = vpop.f32.mrb[0].mxu0
        %v1408 = vadd.f32 0.0, %v1407
        %v1409 = vpop.f32.mrb[0].mxu0
        %v1410 = vpop.f32.mrb[0].mxu0
        %v1411 = vadd.f32 0.0, %v1410
        %v1412 = vpop.f32.mrb[0].mxu0
        %1413 = vdwg.mxu0
        %v1414 = vadd.f32 %v1184, %v1384
        %v1415 = vadd.f32 %v1185, %v1387
        %v1416 = vadd.f32 %v1186, %v1392
        %v1417 = vadd.f32 %v1187, %v1395
        %v1418 = vadd.f32 %v1188, %v1400
        %v1419 = vadd.f32 %v1189, %v1403
        %v1420 = vadd.f32 %v1190, %v1408
        %v1421 = vadd.f32 %v1191, %v1411
        %s1422 = scalar_lea.vmem %s407, 8 [#allocation2]
        %v1423 = vld [vmem:[%s1422] sm:$0xf]
        %v1424 = vld [vmem:[%s1422 + $0x8] sm:$0xf]
        %v1425 = vld [vmem:[%s1422 + $0x10] sm:$0xf]
        %v1426 = vld [vmem:[%s1422 + $0x18] sm:$0xf]
        %v1427 = vld [vmem:[%s1422 + $0x20] sm:$0xf]
        %v1428 = vld [vmem:[%s1422 + $0x28] sm:$0xf]
        %v1429 = vld [vmem:[%s1422 + $0x30] sm:$0xf]
        %v1430 = vld [vmem:[%s1422 + $0x38] sm:$0xf]
        %s1431 = scalar_lea.vmem [#allocation8], 12
        %v1432 = vld [vmem:[%s1431] sm:$0x3]
        %v1441 = vunpack.c.l.b16 %v1423
        %v1442 = vunpack.c.l.b16 %v1424
        %v1443 = vunpack.c.l.b16 %v1425
        %v1444 = vunpack.c.l.b16 %v1426
        %v1445 = vunpack.c.l.b16 %v1427
        %v1446 = vunpack.c.l.b16 %v1428
        %v1447 = vunpack.c.l.b16 %v1429
        %v1448 = vunpack.c.l.b16 %v1430
        %v1449 = vpack.c.b16 %v1442, %v1441
        %v1450 = vpack.c.b16 %v1444, %v1443
        %v1451 = vpack.c.b16 %v1446, %v1445
        %v1452 = vpack.c.b16 %v1448, %v1447
        %v1454 = vsel %vm539, %v1449, 0
        %v1457 = vsel %vm539, %v1450, 0
        %v1460 = vsel %vm539, %v1451, 0
        %v1463 = vsel %vm539, %v1452, 0
        %v1466 = vsel %vm552, %v1432, 0
        %1468 = vmatprep.subr.bf16.mxu0 0
        %1469 = vmatpush1.bf16.msra.mxu0 %v1466
        %1470 = vmatprep.subr.bf16.mxu0 0
        %1471 = vmatpush1.bf16.msra.mxu0 0
        %1472 = vmatprep.subr.bf16.mxu0 0
        %1473 = vmatpush1.bf16.msra.mxu0 0
        %1474 = vmatprep.subr.bf16.mxu0 0
        %1475 = vmatpush1.bf16.msra.mxu0 0
        %1476 = vmatprep.subr.bf16.mxu0 0
        %1477 = vmatpush1.bf16.msra.mxu0 0
        %1478 = vmatprep.subr.bf16.mxu0 0
        %1479 = vmatpush1.bf16.msra.mxu0 0
        %1480 = vmatprep.subr.bf16.mxu0 0
        %1481 = vmatpush1.bf16.msra.mxu0 0
        %1482 = vmatprep.subr.bf16.mxu0 0
        %1483 = vmatpush1.bf16.msra.mxu0 0
        %1484 = vmatprep.subr.bf16.mxu0 0
        %1485 = vmatpush1.bf16.msra.mxu0 0
        %1486 = vmatprep.subr.bf16.mxu0 0
        %1487 = vmatpush1.bf16.msra.mxu0 0
        %1488 = vmatprep.subr.bf16.mxu0 0
        %1489 = vmatpush1.bf16.msra.mxu0 0
        %1490 = vmatprep.subr.bf16.mxu0 0
        %1491 = vmatpush1.bf16.msra.mxu0 0
        %1492 = vmatprep.subr.bf16.mxu0 0
        %1493 = vmatpush1.bf16.msra.mxu0 0
        %1494 = vmatprep.subr.bf16.mxu0 0
        %1495 = vmatpush1.bf16.msra.mxu0 0
        %1496 = vmatprep.subr.bf16.mxu0 0
        %1497 = vmatpush1.bf16.msra.mxu0 0
        %1498 = vmatprep.subr.bf16.mxu0 0
        %1499 = vmatpush1.bf16.msra.mxu0 0
        %1500 = vmatprep.mubr.bf16.mxu0 0
        %1501 = vmatmul.mubr.bf16.gmra.mrb[0].mxu0 %v1454
        %v1502 = vpop.f32.mrb[0].mxu0
        %v1503 = vadd.f32 0.0, %v1502
        %v1504 = vpop.f32.mrb[0].mxu0
        %v1505 = vpop.f32.mrb[0].mxu0
        %v1506 = vadd.f32 0.0, %v1505
        %v1507 = vpop.f32.mrb[0].mxu0
        %1508 = vmatprep.mubr.bf16.mxu0 0
        %1509 = vmatmul.mubr.bf16.gmra.mrb[0].mxu0 %v1457
        %v1510 = vpop.f32.mrb[0].mxu0
        %v1511 = vadd.f32 0.0, %v1510
        %v1512 = vpop.f32.mrb[0].mxu0
        %v1513 = vpop.f32.mrb[0].mxu0
        %v1514 = vadd.f32 0.0, %v1513
        %v1515 = vpop.f32.mrb[0].mxu0
        %1516 = vmatprep.mubr.bf16.mxu0 0
        %1517 = vmatmul.mubr.bf16.gmra.mrb[0].mxu0 %v1460
        %v1518 = vpop.f32.mrb[0].mxu0
        %v1519 = vadd.f32 0.0, %v1518
        %v1520 = vpop.f32.mrb[0].mxu0
        %v1521 = vpop.f32.mrb[0].mxu0
        %v1522 = vadd.f32 0.0, %v1521
        %v1523 = vpop.f32.mrb[0].mxu0
        %1524 = vmatprep.mubr.bf16.mxu0 0
        %1525 = vmatmul.mubr.bf16.gmra.mrb[0].mxu0 %v1463
        %v1526 = vpop.f32.mrb[0].mxu0
        %v1527 = vadd.f32 0.0, %v1526
        %v1528 = vpop.f32.mrb[0].mxu0
        %v1529 = vpop.f32.mrb[0].mxu0
        %v1530 = vadd.f32 0.0, %v1529
        %v1531 = vpop.f32.mrb[0].mxu0
        %1532 = vdwg.mxu0
        %v1533 = vadd.f32 %v1414, %v1503
        %v1534 = vadd.f32 %v1415, %v1506
        %v1535 = vadd.f32 %v1416, %v1511
        %v1536 = vadd.f32 %v1417, %v1514
        %v1537 = vadd.f32 %v1418, %v1519
        %v1538 = vadd.f32 %v1419, %v1522
        %v1539 = vadd.f32 %v1420, %v1527
        %v1540 = vadd.f32 %v1421, %v1530
        %s1541 = scalar_lea.vmem %s407, 80 [#allocation2]
        %v1542 = vld [vmem:[%s1541] sm:$0xf]
        %v1543 = vld [vmem:[%s1541 + $0x8] sm:$0xf]
        %v1544 = vld [vmem:[%s1541 + $0x10] sm:$0xf]
        %v1545 = vld [vmem:[%s1541 + $0x18] sm:$0xf]
        %v1546 = vld [vmem:[%s1541 + $0x20] sm:$0xf]
        %v1547 = vld [vmem:[%s1541 + $0x28] sm:$0xf]
        %v1548 = vld [vmem:[%s1541 + $0x30] sm:$0xf]
        %v1549 = vld [vmem:[%s1541 + $0x38] sm:$0xf]
        %s1550 = scalar_lea.vmem [#allocation8], 14
        %v1551 = vld [vmem:[%s1550] sm:$0x3]
        %v1560 = vunpack.c.l.b16 %v1542
        %v1561 = vunpack.c.l.b16 %v1543
        %v1562 = vunpack.c.l.b16 %v1544
        %v1563 = vunpack.c.l.b16 %v1545
        %v1564 = vunpack.c.l.b16 %v1546
        %v1565 = vunpack.c.l.b16 %v1547
        %v1566 = vunpack.c.l.b16 %v1548
        %v1567 = vunpack.c.l.b16 %v1549
        %v1568 = vpack.c.b16 %v1561, %v1560
        %v1569 = vpack.c.b16 %v1563, %v1562
        %v1570 = vpack.c.b16 %v1565, %v1564
        %v1571 = vpack.c.b16 %v1567, %v1566
        %v1573 = vsel %vm539, %v1568, 0
        %v1576 = vsel %vm539, %v1569, 0
        %v1579 = vsel %vm539, %v1570, 0
        %v1582 = vsel %vm539, %v1571, 0
        %v1585 = vsel %vm552, %v1551, 0
        %1587 = vmatprep.subr.bf16.mxu0 0
        %1588 = vmatpush1.bf16.msra.mxu0 %v1585
        %1589 = vmatprep.subr.bf16.mxu0 0
        %1590 = vmatpush1.bf16.msra.mxu0 0
        %1591 = vmatprep.subr.bf16.mxu0 0
        %1592 = vmatpush1.bf16.msra.mxu0 0
        %1593 = vmatprep.subr.bf16.mxu0 0
        %1594 = vmatpush1.bf16.msra.mxu0 0
        %1595 = vmatprep.subr.bf16.mxu0 0
        %1596 = vmatpush1.bf16.msra.mxu0 0
        %1597 = vmatprep.subr.bf16.mxu0 0
        %1598 = vmatpush1.bf16.msra.mxu0 0
        %1599 = vmatprep.subr.bf16.mxu0 0
        %1600 = vmatpush1.bf16.msra.mxu0 0
        %1601 = vmatprep.subr.bf16.mxu0 0
        %1602 = vmatpush1.bf16.msra.mxu0 0
        %1603 = vmatprep.subr.bf16.mxu0 0
        %1604 = vmatpush1.bf16.msra.mxu0 0
        %1605 = vmatprep.subr.bf16.mxu0 0
        %1606 = vmatpush1.bf16.msra.mxu0 0
        %1607 = vmatprep.subr.bf16.mxu0 0
        %1608 = vmatpush1.bf16.msra.mxu0 0
        %1609 = vmatprep.subr.bf16.mxu0 0
        %1610 = vmatpush1.bf16.msra.mxu0 0
        %1611 = vmatprep.subr.bf16.mxu0 0
        %1612 = vmatpush1.bf16.msra.mxu0 0
        %1613 = vmatprep.subr.bf16.mxu0 0
        %1614 = vmatpush1.bf16.msra.mxu0 0
        %1615 = vmatprep.subr.bf16.mxu0 0
        %1616 = vmatpush1.bf16.msra.mxu0 0
        %1617 = vmatprep.subr.bf16.mxu0 0
        %1618 = vmatpush1.bf16.msra.mxu0 0
        %1619 = vmatprep.mubr.bf16.mxu0 0
        %1620 = vmatmul.mubr.bf16.gmra.mrb[0].mxu0 %v1573
        %v1621 = vpop.f32.mrb[0].mxu0
        %v1622 = vadd.f32 0.0, %v1621
        %v1623 = vpop.f32.mrb[0].mxu0
        %v1624 = vpop.f32.mrb[0].mxu0
        %v1625 = vadd.f32 0.0, %v1624
        %v1626 = vpop.f32.mrb[0].mxu0
        %1627 = vmatprep.mubr.bf16.mxu0 0
        %1628 = vmatmul.mubr.bf16.gmra.mrb[0].mxu0 %v1576
        %v1629 = vpop.f32.mrb[0].mxu0
        %v1630 = vadd.f32 0.0, %v1629
        %v1631 = vpop.f32.mrb[0].mxu0
        %v1632 = vpop.f32.mrb[0].mxu0
        %v1633 = vadd.f32 0.0, %v1632
        %v1634 = vpop.f32.mrb[0].mxu0
        %1635 = vmatprep.mubr.bf16.mxu0 0
        %1636 = vmatmul.mubr.bf16.gmra.mrb[0].mxu0 %v1579
        %v1637 = vpop.f32.mrb[0].mxu0
        %v1638 = vadd.f32 0.0, %v1637
        %v1639 = vpop.f32.mrb[0].mxu0
        %v1640 = vpop.f32.mrb[0].mxu0
        %v1641 = vadd.f32 0.0, %v1640
        %v1642 = vpop.f32.mrb[0].mxu0
        %1643 = vmatprep.mubr.bf16.mxu0 0
        %1644 = vmatmul.mubr.bf16.gmra.mrb[0].mxu0 %v1582
        %v1645 = vpop.f32.mrb[0].mxu0
        %v1646 = vadd.f32 0.0, %v1645
        %v1647 = vpop.f32.mrb[0].mxu0
        %v1648 = vpop.f32.mrb[0].mxu0
        %v1649 = vadd.f32 0.0, %v1648
        %v1650 = vpop.f32.mrb[0].mxu0
        %1651 = vdwg.mxu0
        %v1652 = vadd.f32 %v1533, %v1622
        %v1653 = vadd.f32 %v1534, %v1625
        %v1654 = vadd.f32 %v1535, %v1630
        %v1655 = vadd.f32 %v1536, %v1633
        %v1656 = vadd.f32 %v1537, %v1638
        %v1657 = vadd.f32 %v1538, %v1641
        %v1658 = vadd.f32 %v1539, %v1646
        %v1659 = vadd.f32 %v1540, %v1649
        %v1660 = vld [vmem:[%s1422] sm:$0xf]
        %v1661 = vld [vmem:[%s1422 + $0x4] sm:$0x1]
        %v1662 = vld [vmem:[%s1422 + $0x8] sm:$0xf]
        %v1663 = vld [vmem:[%s1422 + $0xc] sm:$0x1]
        %v1664 = vld [vmem:[%s1422 + $0x10] sm:$0xf]
        %v1665 = vld [vmem:[%s1422 + $0x14] sm:$0x1]
        %v1666 = vld [vmem:[%s1422 + $0x18] sm:$0xf]
        %v1667 = vld [vmem:[%s1422 + $0x1c] sm:$0x1]
        %v1668 = vld [vmem:[%s1422 + $0x20] sm:$0xf]
        %v1669 = vld [vmem:[%s1422 + $0x24] sm:$0x1]
        %v1670 = vld [vmem:[%s1422 + $0x28] sm:$0xf]
        %v1671 = vld [vmem:[%s1422 + $0x2c] sm:$0x1]
        %v1672 = vld [vmem:[%s1422 + $0x30] sm:$0xf]
        %v1673 = vld [vmem:[%s1422 + $0x34] sm:$0x1]
        %v1674 = vld [vmem:[%s1422 + $0x38] sm:$0xf]
        %v1675 = vld [vmem:[%s1422 + $0x3c] sm:$0x1]
        %v1677 = vshrl.u32 %v1660, 16
        %v1679 = vrot.slane %v1677, 4
        %v1680 = vshll.u32 %v1660, 16
        %v1682 = vrot.slane %v1680, 5
        %v1683 = vor.u32 %v1679, %v1682
        %v1684 = vrot.slane %v1683, 4
        %v1686 = vshll.u32 %v1661, 16
        %v1688 = vrot.slane %v1686, 5
        %v1689 = vsel %vm739, %v1684, %v1688
        %v1691 = vshrl.u32 %v1662, 16
        %v1693 = vrot.slane %v1691, 4
        %v1694 = vshll.u32 %v1662, 16
        %v1696 = vrot.slane %v1694, 5
        %v1697 = vor.u32 %v1693, %v1696
        %v1698 = vrot.slane %v1697, 4
        %v1700 = vshll.u32 %v1663, 16
        %v1702 = vrot.slane %v1700, 5
        %v1703 = vsel %vm739, %v1698, %v1702
        %v1705 = vshrl.u32 %v1664, 16
        %v1707 = vrot.slane %v1705, 4
        %v1708 = vshll.u32 %v1664, 16
        %v1710 = vrot.slane %v1708, 5
        %v1711 = vor.u32 %v1707, %v1710
        %v1712 = vrot.slane %v1711, 4
        %v1714 = vshll.u32 %v1665, 16
        %v1716 = vrot.slane %v1714, 5
        %v1717 = vsel %vm739, %v1712, %v1716
        %v1719 = vshrl.u32 %v1666, 16
        %v1721 = vrot.slane %v1719, 4
        %v1722 = vshll.u32 %v1666, 16
        %v1724 = vrot.slane %v1722, 5
        %v1725 = vor.u32 %v1721, %v1724
        %v1726 = vrot.slane %v1725, 4
        %v1728 = vshll.u32 %v1667, 16
        %v1730 = vrot.slane %v1728, 5
        %v1731 = vsel %vm739, %v1726, %v1730
        %v1733 = vshrl.u32 %v1668, 16
        %v1735 = vrot.slane %v1733, 4
        %v1736 = vshll.u32 %v1668, 16
        %v1738 = vrot.slane %v1736, 5
        %v1739 = vor.u32 %v1735, %v1738
        %v1740 = vrot.slane %v1739, 4
        %v1742 = vshll.u32 %v1669, 16
        %v1744 = vrot.slane %v1742, 5
        %v1745 = vsel %vm739, %v1740, %v1744
        %v1747 = vshrl.u32 %v1670, 16
        %v1749 = vrot.slane %v1747, 4
        %v1750 = vshll.u32 %v1670, 16
        %v1752 = vrot.slane %v1750, 5
        %v1753 = vor.u32 %v1749, %v1752
        %v1754 = vrot.slane %v1753, 4
        %v1756 = vshll.u32 %v1671, 16
        %v1758 = vrot.slane %v1756, 5
        %v1759 = vsel %vm739, %v1754, %v1758
        %v1761 = vshrl.u32 %v1672, 16
        %v1763 = vrot.slane %v1761, 4
        %v1764 = vshll.u32 %v1672, 16
        %v1766 = vrot.slane %v1764, 5
        %v1767 = vor.u32 %v1763, %v1766
        %v1768 = vrot.slane %v1767, 4
        %v1770 = vshll.u32 %v1673, 16
        %v1772 = vrot.slane %v1770, 5
        %v1773 = vsel %vm739, %v1768, %v1772
        %v1775 = vshrl.u32 %v1674, 16
        %v1777 = vrot.slane %v1775, 4
        %v1778 = vshll.u32 %v1674, 16
        %v1780 = vrot.slane %v1778, 5
        %v1781 = vor.u32 %v1777, %v1780
        %v1782 = vrot.slane %v1781, 4
        %v1784 = vshll.u32 %v1675, 16
        %v1786 = vrot.slane %v1784, 5
        %v1787 = vsel %vm739, %v1782, %v1786
        %s1788 = scalar_lea.vmem [#allocation8], 16
        %v1789 = vld [vmem:[%s1788] sm:$0x3]
        %v1790 = vunpack.c.l.b16 %v1689
        %v1791 = vunpack.c.l.b16 %v1703
        %v1792 = vunpack.c.l.b16 %v1717
        %v1793 = vunpack.c.l.b16 %v1731
        %v1794 = vunpack.c.l.b16 %v1745
        %v1795 = vunpack.c.l.b16 %v1759
        %v1796 = vunpack.c.l.b16 %v1773
        %v1797 = vunpack.c.l.b16 %v1787
        %v1798 = vpack.c.b16 %v1791, %v1790
        %v1799 = vpack.c.b16 %v1793, %v1792
        %v1800 = vpack.c.b16 %v1795, %v1794
        %v1801 = vpack.c.b16 %v1797, %v1796
        %v1803 = vsel %vm539, %v1798, 0
        %v1806 = vsel %vm539, %v1799, 0
        %v1809 = vsel %vm539, %v1800, 0
        %v1812 = vsel %vm539, %v1801, 0
        %v1815 = vsel %vm552, %v1789, 0
        %1817 = vmatprep.subr.bf16.mxu0 0
        %1818 = vmatpush1.bf16.msra.mxu0 %v1815
        %1819 = vmatprep.subr.bf16.mxu0 0
        %1820 = vmatpush1.bf16.msra.mxu0 0
        %1821 = vmatprep.subr.bf16.mxu0 0
        %1822 = vmatpush1.bf16.msra.mxu0 0
        %1823 = vmatprep.subr.bf16.mxu0 0
        %1824 = vmatpush1.bf16.msra.mxu0 0
        %1825 = vmatprep.subr.bf16.mxu0 0
        %1826 = vmatpush1.bf16.msra.mxu0 0
        %1827 = vmatprep.subr.bf16.mxu0 0
        %1828 = vmatpush1.bf16.msra.mxu0 0
        %1829 = vmatprep.subr.bf16.mxu0 0
        %1830 = vmatpush1.bf16.msra.mxu0 0
        %1831 = vmatprep.subr.bf16.mxu0 0
        %1832 = vmatpush1.bf16.msra.mxu0 0
        %1833 = vmatprep.subr.bf16.mxu0 0
        %1834 = vmatpush1.bf16.msra.mxu0 0
        %1835 = vmatprep.subr.bf16.mxu0 0
        %1836 = vmatpush1.bf16.msra.mxu0 0
        %1837 = vmatprep.subr.bf16.mxu0 0
        %1838 = vmatpush1.bf16.msra.mxu0 0
        %1839 = vmatprep.subr.bf16.mxu0 0
        %1840 = vmatpush1.bf16.msra.mxu0 0
        %1841 = vmatprep.subr.bf16.mxu0 0
        %1842 = vmatpush1.bf16.msra.mxu0 0
        %1843 = vmatprep.subr.bf16.mxu0 0
        %1844 = vmatpush1.bf16.msra.mxu0 0
        %1845 = vmatprep.subr.bf16.mxu0 0
        %1846 = vmatpush1.bf16.msra.mxu0 0
        %1847 = vmatprep.subr.bf16.mxu0 0
        %1848 = vmatpush1.bf16.msra.mxu0 0
        %1849 = vmatprep.mubr.bf16.mxu0 0
        %1850 = vmatmul.mubr.bf16.gmra.mrb[0].mxu0 %v1803
        %v1851 = vpop.f32.mrb[0].mxu0
        %v1852 = vadd.f32 0.0, %v1851
        %v1853 = vpop.f32.mrb[0].mxu0
        %v1854 = vpop.f32.mrb[0].mxu0
        %v1855 = vadd.f32 0.0, %v1854
        %v1856 = vpop.f32.mrb[0].mxu0
        %1857 = vmatprep.mubr.bf16.mxu0 0
        %1858 = vmatmul.mubr.bf16.gmra.mrb[0].mxu0 %v1806
        %v1859 = vpop.f32.mrb[0].mxu0
        %v1860 = vadd.f32 0.0, %v1859
        %v1861 = vpop.f32.mrb[0].mxu0
        %v1862 = vpop.f32.mrb[0].mxu0
        %v1863 = vadd.f32 0.0, %v1862
        %v1864 = vpop.f32.mrb[0].mxu0
        %1865 = vmatprep.mubr.bf16.mxu0 0
        %1866 = vmatmul.mubr.bf16.gmra.mrb[0].mxu0 %v1809
        %v1867 = vpop.f32.mrb[0].mxu0
        %v1868 = vadd.f32 0.0, %v1867
        %v1869 = vpop.f32.mrb[0].mxu0
        %v1870 = vpop.f32.mrb[0].mxu0
        %v1871 = vadd.f32 0.0, %v1870
        %v1872 = vpop.f32.mrb[0].mxu0
        %1873 = vmatprep.mubr.bf16.mxu0 0
        %1874 = vmatmul.mubr.bf16.gmra.mrb[0].mxu0 %v1812
        %v1875 = vpop.f32.mrb[0].mxu0
        %v1876 = vadd.f32 0.0, %v1875
        %v1877 = vpop.f32.mrb[0].mxu0
        %v1878 = vpop.f32.mrb[0].mxu0
        %v1879 = vadd.f32 0.0, %v1878
        %v1880 = vpop.f32.mrb[0].mxu0
        %1881 = vdwg.mxu0
        %v1882 = vadd.f32 %v1652, %v1852
        %v1883 = vadd.f32 %v1653, %v1855
        %v1884 = vadd.f32 %v1654, %v1860
        %v1885 = vadd.f32 %v1655, %v1863
        %v1886 = vadd.f32 %v1656, %v1868
        %v1887 = vadd.f32 %v1657, %v1871
        %v1888 = vadd.f32 %v1658, %v1876
        %v1889 = vadd.f32 %v1659, %v1879
        %1890 = vst [vmem:[%s475] sm:$0xff] %v1882
        %1891 = vst [vmem:[%s475 + $0x8] sm:$0xff] %v1883
        %1892 = vst [vmem:[%s475 + $0x10] sm:$0xff] %v1884
        %1893 = vst [vmem:[%s475 + $0x18] sm:$0xff] %v1885
        %1894 = vst [vmem:[%s475 + $0x20] sm:$0xff] %v1886
        %1895 = vst [vmem:[%s475 + $0x28] sm:$0xff] %v1887
        %1896 = vst [vmem:[%s475 + $0x30] sm:$0xff] %v1888
        %1897 = vst [vmem:[%s475 + $0x38] sm:$0xff] %v1889
        %v1898 = vadd.f32 %v1882, %v1883
        %v1899 = vadd.f32 %v1898, %v1884
        %v1900 = vadd.f32 %v1899, %v1885
        %v1901 = vadd.f32 %v1900, %v1886
        %v1902 = vadd.f32 %v1901, %v1887
        %v1903 = vadd.f32 %v1902, %v1888
        %v1904 = vadd.f32 %v1903, %v1889
        %v1905 = vrot.slane %v1904, 4
        %v1906 = vadd.f32 %v1904, %v1905
        %v1907 = vrot.slane %v1906, 2
        %v1908 = vadd.f32 %v1906, %v1907
        %v1909 = vrot.slane %v1908, 1
        %v1910 = vadd.f32 %v1908, %v1909
        %1911 = vst [vmem:[%s482] sm:$0x1] %v1910
        %v1912 = vmul.f32 %v1882, %v1882
        %v1913 = vmul.f32 %v1883, %v1883
        %v1914 = vmul.f32 %v1884, %v1884
        %v1915 = vmul.f32 %v1885, %v1885
        %v1916 = vmul.f32 %v1886, %v1886
        %v1917 = vmul.f32 %v1887, %v1887
        %v1918 = vmul.f32 %v1888, %v1888
        %v1919 = vmul.f32 %v1889, %v1889
        %v1920 = vadd.f32 %v1912, %v1913
        %v1921 = vadd.f32 %v1920, %v1914
        %v1922 = vadd.f32 %v1921, %v1915
        %v1923 = vadd.f32 %v1922, %v1916
        %v1924 = vadd.f32 %v1923, %v1917
        %v1925 = vadd.f32 %v1924, %v1918
        %v1926 = vadd.f32 %v1925, %v1919
        %v1927 = vrot.slane %v1926, 4
        %v1928 = vadd.f32 %v1926, %v1927
        %v1929 = vrot.slane %v1928, 2
        %v1930 = vadd.f32 %v1928, %v1929
        %v1931 = vrot.slane %v1930, 1
        %v1932 = vadd.f32 %v1930, %v1931
        %1933 = vst [vmem:[%s482 + $0x1] sm:$0x1] %v1932
        %v1934 = vld [vmem:[%s425] sm:$0xff]
        %v1935 = vld [vmem:[%s425 + $0x8] sm:$0xff]
        %v1936 = vld [vmem:[%s425 + $0x10] sm:$0xff]
        %v1937 = vld [vmem:[%s425 + $0x18] sm:$0xff]
        %v1938 = vld [vmem:[%s425 + $0x20] sm:$0xff]
        %v1939 = vld [vmem:[%s425 + $0x28] sm:$0xff]
        %v1940 = vld [vmem:[%s425 + $0x30] sm:$0xff]
        %v1941 = vld [vmem:[%s425 + $0x38] sm:$0xff]
        %v1942 = vld [vmem:[#allocation11] sm:$0x1]
        %1944 = vset.pattern.permute.xlu0 0
        %1945 = vperm.xlu0 %1944, %v1934
        %v1946 = vpop.permute.xlu0 %1945
        %1949 = vset.pattern.permute.xlu0 0
        %1950 = vperm.xlu0 %1949, %v1935
        %v1951 = vpop.permute.xlu0 %1950
        %1954 = vset.pattern.permute.xlu0 0
        %1955 = vperm.xlu0 %1954, %v1936
        %v1956 = vpop.permute.xlu0 %1955
        %1959 = vset.pattern.permute.xlu0 0
        %1960 = vperm.xlu0 %1959, %v1937
        %v1961 = vpop.permute.xlu0 %1960
        %1964 = vset.pattern.permute.xlu0 0
        %1965 = vperm.xlu0 %1964, %v1938
        %v1966 = vpop.permute.xlu0 %1965
        %1969 = vset.pattern.permute.xlu0 0
        %1970 = vperm.xlu0 %1969, %v1939
        %v1971 = vpop.permute.xlu0 %1970
        %1974 = vset.pattern.permute.xlu0 0
        %1975 = vperm.xlu0 %1974, %v1940
        %v1976 = vpop.permute.xlu0 %1975
        %1979 = vset.pattern.permute.xlu0 0
        %1980 = vperm.xlu0 %1979, %v1941
        %v1981 = vpop.permute.xlu0 %1980
        %v1983 = vlaneseq
        %v1984 = vshrl.u32 %v1983, 7
        %v1985 = vsub.s32 0, %v1984
        %v1986 = vrot.slane %v1942, %v1985
        %v1987 = vmul.f32 %v1946, %v1986
        %v1988 = vmul.f32 %v1951, %v1986
        %v1989 = vmul.f32 %v1956, %v1986
        %v1990 = vmul.f32 %v1961, %v1986
        %v1991 = vmul.f32 %v1966, %v1986
        %v1992 = vmul.f32 %v1971, %v1986
        %v1993 = vmul.f32 %v1976, %v1986
        %v1994 = vmul.f32 %v1981, %v1986
        %v1995 = vld [vmem:[#allocation11 + $0x1] sm:$0x1]
        %1996 = vset.pattern.permute.xlu0 1
        %1997 = vperm.xlu0 %1996, %v1934
        %v1998 = vpop.permute.xlu0 %1997
        %2000 = vset.pattern.permute.xlu0 1
        %2001 = vperm.xlu0 %2000, %v1935
        %v2002 = vpop.permute.xlu0 %2001
        %2004 = vset.pattern.permute.xlu0 1
        %2005 = vperm.xlu0 %2004, %v1936
        %v2006 = vpop.permute.xlu0 %2005
        %2008 = vset.pattern.permute.xlu0 1
        %2009 = vperm.xlu0 %2008, %v1937
        %v2010 = vpop.permute.xlu0 %2009
        %2012 = vset.pattern.permute.xlu0 1
        %2013 = vperm.xlu0 %2012, %v1938
        %v2014 = vpop.permute.xlu0 %2013
        %2016 = vset.pattern.permute.xlu0 1
        %2017 = vperm.xlu0 %2016, %v1939
        %v2018 = vpop.permute.xlu0 %2017
        %2020 = vset.pattern.permute.xlu0 1
        %2021 = vperm.xlu0 %2020, %v1940
        %v2022 = vpop.permute.xlu0 %2021
        %2024 = vset.pattern.permute.xlu0 1
        %2025 = vperm.xlu0 %2024, %v1941
        %v2026 = vpop.permute.xlu0 %2025
        %v2028 = vlaneseq
        %v2029 = vshrl.u32 %v2028, 7
        %v2030 = vsub.s32 0, %v2029
        %v2031 = vrot.slane %v1995, %v2030
        %v2032 = vmul.f32 %v1998, %v2031
        %v2033 = vmul.f32 %v2002, %v2031
        %v2034 = vmul.f32 %v2006, %v2031
        %v2035 = vmul.f32 %v2010, %v2031
        %v2036 = vmul.f32 %v2014, %v2031
        %v2037 = vmul.f32 %v2018, %v2031
        %v2038 = vmul.f32 %v2022, %v2031
        %v2039 = vmul.f32 %v2026, %v2031
        %v2040 = vadd.f32 %v1987, %v2032
        %v2041 = vadd.f32 %v1988, %v2033
        %v2042 = vadd.f32 %v1989, %v2034
        %v2043 = vadd.f32 %v1990, %v2035
        %v2044 = vadd.f32 %v1991, %v2036
        %v2045 = vadd.f32 %v1992, %v2037
        %v2046 = vadd.f32 %v1993, %v2038
        %v2047 = vadd.f32 %v1994, %v2039
        %v2048 = vld [vmem:[#allocation11 + $0x2] sm:$0x1]
        %2049 = vset.pattern.permute.xlu0 2
        %2050 = vperm.xlu0 %2049, %v1934
        %v2051 = vpop.permute.xlu0 %2050
        %2053 = vset.pattern.permute.xlu0 2
        %2054 = vperm.xlu0 %2053, %v1935
        %v2055 = vpop.permute.xlu0 %2054
        %2057 = vset.pattern.permute.xlu0 2
        %2058 = vperm.xlu0 %2057, %v1936
        %v2059 = vpop.permute.xlu0 %2058
        %2061 = vset.pattern.permute.xlu0 2
        %2062 = vperm.xlu0 %2061, %v1937
        %v2063 = vpop.permute.xlu0 %2062
        %2065 = vset.pattern.permute.xlu0 2
        %2066 = vperm.xlu0 %2065, %v1938
        %v2067 = vpop.permute.xlu0 %2066
        %2069 = vset.pattern.permute.xlu0 2
        %2070 = vperm.xlu0 %2069, %v1939
        %v2071 = vpop.permute.xlu0 %2070
        %2073 = vset.pattern.permute.xlu0 2
        %2074 = vperm.xlu0 %2073, %v1940
        %v2075 = vpop.permute.xlu0 %2074
        %2077 = vset.pattern.permute.xlu0 2
        %2078 = vperm.xlu0 %2077, %v1941
        %v2079 = vpop.permute.xlu0 %2078
        %v2081 = vlaneseq
        %v2082 = vshrl.u32 %v2081, 7
        %v2083 = vsub.s32 0, %v2082
        %v2084 = vrot.slane %v2048, %v2083
        %v2085 = vmul.f32 %v2051, %v2084
        %v2086 = vmul.f32 %v2055, %v2084
        %v2087 = vmul.f32 %v2059, %v2084
        %v2088 = vmul.f32 %v2063, %v2084
        %v2089 = vmul.f32 %v2067, %v2084
        %v2090 = vmul.f32 %v2071, %v2084
        %v2091 = vmul.f32 %v2075, %v2084
        %v2092 = vmul.f32 %v2079, %v2084
        %v2093 = vadd.f32 %v2040, %v2085
        %v2094 = vadd.f32 %v2041, %v2086
        %v2095 = vadd.f32 %v2042, %v2087
        %v2096 = vadd.f32 %v2043, %v2088
        %v2097 = vadd.f32 %v2044, %v2089
        %v2098 = vadd.f32 %v2045, %v2090
        %v2099 = vadd.f32 %v2046, %v2091
        %v2100 = vadd.f32 %v2047, %v2092
        %v2101 = vadd.f32 %v2093, %v2094
        %v2102 = vadd.f32 %v2101, %v2095
        %v2103 = vadd.f32 %v2102, %v2096
        %v2104 = vadd.f32 %v2103, %v2097
        %v2105 = vadd.f32 %v2104, %v2098
        %v2106 = vadd.f32 %v2105, %v2099
        %v2107 = vadd.f32 %v2106, %v2100
        %v2108 = vrot.slane %v2107, 4
        %v2109 = vadd.f32 %v2107, %v2108
        %v2110 = vrot.slane %v2109, 2
        %v2111 = vadd.f32 %v2109, %v2110
        %v2112 = vrot.slane %v2111, 1
        %v2113 = vadd.f32 %v2111, %v2112
        %2114 = vst [vmem:[%s489] sm:$0x1] %v2113
        %v2115 = vmul.f32 %v2093, %v2093
        %v2116 = vmul.f32 %v2094, %v2094
        %v2117 = vmul.f32 %v2095, %v2095
        %v2118 = vmul.f32 %v2096, %v2096
        %v2119 = vmul.f32 %v2097, %v2097
        %v2120 = vmul.f32 %v2098, %v2098
        %v2121 = vmul.f32 %v2099, %v2099
        %v2122 = vmul.f32 %v2100, %v2100
        %v2123 = vadd.f32 %v2115, %v2116
        %v2124 = vadd.f32 %v2123, %v2117
        %v2125 = vadd.f32 %v2124, %v2118
        %v2126 = vadd.f32 %v2125, %v2119
        %v2127 = vadd.f32 %v2126, %v2120
        %v2128 = vadd.f32 %v2127, %v2121
        %v2129 = vadd.f32 %v2128, %v2122
        %v2130 = vrot.slane %v2129, 4
        %v2131 = vadd.f32 %v2129, %v2130
        %v2132 = vrot.slane %v2131, 2
        %v2133 = vadd.f32 %v2131, %v2132
        %v2134 = vrot.slane %v2133, 1
        %v2135 = vadd.f32 %v2133, %v2134
        %2136 = vst [vmem:[%s489 + $0x1] sm:$0x1] %v2135
        %v2137 = vld [vmem:[%s416] sm:$0xff]
        %v2138 = vld [vmem:[%s416 + $0x8] sm:$0xff]
        %v2139 = vld [vmem:[%s416 + $0x10] sm:$0xff]
        %v2140 = vld [vmem:[%s416 + $0x18] sm:$0xff]
        %v2141 = vld [vmem:[%s416 + $0x20] sm:$0xff]
        %v2142 = vld [vmem:[%s416 + $0x28] sm:$0xff]
        %v2143 = vld [vmem:[%s416 + $0x30] sm:$0xff]
        %v2144 = vld [vmem:[%s416 + $0x38] sm:$0xff]
        %v2145 = vpack.c.bf16 %v2138, %v2137
        %v2146 = vpack.c.bf16 %v2140, %v2139
        %v2147 = vpack.c.bf16 %v2142, %v2141
        %v2148 = vpack.c.bf16 %v2144, %v2143
        %v2149 = vld [vmem:[#allocation10] sm:$0x3]
        %v2151 = vsel %vm539, %v2145, 0
        %v2154 = vsel %vm539, %v2146, 0
        %v2157 = vsel %vm539, %v2147, 0
        %v2160 = vsel %vm539, %v2148, 0
        %v2163 = vsel %vm552, %v2149, 0
        %2165 = vmatprep.subr.bf16.mxu0 0
        %2166 = vmatpush1.bf16.msra.mxu0 %v2163
        %2167 = vmatprep.subr.bf16.mxu0 0
        %2168 = vmatpush1.bf16.msra.mxu0 0
        %2169 = vmatprep.subr.bf16.mxu0 0
        %2170 = vmatpush1.bf16.msra.mxu0 0
        %2171 = vmatprep.subr.bf16.mxu0 0
        %2172 = vmatpush1.bf16.msra.mxu0 0
        %2173 = vmatprep.subr.bf16.mxu0 0
        %2174 = vmatpush1.bf16.msra.mxu0 0
        %2175 = vmatprep.subr.bf16.mxu0 0
        %2176 = vmatpush1.bf16.msra.mxu0 0
        %2177 = vmatprep.subr.bf16.mxu0 0
        %2178 = vmatpush1.bf16.msra.mxu0 0
        %2179 = vmatprep.subr.bf16.mxu0 0
        %2180 = vmatpush1.bf16.msra.mxu0 0
        %2181 = vmatprep.subr.bf16.mxu0 0
        %2182 = vmatpush1.bf16.msra.mxu0 0
        %2183 = vmatprep.subr.bf16.mxu0 0
        %2184 = vmatpush1.bf16.msra.mxu0 0
        %2185 = vmatprep.subr.bf16.mxu0 0
        %2186 = vmatpush1.bf16.msra.mxu0 0
        %2187 = vmatprep.subr.bf16.mxu0 0
        %2188 = vmatpush1.bf16.msra.mxu0 0
        %2189 = vmatprep.subr.bf16.mxu0 0
        %2190 = vmatpush1.bf16.msra.mxu0 0
        %2191 = vmatprep.subr.bf16.mxu0 0
        %2192 = vmatpush1.bf16.msra.mxu0 0
        %2193 = vmatprep.subr.bf16.mxu0 0
        %2194 = vmatpush1.bf16.msra.mxu0 0
        %2195 = vmatprep.subr.bf16.mxu0 0
        %2196 = vmatpush1.bf16.msra.mxu0 0
        %2197 = vmatprep.mubr.bf16.mxu0 0
        %2198 = vmatmul.mubr.bf16.gmra.mrb[0].mxu0 %v2151
        %v2199 = vpop.f32.mrb[0].mxu0
        %v2200 = vadd.f32 0.0, %v2199
        %v2201 = vpop.f32.mrb[0].mxu0
        %v2202 = vpop.f32.mrb[0].mxu0
        %v2203 = vadd.f32 0.0, %v2202
        %v2204 = vpop.f32.mrb[0].mxu0
        %2205 = vmatprep.mubr.bf16.mxu0 0
        %2206 = vmatmul.mubr.bf16.gmra.mrb[0].mxu0 %v2154
        %v2207 = vpop.f32.mrb[0].mxu0
        %v2208 = vadd.f32 0.0, %v2207
        %v2209 = vpop.f32.mrb[0].mxu0
        %v2210 = vpop.f32.mrb[0].mxu0
        %v2211 = vadd.f32 0.0, %v2210
        %v2212 = vpop.f32.mrb[0].mxu0
        %2213 = vmatprep.mubr.bf16.mxu0 0
        %2214 = vmatmul.mubr.bf16.gmra.mrb[0].mxu0 %v2157
        %v2215 = vpop.f32.mrb[0].mxu0
        %v2216 = vadd.f32 0.0, %v2215
        %v2217 = vpop.f32.mrb[0].mxu0
        %v2218 = vpop.f32.mrb[0].mxu0
        %v2219 = vadd.f32 0.0, %v2218
        %v2220 = vpop.f32.mrb[0].mxu0
        %2221 = vmatprep.mubr.bf16.mxu0 0
        %2222 = vmatmul.mubr.bf16.gmra.mrb[0].mxu0 %v2160
        %v2223 = vpop.f32.mrb[0].mxu0
        %v2224 = vadd.f32 0.0, %v2223
        %v2225 = vpop.f32.mrb[0].mxu0
        %v2226 = vpop.f32.mrb[0].mxu0
        %v2227 = vadd.f32 0.0, %v2226
        %v2228 = vpop.f32.mrb[0].mxu0
        %2229 = vdwg.mxu0
        %v2230 = vadd.f32 %v2200, %v2203
        %v2231 = vadd.f32 %v2230, %v2208
        %v2232 = vadd.f32 %v2231, %v2211
        %v2233 = vadd.f32 %v2232, %v2216
        %v2234 = vadd.f32 %v2233, %v2219
        %v2235 = vadd.f32 %v2234, %v2224
        %v2236 = vadd.f32 %v2235, %v2227
        %v2237 = vrot.slane %v2236, 4
        %v2238 = vadd.f32 %v2236, %v2237
        %v2239 = vrot.slane %v2238, 2
        %v2240 = vadd.f32 %v2238, %v2239
        %v2241 = vrot.slane %v2240, 1
        %v2242 = vadd.f32 %v2240, %v2241
        %2243 = vst [vmem:[%s496] sm:$0x1] %v2242
        %v2244 = vmul.f32 %v2200, %v2200
        %v2245 = vmul.f32 %v2203, %v2203
        %v2246 = vmul.f32 %v2208, %v2208
        %v2247 = vmul.f32 %v2211, %v2211
        %v2248 = vmul.f32 %v2216, %v2216
        %v2249 = vmul.f32 %v2219, %v2219
        %v2250 = vmul.f32 %v2224, %v2224
        %v2251 = vmul.f32 %v2227, %v2227
        %v2252 = vadd.f32 %v2244, %v2245
        %v2253 = vadd.f32 %v2252, %v2246
        %v2254 = vadd.f32 %v2253, %v2247
        %v2255 = vadd.f32 %v2254, %v2248
        %v2256 = vadd.f32 %v2255, %v2249
        %v2257 = vadd.f32 %v2256, %v2250
        %v2258 = vadd.f32 %v2257, %v2251
        %v2259 = vrot.slane %v2258, 4
        %v2260 = vadd.f32 %v2258, %v2259
        %v2261 = vrot.slane %v2260, 2
        %v2262 = vadd.f32 %v2260, %v2261
        %v2263 = vrot.slane %v2262, 1
        %v2264 = vadd.f32 %v2262, %v2263
        %2265 = vst [vmem:[%s496 + $0x1] sm:$0x1] %v2264
        %s2266 = sand.u32 %s187, 1
        %s2267 = scalar_lea.sflag [#allocation4], %s2266
        %s2268 = sand.u32 %s187, 1
        %s2269 = smul.addr %s2268, 64
        %s2270 = scalar_lea.vmem [#allocation13], %s2269
        %s2271 = sand.u32 %s38, 1
        %s2272 = scalar_lea.sflag [#allocation15], %s2271
        %s2273 = sand.u32 %s213, 1
        %s2274 = smul.addr %s2273, 2
        %s2275 = scalar_lea.vmem [#allocation14], %s2274
        %s2276 = sand.u32 %s38, 1
        %s2277 = scalar_lea.sflag [#allocation15], %s2276
        %s2278 = sand.u32 %s239, 1
        %s2279 = smul.addr %s2278, 2
        %s2280 = scalar_lea.vmem [#allocation16], %s2279
        %s2281 = sand.u32 %s265, 1
        %s2282 = scalar_lea.sflag [#allocation18], %s2281
        %s2283 = sand.u32 %s265, 1
        %s2284 = smul.addr %s2283, 2
        %s2285 = scalar_lea.vmem [#allocation17], %s2284
        // Predicated region
        $region69: #{neural_resnet34_bottleneck_forward.3} parent=43 // pred_check
          %p2286 = pneg %p197
        $region70: #{neural_resnet34_bottleneck_forward.3} parent=43 // pred_check_branch
          %2288 = sbr.rel (%p2286) target = $region72
        $region71: #{neural_resnet34_bottleneck_forward.3} parent=43 // pred_region
          %s2290 = ssub.s32 1024, 1024
          %2291 = vsyncadd %s2267, %s2290
          %s2292 = smul.addr %s38, 8
          %s2293 = smul.addr %s2292, 128
          %s2294 = scalar_lea.hbm %s6, %s2293
          %s2295 = sshll.u32 %s2270, 4
          %s2296 = int_to_ptr.vmem [resolvable:$true] %s2295
          %2301 = dma.vmem_to_hbm [thread:$0]  %s2296, 1024, %s2294, %s2267, 128, 128, 8
        $region72: #{neural_resnet34_bottleneck_forward.3} parent=43 // pred_fallthru
          _
        // Predicated region
        $region73: #{neural_resnet34_bottleneck_forward.3} parent=43 // pred_check
          %p2302 = pneg %p223
        $region74: #{neural_resnet34_bottleneck_forward.3} parent=43 // pred_check_branch
          %2304 = sbr.rel (%p2302) target = $region76
        $region75: #{neural_resnet34_bottleneck_forward.3} parent=43 // pred_region
          %s2306 = ssub.s32 32, 32
          %2307 = vsyncadd %s2272, %s2306
          %s2308 = smul.addr %s38, 32
          %s2309 = scalar_lea.hbm %s7, %s2308
          %s2311 = sshll.u32 %s2275, 4
          %s2312 = int_to_ptr.vmem [resolvable:$true] %s2311
          %2314 = dma.vmem_to_hbm [thread:$0]  %s2312, 32, %s2309, %s2272
        $region76: #{neural_resnet34_bottleneck_forward.3} parent=43 // pred_fallthru
          _
        // Predicated region
        $region77: #{neural_resnet34_bottleneck_forward.3} parent=43 // pred_check
          %p2315 = pneg %p249
        $region78: #{neural_resnet34_bottleneck_forward.3} parent=43 // pred_check_branch
          %2317 = sbr.rel (%p2315) target = $region80
        $region79: #{neural_resnet34_bottleneck_forward.3} parent=43 // pred_region
          %s2319 = ssub.s32 32, 32
          %2320 = vsyncadd %s2277, %s2319
          %s2321 = smul.addr %s38, 32
          %s2322 = scalar_lea.hbm %s8, %s2321
          %s2324 = sshll.u32 %s2280, 4
          %s2325 = int_to_ptr.vmem [resolvable:$true] %s2324
          %2327 = dma.vmem_to_hbm [thread:$0]  %s2325, 32, %s2322, %s2277
        $region80: #{neural_resnet34_bottleneck_forward.3} parent=43 // pred_fallthru
          _
        // Predicated region
        $region81: #{neural_resnet34_bottleneck_forward.3} parent=43 // pred_check
          %p2328 = pneg %p275
        $region82: #{neural_resnet34_bottleneck_forward.3} parent=43 // pred_check_branch
          %2330 = sbr.rel (%p2328) target = $region84
        $region83: #{neural_resnet34_bottleneck_forward.3} parent=43 // pred_region
          %s2332 = ssub.s32 32, 32
          %2333 = vsyncadd %s2282, %s2332
          %s2334 = smul.addr %s38, 32
          %s2335 = scalar_lea.hbm %s9, %s2334
          %s2337 = sshll.u32 %s2285, 4
          %s2338 = int_to_ptr.vmem [resolvable:$true] %s2337
          %2340 = dma.vmem_to_hbm [thread:$0]  %s2338, 32, %s2335, %s2282
        $region84: #{neural_resnet34_bottleneck_forward.3} parent=43 // pred_fallthru
          _
      $region44: #{neural_resnet34_bottleneck_forward.3} parent=5 // pred_fallthru
        _
      %p2341 = scmp.le.s32.totalorder 2, %s33
      // Predicated region
      $region85: #{neural_resnet34_bottleneck_forward.3} parent=5 // pred_check
        %p2342 = pneg %p2341
      $region86: #{neural_resnet34_bottleneck_forward.3} parent=5 // pred_check_branch
        %2344 = sbr.rel (%p2342) target = $region88
      $region87: #{neural_resnet34_bottleneck_forward.3} parent=5 // pred_region
        %s2345 = ssub.s32 %s33, 2
        // Predicated region
        $region89: #{neural_resnet34_bottleneck_forward.3} parent=87 // pred_check
          %p2346 = pneg %p203
        $region90: #{neural_resnet34_bottleneck_forward.3} parent=87 // pred_check_branch
          %2348 = sbr.rel (%p2346) target = $region92
        $region91: #{neural_resnet34_bottleneck_forward.3} parent=87 // pred_region
          %s2349 = sand.u32 %s188, 1
          %s2350 = scalar_lea.sflag [#allocation4], %s2349
          %s2351 = sand.u32 %s188, 1
          %s2352 = smul.addr %s2351, 64
          %s2353 = scalar_lea.vmem [#allocation13], %s2352
          %2354 = dma.done %s2350, 1024
        $region92: #{neural_resnet34_bottleneck_forward.3} parent=87 // pred_fallthru
          _
        // Predicated region
        $region93: #{neural_resnet34_bottleneck_forward.3} parent=87 // pred_check
          %p2355 = pneg %p229
        $region94: #{neural_resnet34_bottleneck_forward.3} parent=87 // pred_check_branch
          %2357 = sbr.rel (%p2355) target = $region96
        $region95: #{neural_resnet34_bottleneck_forward.3} parent=87 // pred_region
          %s2358 = sand.u32 %s39, 1
          %s2359 = scalar_lea.sflag [#allocation15], %s2358
          %s2360 = sand.u32 %s214, 1
          %s2361 = smul.addr %s2360, 2
          %s2362 = scalar_lea.vmem [#allocation14], %s2361
          %2363 = dma.done %s2359, 32
        $region96: #{neural_resnet34_bottleneck_forward.3} parent=87 // pred_fallthru
          _
        // Predicated region
        $region97: #{neural_resnet34_bottleneck_forward.3} parent=87 // pred_check
          %p2364 = pneg %p255
        $region98: #{neural_resnet34_bottleneck_forward.3} parent=87 // pred_check_branch
          %2366 = sbr.rel (%p2364) target = $region100
        $region99: #{neural_resnet34_bottleneck_forward.3} parent=87 // pred_region
          %s2367 = sand.u32 %s39, 1
          %s2368 = scalar_lea.sflag [#allocation15], %s2367
          %s2369 = sand.u32 %s240, 1
          %s2370 = smul.addr %s2369, 2
          %s2371 = scalar_lea.vmem [#allocation16], %s2370
          %2372 = dma.done %s2368, 32
        $region100: #{neural_resnet34_bottleneck_forward.3} parent=87 // pred_fallthru
          _
        // Predicated region
        $region101: #{neural_resnet34_bottleneck_forward.3} parent=87 // pred_check
          %p2373 = pneg %p281
        $region102: #{neural_resnet34_bottleneck_forward.3} parent=87 // pred_check_branch
          %2375 = sbr.rel (%p2373) target = $region104
        $region103: #{neural_resnet34_bottleneck_forward.3} parent=87 // pred_region
          %s2376 = sand.u32 %s266, 1
          %s2377 = scalar_lea.sflag [#allocation18], %s2376
          %s2378 = sand.u32 %s266, 1
          %s2379 = smul.addr %s2378, 2
          %s2380 = scalar_lea.vmem [#allocation17], %s2379
          %2381 = dma.done %s2377, 32
        $region104: #{neural_resnet34_bottleneck_forward.3} parent=87 // pred_fallthru
          _
      $region88: #{neural_resnet34_bottleneck_forward.3} parent=5 // pred_fallthru
        _
    $region6: #{neural_resnet34_bottleneck_forward.3} parent=1 // loop_footer
      %s37 = sadd.s32 1, %s33
    $region7: #{neural_resnet34_bottleneck_forward.3} parent=1 // loop_footer_branch
      %32 = sbr.rel target = $region3
    $region8: #{neural_resnet34_bottleneck_forward.3} parent=1 // loop_exit
      _
    %2382 = vsyncpa [#allocation3], 1
    %s2383 = scalar_lea.sflag [#allocation3], 1
    %2384 = vsyncpa %s2383, 1
    %2385 = vsyncpa [#allocation6], 1
    %s2386 = scalar_lea.sflag [#allocation6], 1
    %2387 = vsyncpa %s2386, 1
    %2388 = vsyncpa [#allocation9], 1
    %2389 = vsyncpa [#allocation12], 1
    %2390 = vsyncpa [#allocation4], 1
    %s2391 = scalar_lea.sflag [#allocation4], 1
    %2392 = vsyncpa %s2391, 1
    %2393 = vsyncpa [#allocation15], 1
    %s2394 = scalar_lea.sflag [#allocation15], 1
    %2395 = vsyncpa %s2394, 1
    %2396 = vsyncpa [#allocation18], 1
    %s2397 = scalar_lea.sflag [#allocation18], 1
    %2398 = vsyncpa %s2397, 1

// kernel: neural_resnet34_bottleneck_forward.4
$region0: #{neural_resnet34_bottleneck_forward.4}
  #allocation0 [shape = 'u32[]', space=smem, size = 0x4, offset = 0x4, fixed_abs, tag = 'smem constant byte address 0x4 - core index']
  #allocation1 [shape = 'u32[144,128]{1,0:T(1,128)}', space=vmem, size = 0x12000, scoped, tag = 'internal scratch']
  #allocation2 [shape = 'f32[10,10,128]{2,1,0:T(8,128)}', space=vmem, size = 0x14000, scoped, tag = 'scratch operand']
  %s0 = inlined_call_operand.hbm [shape: f32[2,8,8,128], index: 0, kind: input, shape index: {}]
  %s1 = inlined_call_operand.hbm [shape: bf16[9,128,128], index: 1, kind: input, shape index: {}]
  %s2 = inlined_call_operand.hbm [shape: f32[2,128], index: 2, kind: input, shape index: {}]
  %s3 = inlined_call_operand.hbm [shape: f32[2,64,128], index: 3, kind: output, shape index: {0}]
  %s4 = inlined_call_operand.hbm [shape: f32[2,2,128], index: 4, kind: output, shape index: {1}]
  %5 = xla_tuple %s3, %s4
  %s6 = sld [smem:[#allocation0]]
  $region65: #{neural_resnet34_bottleneck_forward.4} parent=0
    _
  %s8 = ssub.s32 1, %s6
  %s9 = scalar_select 0, %s8, %s6
  $region1: #{neural_resnet34_bottleneck_forward.4} parent=0
    #allocation3 [shape = 'u8[65536]{0}', space=vmem, size = 0x10000, scoped, tag = 'input window, operand 0']
    #allocation4 [shape = 's32[2]{0}', space=sflag, size = 0x8, scoped, tag = 'scoped memory for neural_resnet34_bottleneck_forward.4']
    #allocation5 [shape = 's32[2]{0}', space=sflag, size = 0x8, scoped, tag = 'scoped memory for neural_resnet34_bottleneck_forward.4']
    #allocation6 [shape = 'u8[294912]{0}', space=vmem, size = 0x48000, scoped, tag = 'input window, operand 1, single buffered']
    #allocation7 [shape = 's32[1]{0}', space=sflag, size = 0x4, scoped, tag = 'scoped memory for neural_resnet34_bottleneck_forward.4']
    #allocation8 [shape = 'u8[1024]{0}', space=vmem, size = 0x400, scoped, tag = 'input window, operand 2, single buffered']
    #allocation9 [shape = 'u8[65536]{0}', space=vmem, size = 0x10000, scoped, tag = 'output window, operand 0']
    #allocation10 [shape = 'u8[2048]{0}', space=vmem, size = 0x800, scoped, tag = 'output window, operand 1']
    #allocation11 [shape = 's32[2]{0}', space=sflag, size = 0x8, scoped, tag = 'scoped memory for neural_resnet34_bottleneck_forward.4']
    %10 = vsyncpa [#allocation4], 0
    %s11 = scalar_lea.sflag [#allocation4], 1
    %12 = vsyncpa %s11, 0
    %13 = vsyncpa [#allocation7], 0
    %14 = vsyncpa [#allocation5], 0
    %s15 = scalar_lea.sflag [#allocation5], 1
    %16 = vsyncpa %s15, 0
    %17 = vsyncpa [#allocation11], 0
    %s18 = scalar_lea.sflag [#allocation11], 1
    %19 = vsyncpa %s18, 0
    loop: start=0, step=1, limit=4
    $region2: #{neural_resnet34_bottleneck_forward.4} parent=1 // loop_pre_header
      _
    $region3: #{neural_resnet34_bottleneck_forward.4} parent=1 // loop_header
      %s21 = sphi 0, %s25
      %p22 = scmp.ge.s32.totalorder %s21, 4
      %s31 = sphi 0, %s33
      %s34 = sphi 0, %s31
      %s35 = sphi 0, %s34
      %s51 = sphi 0, %s35
      %s55 = sphi 0, %s55
      %s57 = sphi 0, %s55
      %s58 = sphi 0, %s57
      %s72 = sphi 0, %s58
      %s76 = sphi 0, %s76
      %s78 = sphi 0, %s76
      %s79 = sphi 0, %s78
      %s93 = sphi 0, %s79
      %s99 = sphi 0, %s101
      %s102 = sphi 0, %s99
      %s103 = sphi 0, %s102
      %s119 = sphi 0, %s103
      %s125 = sphi 0, %s127
      %s128 = sphi 0, %s125
      %s129 = sphi 0, %s128
      %s145 = sphi 0, %s129
    $region4: #{neural_resnet34_bottleneck_forward.4} parent=1 // loop_header_branch
      %24 = sbr.rel (%p22) target = $region8
    $region5: #{neural_resnet34_bottleneck_forward.4} parent=1 // loop_body
      %s26 = ssub.s32 %s21, 1
      %s27 = ssub.s32 %s21, 2
      %s28 = sadd.s32 %s21, 1
      %s29 = ssub.s32 %s21, %s28
      %p30 = scmp.eq.s32.totalorder %s29, 0
      %s32 = sadd.s32 %s31, 1
      %s33 = scalar_select %p30, %s31, %s32
      %p36 = pneg %p30
      %p37 = scmp.eq.s32.totalorder %s21, 1
      %p38 = por %p36, %p37
      %p39 = scmp.ne.s32.totalorder %s31, %s34
      %p40 = scmp.eq.s32.totalorder %s21, 0
      %p41 = por %p39, %p40
      %p42 = scmp.ne.s32.totalorder %s31, %s34
      %p43 = scmp.eq.s32.totalorder %s26, 1
      %p44 = por %p42, %p43
      %p45 = scmp.ne.s32.totalorder %s34, %s35
      %p46 = scmp.eq.s32.totalorder %s26, 0
      %p47 = por %p45, %p46
      %p48 = scmp.ne.s32.totalorder %s34, %s35
      %p49 = scmp.eq.s32.totalorder %s27, 1
      %p50 = por %p48, %p49
      %p52 = scmp.ne.s32.totalorder %s35, %s51
      %p53 = scmp.eq.s32.totalorder %s27, 0
      %p54 = por %p52, %p53
      %s56 = sadd.s32 %s55, 1
      %p59 = scmp.eq.s32.totalorder %s21, 1
      %p60 = scmp.ne.s32.totalorder %s55, %s57
      %p61 = scmp.eq.s32.totalorder %s21, 0
      %p62 = por %p60, %p61
      %p63 = scmp.ne.s32.totalorder %s55, %s57
      %p64 = scmp.eq.s32.totalorder %s26, 1
      %p65 = por %p63, %p64
      %p66 = scmp.ne.s32.totalorder %s57, %s58
      %p67 = scmp.eq.s32.totalorder %s26, 0
      %p68 = por %p66, %p67
      %p69 = scmp.ne.s32.totalorder %s57, %s58
      %p70 = scmp.eq.s32.totalorder %s27, 1
      %p71 = por %p69, %p70
      %p73 = scmp.ne.s32.totalorder %s58, %s72
      %p74 = scmp.eq.s32.totalorder %s27, 0
      %p75 = por %p73, %p74
      %s77 = sadd.s32 %s76, 1
      %p80 = scmp.eq.s32.totalorder %s21, 1
      %p81 = scmp.ne.s32.totalorder %s76, %s78
      %p82 = scmp.eq.s32.totalorder %s21, 0
      %p83 = por %p81, %p82
      %p84 = scmp.ne.s32.totalorder %s76, %s78
      %p85 = scmp.eq.s32.totalorder %s26, 1
      %p86 = por %p84, %p85
      %p87 = scmp.ne.s32.totalorder %s78, %s79
      %p88 = scmp.eq.s32.totalorder %s26, 0
      %p89 = por %p87, %p88
      %p90 = scmp.ne.s32.totalorder %s78, %s79
      %p91 = scmp.eq.s32.totalorder %s27, 1
      %p92 = por %p90, %p91
      %p94 = scmp.ne.s32.totalorder %s79, %s93
      %p95 = scmp.eq.s32.totalorder %s27, 0
      %p96 = por %p94, %p95
      %s97 = ssub.s32 %s21, %s28
      %p98 = scmp.eq.s32.totalorder %s97, 0
      %s100 = sadd.s32 %s99, 1
      %s101 = scalar_select %p98, %s99, %s100
      %p104 = pneg %p98
      %p105 = scmp.eq.s32.totalorder %s21, 1
      %p106 = por %p104, %p105
      %p107 = scmp.ne.s32.totalorder %s99, %s102
      %p108 = scmp.eq.s32.totalorder %s21, 0
      %p109 = por %p107, %p108
      %p110 = scmp.ne.s32.totalorder %s99, %s102
      %p111 = scmp.eq.s32.totalorder %s26, 1
      %p112 = por %p110, %p111
      %p113 = scmp.ne.s32.totalorder %s102, %s103
      %p114 = scmp.eq.s32.totalorder %s26, 0
      %p115 = por %p113, %p114
      %p116 = scmp.ne.s32.totalorder %s102, %s103
      %p117 = scmp.eq.s32.totalorder %s27, 1
      %p118 = por %p116, %p117
      %p120 = scmp.ne.s32.totalorder %s103, %s119
      %p121 = scmp.eq.s32.totalorder %s27, 0
      %p122 = por %p120, %p121
      %s123 = ssub.s32 %s21, %s28
      %p124 = scmp.eq.s32.totalorder %s123, 0
      %s126 = sadd.s32 %s125, 1
      %s127 = scalar_select %p124, %s125, %s126
      %p130 = pneg %p124
      %p131 = scmp.eq.s32.totalorder %s21, 1
      %p132 = por %p130, %p131
      %p133 = scmp.ne.s32.totalorder %s125, %s128
      %p134 = scmp.eq.s32.totalorder %s21, 0
      %p135 = por %p133, %p134
      %p136 = scmp.ne.s32.totalorder %s125, %s128
      %p137 = scmp.eq.s32.totalorder %s26, 1
      %p138 = por %p136, %p137
      %p139 = scmp.ne.s32.totalorder %s128, %s129
      %p140 = scmp.eq.s32.totalorder %s26, 0
      %p141 = por %p139, %p140
      %p142 = scmp.ne.s32.totalorder %s128, %s129
      %p143 = scmp.eq.s32.totalorder %s27, 1
      %p144 = por %p142, %p143
      %p146 = scmp.ne.s32.totalorder %s129, %s145
      %p147 = scmp.eq.s32.totalorder %s27, 0
      %p148 = por %p146, %p147
      %p149 = scmp.le.s32.totalorder 1, %s21
      %p150 = scmp.lt.s32.totalorder %s21, 3
      %p151 = pnand %p149, %p150
      %p152 = pneg %p151
      // Predicated region
      $region9: #{neural_resnet34_bottleneck_forward.4} parent=5 // pred_check
        _
      $region10: #{neural_resnet34_bottleneck_forward.4} parent=5 // pred_check_branch
        %154 = sbr.rel (%p151) target = $region12
      $region11: #{neural_resnet34_bottleneck_forward.4} parent=5 // pred_region
        %s155 = ssub.s32 %s21, 1
        // Predicated region
        $region13: #{neural_resnet34_bottleneck_forward.4} parent=11 // pred_check
          %p156 = pneg %p68
        $region14: #{neural_resnet34_bottleneck_forward.4} parent=11 // pred_check_branch
          %158 = sbr.rel (%p156) target = $region16
        $region15: #{neural_resnet34_bottleneck_forward.4} parent=11 // pred_region
          %s160 = ssub.s32 9216, 9216
          %161 = vsyncadd [#allocation7], %s160
          %s162 = sshll.u32 [#allocation6], 4
          %s163 = int_to_ptr.vmem [resolvable:$true] %s162
          %168 = dma.hbm_to_vmem [thread:$0]  %s1, 9216, %s163, [#allocation7], 64, 64, 4
        $region16: #{neural_resnet34_bottleneck_forward.4} parent=11 // pred_fallthru
          _
        // Predicated region
        $region17: #{neural_resnet34_bottleneck_forward.4} parent=11 // pred_check
          %p169 = pneg %p89
        $region18: #{neural_resnet34_bottleneck_forward.4} parent=11 // pred_check_branch
          %171 = sbr.rel (%p169) target = $region20
        $region19: #{neural_resnet34_bottleneck_forward.4} parent=11 // pred_region
          %s173 = ssub.s32 32, 32
          %174 = vsyncadd [#allocation7], %s173
          %s176 = sshll.u32 [#allocation8], 4
          %s177 = int_to_ptr.vmem [resolvable:$true] %s176
          %179 = dma.hbm_to_vmem [thread:$0]  %s2, 32, %s177, [#allocation7]
        $region20: #{neural_resnet34_bottleneck_forward.4} parent=11 // pred_fallthru
          _
      $region12: #{neural_resnet34_bottleneck_forward.4} parent=5 // pred_fallthru
        _
      %p180 = scmp.lt.s32.totalorder %s21, 2
      // Predicated region
      $region21: #{neural_resnet34_bottleneck_forward.4} parent=5 // pred_check
        %p181 = pneg %p180
      $region22: #{neural_resnet34_bottleneck_forward.4} parent=5 // pred_check_branch
        %183 = sbr.rel (%p181) target = $region24
      $region23: #{neural_resnet34_bottleneck_forward.4} parent=5 // pred_region
        // Predicated region
        $region25: #{neural_resnet34_bottleneck_forward.4} parent=23 // pred_check
          %p184 = pneg %p41
        $region26: #{neural_resnet34_bottleneck_forward.4} parent=23 // pred_check_branch
          %186 = sbr.rel (%p184) target = $region28
        $region27: #{neural_resnet34_bottleneck_forward.4} parent=23 // pred_region
          %s187 = sand.u32 %s31, 1
          %s188 = scalar_lea.sflag [#allocation4], %s187
          %s189 = sand.u32 %s31, 1
          %s190 = smul.addr %s189, 64
          %s191 = scalar_lea.vmem [#allocation3], %s190
          %s193 = ssub.s32 1024, 1024
          %194 = vsyncadd %s188, %s193
          %s195 = smul.addr %s21, 8
          %s196 = smul.addr %s195, 128
          %s197 = scalar_lea.hbm %s0, %s196
          %s198 = sshll.u32 %s191, 4
          %s199 = int_to_ptr.vmem [resolvable:$true] %s198
          %204 = dma.hbm_to_vmem [thread:$0]  %s197, 1024, %s199, %s188, 128, 128, 8
        $region28: #{neural_resnet34_bottleneck_forward.4} parent=23 // pred_fallthru
          _
      $region24: #{neural_resnet34_bottleneck_forward.4} parent=5 // pred_fallthru
        _
      %p205 = scmp.le.s32.totalorder 1, %s21
      %p206 = scmp.lt.s32.totalorder %s21, 3
      %p207 = pnand %p205, %p206
      %p208 = pneg %p207
      // Predicated region
      $region29: #{neural_resnet34_bottleneck_forward.4} parent=5 // pred_check
        _
      $region30: #{neural_resnet34_bottleneck_forward.4} parent=5 // pred_check_branch
        %210 = sbr.rel (%p207) target = $region32
      $region31: #{neural_resnet34_bottleneck_forward.4} parent=5 // pred_region
        %s211 = ssub.s32 %s21, 1
        %s212 = sand.u32 %s34, 1
        %s213 = scalar_lea.sflag [#allocation4], %s212
        %s214 = sand.u32 %s34, 1
        %s215 = smul.addr %s214, 64
        %s216 = scalar_lea.vmem [#allocation3], %s215
        // Predicated region
        $region33: #{neural_resnet34_bottleneck_forward.4} parent=31 // pred_check
          %p217 = pneg %p47
        $region34: #{neural_resnet34_bottleneck_forward.4} parent=31 // pred_check_branch
          %219 = sbr.rel (%p217) target = $region36
        $region35: #{neural_resnet34_bottleneck_forward.4} parent=31 // pred_region
          %220 = dma.done %s213, 1024
        $region36: #{neural_resnet34_bottleneck_forward.4} parent=31 // pred_fallthru
          _
        // Predicated region
        $region37: #{neural_resnet34_bottleneck_forward.4} parent=31 // pred_check
          %p221 = pneg %p68
        $region38: #{neural_resnet34_bottleneck_forward.4} parent=31 // pred_check_branch
          %223 = sbr.rel (%p221) target = $region40
        $region39: #{neural_resnet34_bottleneck_forward.4} parent=31 // pred_region
          %224 = dma.done [#allocation7], 9216
        $region40: #{neural_resnet34_bottleneck_forward.4} parent=31 // pred_fallthru
          _
        // Predicated region
        $region41: #{neural_resnet34_bottleneck_forward.4} parent=31 // pred_check
          %p225 = pneg %p89
        $region42: #{neural_resnet34_bottleneck_forward.4} parent=31 // pred_check_branch
          %227 = sbr.rel (%p225) target = $region44
        $region43: #{neural_resnet34_bottleneck_forward.4} parent=31 // pred_region
          %228 = dma.done [#allocation7], 32
        $region44: #{neural_resnet34_bottleneck_forward.4} parent=31 // pred_fallthru
          _
        %s229 = sand.u32 %s34, 1
        %s230 = scalar_lea.sflag [#allocation4], %s229
        %s231 = sand.u32 %s34, 1
        %s232 = smul.addr %s231, 64
        %s233 = scalar_lea.vmem [#allocation3], %s232
        %p234 = pneg %p47
        %p235 = pneg %p44
        %p236 = pneg %p68
        %p237 = pneg %p65
        %p238 = pneg %p89
        %p239 = pneg %p86
        %p240 = pneg %p115
        %p241 = pneg %p112
        %s242 = sand.u32 %s102, 1
        %s243 = scalar_lea.sflag [#allocation5], %s242
        %s244 = sand.u32 %s102, 1
        %s245 = smul.addr %s244, 64
        %s246 = scalar_lea.vmem [#allocation9], %s245
        %p247 = pneg %p141
        %p248 = pneg %p138
        %s249 = sand.u32 %s128, 1
        %s250 = scalar_lea.sflag [#allocation11], %s249
        %s251 = sand.u32 %s128, 1
        %s252 = smul.addr %s251, 2
        %s253 = scalar_lea.vmem [#allocation10], %s252
        %v255 = vld [vmem:[%s216] sm:$0xff]
        %v256 = vld [vmem:[%s216 + $0x8] sm:$0xff]
        %v257 = vld [vmem:[%s216 + $0x10] sm:$0xff]
        %v258 = vld [vmem:[%s216 + $0x18] sm:$0xff]
        %v259 = vld [vmem:[%s216 + $0x20] sm:$0xff]
        %v260 = vld [vmem:[%s216 + $0x28] sm:$0xff]
        %v261 = vld [vmem:[%s216 + $0x30] sm:$0xff]
        %v262 = vld [vmem:[%s216 + $0x38] sm:$0xff]
        %v263 = vld [vmem:[#allocation8] sm:$0x1]
        %v264 = vlaneseq
        %v265 = vshrl.u32 %v264, 7
        %v266 = vsub.s32 0, %v265
        %v267 = vrot.slane %v263, %v266
        %v268 = vmul.f32 %v255, %v267
        %v269 = vmul.f32 %v256, %v267
        %v270 = vmul.f32 %v257, %v267
        %v271 = vmul.f32 %v258, %v267
        %v272 = vmul.f32 %v259, %v267
        %v273 = vmul.f32 %v260, %v267
        %v274 = vmul.f32 %v261, %v267
        %v275 = vmul.f32 %v262, %v267
        %v276 = vld [vmem:[#allocation8 + $0x1] sm:$0x1]
        %v277 = vlaneseq
        %v278 = vshrl.u32 %v277, 7
        %v279 = vsub.s32 0, %v278
        %v280 = vrot.slane %v276, %v279
        %v281 = vadd.f32 %v268, %v280
        %v282 = vadd.f32 %v269, %v280
        %v283 = vadd.f32 %v270, %v280
        %v284 = vadd.f32 %v271, %v280
        %v285 = vadd.f32 %v272, %v280
        %v286 = vadd.f32 %v273, %v280
        %v287 = vadd.f32 %v274, %v280
        %v288 = vadd.f32 %v275, %v280
        %v289 = vmax.f32 %v281, 0.0
        %v290 = vmax.f32 %v282, 0.0
        %v291 = vmax.f32 %v283, 0.0
        %v292 = vmax.f32 %v284, 0.0
        %v293 = vmax.f32 %v285, 0.0
        %v294 = vmax.f32 %v286, 0.0
        %v295 = vmax.f32 %v287, 0.0
        %v296 = vmax.f32 %v288, 0.0
        %297 = vst [vmem:[#allocation2] sm:$0xff] 0.0
        %298 = vst [vmem:[#allocation2 + $0x8] sm:$0x3] 0.0
        %299 = vst [vmem:[#allocation2 + $0x10] sm:$0xff] 0.0
        %300 = vst [vmem:[#allocation2 + $0x18] sm:$0x3] 0.0
        %301 = vst [vmem:[#allocation2 + $0x20] sm:$0xff] 0.0
        %302 = vst [vmem:[#allocation2 + $0x28] sm:$0x3] 0.0
        %303 = vst [vmem:[#allocation2 + $0x30] sm:$0xff] 0.0
        %304 = vst [vmem:[#allocation2 + $0x38] sm:$0x3] 0.0
        %305 = vst [vmem:[#allocation2 + $0x40] sm:$0xff] 0.0
        %306 = vst [vmem:[#allocation2 + $0x48] sm:$0x3] 0.0
        %307 = vst [vmem:[#allocation2 + $0x50] sm:$0xff] 0.0
        %308 = vst [vmem:[#allocation2 + $0x58] sm:$0x3] 0.0
        %309 = vst [vmem:[#allocation2 + $0x60] sm:$0xff] 0.0
        %310 = vst [vmem:[#allocation2 + $0x68] sm:$0x3] 0.0
        %311 = vst [vmem:[#allocation2 + $0x70] sm:$0xff] 0.0
        %312 = vst [vmem:[#allocation2 + $0x78] sm:$0x3] 0.0
        %313 = vst [vmem:[#allocation2 + $0x80] sm:$0xff] 0.0
        %314 = vst [vmem:[#allocation2 + $0x88] sm:$0x3] 0.0
        %315 = vst [vmem:[#allocation2 + $0x90] sm:$0xff] 0.0
        %316 = vst [vmem:[#allocation2 + $0x98] sm:$0x3] 0.0
        %s317 = scalar_lea.vmem [#allocation2], 16
        %318 = vst [vmem:[%s317 + $0x1] sm:$0xff] %v289
        %319 = vst [vmem:[%s317 + $0x11] sm:$0xff] %v290
        %320 = vst [vmem:[%s317 + $0x21] sm:$0xff] %v291
        %321 = vst [vmem:[%s317 + $0x31] sm:$0xff] %v292
        %322 = vst [vmem:[%s317 + $0x41] sm:$0xff] %v293
        %323 = vst [vmem:[%s317 + $0x51] sm:$0xff] %v294
        %324 = vst [vmem:[%s317 + $0x61] sm:$0xff] %v295
        %325 = vst [vmem:[%s317 + $0x71] sm:$0xff] %v296
        %v326 = vld [vmem:[#allocation2] sm:$0xff]
        %v327 = vld [vmem:[#allocation2 + $0x10] sm:$0xff]
        %v328 = vld [vmem:[#allocation2 + $0x20] sm:$0xff]
        %v329 = vld [vmem:[#allocation2 + $0x30] sm:$0xff]
        %v330 = vld [vmem:[#allocation2 + $0x40] sm:$0xff]
        %v331 = vld [vmem:[#allocation2 + $0x50] sm:$0xff]
        %v332 = vld [vmem:[#allocation2 + $0x60] sm:$0xff]
        %v333 = vld [vmem:[#allocation2 + $0x70] sm:$0xff]
        %v334 = vpack.c.bf16 %v327, %v326
        %v335 = vpack.c.bf16 %v329, %v328
        %v336 = vpack.c.bf16 %v331, %v330
        %v337 = vpack.c.bf16 %v333, %v332
        %v338 = vld [vmem:[#allocation6] sm:$0xf]
        %v339 = vld [vmem:[#allocation6 + $0x4] sm:$0xf]
        %v340 = vld [vmem:[#allocation6 + $0x8] sm:$0xf]
        %v341 = vld [vmem:[#allocation6 + $0xc] sm:$0xf]
        %v342 = vld [vmem:[#allocation6 + $0x10] sm:$0xf]
        %v343 = vld [vmem:[#allocation6 + $0x14] sm:$0xf]
        %v344 = vld [vmem:[#allocation6 + $0x18] sm:$0xf]
        %v345 = vld [vmem:[#allocation6 + $0x1c] sm:$0xf]
        %v346 = vld [vmem:[#allocation6 + $0x20] sm:$0xf]
        %v347 = vld [vmem:[#allocation6 + $0x24] sm:$0xf]
        %v348 = vld [vmem:[#allocation6 + $0x28] sm:$0xf]
        %v349 = vld [vmem:[#allocation6 + $0x2c] sm:$0xf]
        %v350 = vld [vmem:[#allocation6 + $0x30] sm:$0xf]
        %v351 = vld [vmem:[#allocation6 + $0x34] sm:$0xf]
        %v352 = vld [vmem:[#allocation6 + $0x38] sm:$0xf]
        %v353 = vld [vmem:[#allocation6 + $0x3c] sm:$0xf]
        %v354 = vld [vmem:[#allocation2 + $0x1] sm:$0xff]
        %v355 = vld [vmem:[#allocation2 + $0x11] sm:$0xff]
        %v356 = vld [vmem:[#allocation2 + $0x21] sm:$0xff]
        %v357 = vld [vmem:[#allocation2 + $0x31] sm:$0xff]
        %v358 = vld [vmem:[#allocation2 + $0x41] sm:$0xff]
        %v359 = vld [vmem:[#allocation2 + $0x51] sm:$0xff]
        %v360 = vld [vmem:[#allocation2 + $0x61] sm:$0xff]
        %v361 = vld [vmem:[#allocation2 + $0x71] sm:$0xff]
        %v362 = vpack.c.bf16 %v355, %v354
        %v363 = vpack.c.bf16 %v357, %v356
        %v364 = vpack.c.bf16 %v359, %v358
        %v365 = vpack.c.bf16 %v361, %v360
        %s366 = scalar_lea.vmem [#allocation6], 64
        %v367 = vld [vmem:[%s366] sm:$0xf]
        %v368 = vld [vmem:[%s366 + $0x4] sm:$0xf]
        %v369 = vld [vmem:[%s366 + $0x8] sm:$0xf]
        %v370 = vld [vmem:[%s366 + $0xc] sm:$0xf]
        %v371 = vld [vmem:[%s366 + $0x10] sm:$0xf]
        %v372 = vld [vmem:[%s366 + $0x14] sm:$0xf]
        %v373 = vld [vmem:[%s366 + $0x18] sm:$0xf]
        %v374 = vld [vmem:[%s366 + $0x1c] sm:$0xf]
        %v375 = vld [vmem:[%s366 + $0x20] sm:$0xf]
        %v376 = vld [vmem:[%s366 + $0x24] sm:$0xf]
        %v377 = vld [vmem:[%s366 + $0x28] sm:$0xf]
        %v378 = vld [vmem:[%s366 + $0x2c] sm:$0xf]
        %v379 = vld [vmem:[%s366 + $0x30] sm:$0xf]
        %v380 = vld [vmem:[%s366 + $0x34] sm:$0xf]
        %v381 = vld [vmem:[%s366 + $0x38] sm:$0xf]
        %v382 = vld [vmem:[%s366 + $0x3c] sm:$0xf]
        %v399 = vunpack.c.l.b16 %v367
        %v400 = vunpack.c.l.b16 %v368
        %v401 = vunpack.c.l.b16 %v369
        %v402 = vunpack.c.l.b16 %v370
        %v403 = vunpack.c.l.b16 %v371
        %v404 = vunpack.c.l.b16 %v372
        %v405 = vunpack.c.l.b16 %v373
        %v406 = vunpack.c.l.b16 %v374
        %v407 = vunpack.c.l.b16 %v375
        %v408 = vunpack.c.l.b16 %v376
        %v409 = vunpack.c.l.b16 %v377
        %v410 = vunpack.c.l.b16 %v378
        %v411 = vunpack.c.l.b16 %v379
        %v412 = vunpack.c.l.b16 %v380
        %v413 = vunpack.c.l.b16 %v381
        %v414 = vunpack.c.l.b16 %v382
        %v415 = vpack.c.b16 %v400, %v399
        %v416 = vpack.c.b16 %v402, %v401
        %v417 = vpack.c.b16 %v404, %v403
        %v418 = vpack.c.b16 %v406, %v405
        %v419 = vpack.c.b16 %v408, %v407
        %v420 = vpack.c.b16 %v410, %v409
        %v421 = vpack.c.b16 %v412, %v411
        %v422 = vpack.c.b16 %v414, %v413
        %431 = vmatprep.subr.bf16.mxu0 0
        %432 = vmatpush1.bf16.msra.mxu0 %v415
        %433 = vmatprep.subr.bf16.mxu0 0
        %434 = vmatpush1.bf16.msra.mxu0 %v416
        %435 = vmatprep.subr.bf16.mxu0 0
        %436 = vmatpush1.bf16.msra.mxu0 %v417
        %437 = vmatprep.subr.bf16.mxu0 0
        %438 = vmatpush1.bf16.msra.mxu0 %v418
        %439 = vmatprep.subr.bf16.mxu0 0
        %440 = vmatpush1.bf16.msra.mxu0 %v419
        %441 = vmatprep.subr.bf16.mxu0 0
        %442 = vmatpush1.bf16.msra.mxu0 %v420
        %443 = vmatprep.subr.bf16.mxu0 0
        %444 = vmatpush1.bf16.msra.mxu0 %v421
        %445 = vmatprep.subr.bf16.mxu0 0
        %446 = vmatpush1.bf16.msra.mxu0 %v422
        %447 = vmatprep.subr.bf16.mxu0 0
        %448 = vmatpush1.bf16.msra.mxu0 0
        %449 = vmatprep.subr.bf16.mxu0 0
        %450 = vmatpush1.bf16.msra.mxu0 0
        %451 = vmatprep.subr.bf16.mxu0 0
        %452 = vmatpush1.bf16.msra.mxu0 0
        %453 = vmatprep.subr.bf16.mxu0 0
        %454 = vmatpush1.bf16.msra.mxu0 0
        %455 = vmatprep.subr.bf16.mxu0 0
        %456 = vmatpush1.bf16.msra.mxu0 0
        %457 = vmatprep.subr.bf16.mxu0 0
        %458 = vmatpush1.bf16.msra.mxu0 0
        %459 = vmatprep.subr.bf16.mxu0 0
        %460 = vmatpush1.bf16.msra.mxu0 0
        %461 = vmatprep.subr.bf16.mxu0 0
        %462 = vmatpush1.bf16.msra.mxu0 0
        %463 = vmatprep.mubr.bf16.mxu0 0
        %464 = vmatmul.mubr.bf16.gmra.mrb[0].mxu0 %v362
        %v465 = vpop.f32.mrb[0].mxu0
        %v466 = vadd.f32 0.0, %v465
        %v467 = vpop.f32.mrb[0].mxu0
        %v468 = vpop.f32.mrb[0].mxu0
        %v469 = vadd.f32 0.0, %v468
        %v470 = vpop.f32.mrb[0].mxu0
        %471 = vmatprep.mubr.bf16.mxu0 0
        %472 = vmatmul.mubr.bf16.gmra.mrb[0].mxu0 %v363
        %v473 = vpop.f32.mrb[0].mxu0
        %v474 = vadd.f32 0.0, %v473
        %v475 = vpop.f32.mrb[0].mxu0
        %v476 = vpop.f32.mrb[0].mxu0
        %v477 = vadd.f32 0.0, %v476
        %v478 = vpop.f32.mrb[0].mxu0
        %479 = vmatprep.mubr.bf16.mxu0 0
        %480 = vmatmul.mubr.bf16.gmra.mrb[0].mxu0 %v364
        %v481 = vpop.f32.mrb[0].mxu0
        %v482 = vadd.f32 0.0, %v481
        %v483 = vpop.f32.mrb[0].mxu0
        %v484 = vpop.f32.mrb[0].mxu0
        %v485 = vadd.f32 0.0, %v484
        %v486 = vpop.f32.mrb[0].mxu0
        %487 = vmatprep.mubr.bf16.mxu0 0
        %488 = vmatmul.mubr.bf16.gmra.mrb[0].mxu0 %v365
        %v489 = vpop.f32.mrb[0].mxu0
        %v490 = vadd.f32 0.0, %v489
        %v491 = vpop.f32.mrb[0].mxu0
        %v492 = vpop.f32.mrb[0].mxu0
        %v493 = vadd.f32 0.0, %v492
        %v494 = vpop.f32.mrb[0].mxu0
        %495 = vdwg.mxu0
        %v512 = vunpack.c.l.b16 %v338
        %v513 = vunpack.c.l.b16 %v339
        %v514 = vunpack.c.l.b16 %v340
        %v515 = vunpack.c.l.b16 %v341
        %v516 = vunpack.c.l.b16 %v342
        %v517 = vunpack.c.l.b16 %v343
        %v518 = vunpack.c.l.b16 %v344
        %v519 = vunpack.c.l.b16 %v345
        %v520 = vunpack.c.l.b16 %v346
        %v521 = vunpack.c.l.b16 %v347
        %v522 = vunpack.c.l.b16 %v348
        %v523 = vunpack.c.l.b16 %v349
        %v524 = vunpack.c.l.b16 %v350
        %v525 = vunpack.c.l.b16 %v351
        %v526 = vunpack.c.l.b16 %v352
        %v527 = vunpack.c.l.b16 %v353
        %v528 = vpack.c.b16 %v513, %v512
        %v529 = vpack.c.b16 %v515, %v514
        %v530 = vpack.c.b16 %v517, %v516
        %v531 = vpack.c.b16 %v519, %v518
        %v532 = vpack.c.b16 %v521, %v520
        %v533 = vpack.c.b16 %v523, %v522
        %v534 = vpack.c.b16 %v525, %v524
        %v535 = vpack.c.b16 %v527, %v526
        %544 = vmatprep.subr.bf16.mxu0 0
        %545 = vmatpush1.bf16.msra.mxu0 %v528
        %546 = vmatprep.subr.bf16.mxu0 0
        %547 = vmatpush1.bf16.msra.mxu0 %v529
        %548 = vmatprep.subr.bf16.mxu0 0
        %549 = vmatpush1.bf16.msra.mxu0 %v530
        %550 = vmatprep.subr.bf16.mxu0 0
        %551 = vmatpush1.bf16.msra.mxu0 %v531
        %552 = vmatprep.subr.bf16.mxu0 0
        %553 = vmatpush1.bf16.msra.mxu0 %v532
        %554 = vmatprep.subr.bf16.mxu0 0
        %555 = vmatpush1.bf16.msra.mxu0 %v533
        %556 = vmatprep.subr.bf16.mxu0 0
        %557 = vmatpush1.bf16.msra.mxu0 %v534
        %558 = vmatprep.subr.bf16.mxu0 0
        %559 = vmatpush1.bf16.msra.mxu0 %v535
        %560 = vmatprep.subr.bf16.mxu0 0
        %561 = vmatpush1.bf16.msra.mxu0 0
        %562 = vmatprep.subr.bf16.mxu0 0
        %563 = vmatpush1.bf16.msra.mxu0 0
        %564 = vmatprep.subr.bf16.mxu0 0
        %565 = vmatpush1.bf16.msra.mxu0 0
        %566 = vmatprep.subr.bf16.mxu0 0
        %567 = vmatpush1.bf16.msra.mxu0 0
        %568 = vmatprep.subr.bf16.mxu0 0
        %569 = vmatpush1.bf16.msra.mxu0 0
        %570 = vmatprep.subr.bf16.mxu0 0
        %571 = vmatpush1.bf16.msra.mxu0 0
        %572 = vmatprep.subr.bf16.mxu0 0
        %573 = vmatpush1.bf16.msra.mxu0 0
        %574 = vmatprep.subr.bf16.mxu0 0
        %575 = vmatpush1.bf16.msra.mxu0 0
        %576 = vmatprep.mubr.bf16.mxu0 0
        %577 = vmatmul.mubr.bf16.gmra.mrb[0].mxu0 %v334
        %v578 = vpop.f32.mrb[0].mxu0
        %v579 = vadd.f32 %v466, %v578
        %v580 = vpop.f32.mrb[0].mxu0
        %v581 = vpop.f32.mrb[0].mxu0
        %v582 = vadd.f32 %v469, %v581
        %v583 = vpop.f32.mrb[0].mxu0
        %584 = vmatprep.mubr.bf16.mxu0 0
        %585 = vmatmul.mubr.bf16.gmra.mrb[0].mxu0 %v335
        %v586 = vpop.f32.mrb[0].mxu0
        %v587 = vadd.f32 %v474, %v586
        %v588 = vpop.f32.mrb[0].mxu0
        %v589 = vpop.f32.mrb[0].mxu0
        %v590 = vadd.f32 %v477, %v589
        %v591 = vpop.f32.mrb[0].mxu0
        %592 = vmatprep.mubr.bf16.mxu0 0
        %593 = vmatmul.mubr.bf16.gmra.mrb[0].mxu0 %v336
        %v594 = vpop.f32.mrb[0].mxu0
        %v595 = vadd.f32 %v482, %v594
        %v596 = vpop.f32.mrb[0].mxu0
        %v597 = vpop.f32.mrb[0].mxu0
        %v598 = vadd.f32 %v485, %v597
        %v599 = vpop.f32.mrb[0].mxu0
        %600 = vmatprep.mubr.bf16.mxu0 0
        %601 = vmatmul.mubr.bf16.gmra.mrb[0].mxu0 %v337
        %v602 = vpop.f32.mrb[0].mxu0
        %v603 = vadd.f32 %v490, %v602
        %v604 = vpop.f32.mrb[0].mxu0
        %v605 = vpop.f32.mrb[0].mxu0
        %v606 = vadd.f32 %v493, %v605
        %v607 = vpop.f32.mrb[0].mxu0
        %608 = vdwg.mxu0
        %v609 = vld [vmem:[#allocation2 + $0x2] sm:$0xff]
        %v610 = vld [vmem:[#allocation2 + $0x12] sm:$0xff]
        %v611 = vld [vmem:[#allocation2 + $0x22] sm:$0xff]
        %v612 = vld [vmem:[#allocation2 + $0x32] sm:$0xff]
        %v613 = vld [vmem:[#allocation2 + $0x42] sm:$0xff]
        %v614 = vld [vmem:[#allocation2 + $0x52] sm:$0xff]
        %v615 = vld [vmem:[#allocation2 + $0x62] sm:$0xff]
        %v616 = vld [vmem:[#allocation2 + $0x72] sm:$0xff]
        %v617 = vpack.c.bf16 %v610, %v609
        %v618 = vpack.c.bf16 %v612, %v611
        %v619 = vpack.c.bf16 %v614, %v613
        %v620 = vpack.c.bf16 %v616, %v615
        %s621 = scalar_lea.vmem [#allocation6], 128
        %v622 = vld [vmem:[%s621] sm:$0xf]
        %v623 = vld [vmem:[%s621 + $0x4] sm:$0xf]
        %v624 = vld [vmem:[%s621 + $0x8] sm:$0xf]
        %v625 = vld [vmem:[%s621 + $0xc] sm:$0xf]
        %v626 = vld [vmem:[%s621 + $0x10] sm:$0xf]
        %v627 = vld [vmem:[%s621 + $0x14] sm:$0xf]
        %v628 = vld [vmem:[%s621 + $0x18] sm:$0xf]
        %v629 = vld [vmem:[%s621 + $0x1c] sm:$0xf]
        %v630 = vld [vmem:[%s621 + $0x20] sm:$0xf]
        %v631 = vld [vmem:[%s621 + $0x24] sm:$0xf]
        %v632 = vld [vmem:[%s621 + $0x28] sm:$0xf]
        %v633 = vld [vmem:[%s621 + $0x2c] sm:$0xf]
        %v634 = vld [vmem:[%s621 + $0x30] sm:$0xf]
        %v635 = vld [vmem:[%s621 + $0x34] sm:$0xf]
        %v636 = vld [vmem:[%s621 + $0x38] sm:$0xf]
        %v637 = vld [vmem:[%s621 + $0x3c] sm:$0xf]
        %v654 = vunpack.c.l.b16 %v622
        %v655 = vunpack.c.l.b16 %v623
        %v656 = vunpack.c.l.b16 %v624
        %v657 = vunpack.c.l.b16 %v625
        %v658 = vunpack.c.l.b16 %v626
        %v659 = vunpack.c.l.b16 %v627
        %v660 = vunpack.c.l.b16 %v628
        %v661 = vunpack.c.l.b16 %v629
        %v662 = vunpack.c.l.b16 %v630
        %v663 = vunpack.c.l.b16 %v631
        %v664 = vunpack.c.l.b16 %v632
        %v665 = vunpack.c.l.b16 %v633
        %v666 = vunpack.c.l.b16 %v634
        %v667 = vunpack.c.l.b16 %v635
        %v668 = vunpack.c.l.b16 %v636
        %v669 = vunpack.c.l.b16 %v637
        %v670 = vpack.c.b16 %v655, %v654
        %v671 = vpack.c.b16 %v657, %v656
        %v672 = vpack.c.b16 %v659, %v658
        %v673 = vpack.c.b16 %v661, %v660
        %v674 = vpack.c.b16 %v663, %v662
        %v675 = vpack.c.b16 %v665, %v664
        %v676 = vpack.c.b16 %v667, %v666
        %v677 = vpack.c.b16 %v669, %v668
        %686 = vmatprep.subr.bf16.mxu0 0
        %687 = vmatpush1.bf16.msra.mxu0 %v670
        %688 = vmatprep.subr.bf16.mxu0 0
        %689 = vmatpush1.bf16.msra.mxu0 %v671
        %690 = vmatprep.subr.bf16.mxu0 0
        %691 = vmatpush1.bf16.msra.mxu0 %v672
        %692 = vmatprep.subr.bf16.mxu0 0
        %693 = vmatpush1.bf16.msra.mxu0 %v673
        %694 = vmatprep.subr.bf16.mxu0 0
        %695 = vmatpush1.bf16.msra.mxu0 %v674
        %696 = vmatprep.subr.bf16.mxu0 0
        %697 = vmatpush1.bf16.msra.mxu0 %v675
        %698 = vmatprep.subr.bf16.mxu0 0
        %699 = vmatpush1.bf16.msra.mxu0 %v676
        %700 = vmatprep.subr.bf16.mxu0 0
        %701 = vmatpush1.bf16.msra.mxu0 %v677
        %702 = vmatprep.subr.bf16.mxu0 0
        %703 = vmatpush1.bf16.msra.mxu0 0
        %704 = vmatprep.subr.bf16.mxu0 0
        %705 = vmatpush1.bf16.msra.mxu0 0
        %706 = vmatprep.subr.bf16.mxu0 0
        %707 = vmatpush1.bf16.msra.mxu0 0
        %708 = vmatprep.subr.bf16.mxu0 0
        %709 = vmatpush1.bf16.msra.mxu0 0
        %710 = vmatprep.subr.bf16.mxu0 0
        %711 = vmatpush1.bf16.msra.mxu0 0
        %712 = vmatprep.subr.bf16.mxu0 0
        %713 = vmatpush1.bf16.msra.mxu0 0
        %714 = vmatprep.subr.bf16.mxu0 0
        %715 = vmatpush1.bf16.msra.mxu0 0
        %716 = vmatprep.subr.bf16.mxu0 0
        %717 = vmatpush1.bf16.msra.mxu0 0
        %718 = vmatprep.mubr.bf16.mxu0 0
        %719 = vmatmul.mubr.bf16.gmra.mrb[0].mxu0 %v617
        %v720 = vpop.f32.mrb[0].mxu0
        %v721 = vadd.f32 0.0, %v720
        %v722 = vpop.f32.mrb[0].mxu0
        %v723 = vpop.f32.mrb[0].mxu0
        %v724 = vadd.f32 0.0, %v723
        %v725 = vpop.f32.mrb[0].mxu0
        %726 = vmatprep.mubr.bf16.mxu0 0
        %727 = vmatmul.mubr.bf16.gmra.mrb[0].mxu0 %v618
        %v728 = vpop.f32.mrb[0].mxu0
        %v729 = vadd.f32 0.0, %v728
        %v730 = vpop.f32.mrb[0].mxu0
        %v731 = vpop.f32.mrb[0].mxu0
        %v732 = vadd.f32 0.0, %v731
        %v733 = vpop.f32.mrb[0].mxu0
        %734 = vmatprep.mubr.bf16.mxu0 0
        %735 = vmatmul.mubr.bf16.gmra.mrb[0].mxu0 %v619
        %v736 = vpop.f32.mrb[0].mxu0
        %v737 = vadd.f32 0.0, %v736
        %v738 = vpop.f32.mrb[0].mxu0
        %v739 = vpop.f32.mrb[0].mxu0
        %v740 = vadd.f32 0.0, %v739
        %v741 = vpop.f32.mrb[0].mxu0
        %742 = vmatprep.mubr.bf16.mxu0 0
        %743 = vmatmul.mubr.bf16.gmra.mrb[0].mxu0 %v620
        %v744 = vpop.f32.mrb[0].mxu0
        %v745 = vadd.f32 0.0, %v744
        %v746 = vpop.f32.mrb[0].mxu0
        %v747 = vpop.f32.mrb[0].mxu0
        %v748 = vadd.f32 0.0, %v747
        %v749 = vpop.f32.mrb[0].mxu0
        %750 = vdwg.mxu0
        %v751 = vadd.f32 %v579, %v721
        %v752 = vadd.f32 %v582, %v724
        %v753 = vadd.f32 %v587, %v729
        %v754 = vadd.f32 %v590, %v732
        %v755 = vadd.f32 %v595, %v737
        %v756 = vadd.f32 %v598, %v740
        %v757 = vadd.f32 %v603, %v745
        %v758 = vadd.f32 %v606, %v748
        %v759 = vld [vmem:[%s317] sm:$0xff]
        %v760 = vld [vmem:[%s317 + $0x10] sm:$0xff]
        %v761 = vld [vmem:[%s317 + $0x20] sm:$0xff]
        %v762 = vld [vmem:[%s317 + $0x30] sm:$0xff]
        %v763 = vld [vmem:[%s317 + $0x40] sm:$0xff]
        %v764 = vld [vmem:[%s317 + $0x50] sm:$0xff]
        %v765 = vld [vmem:[%s317 + $0x60] sm:$0xff]
        %v766 = vld [vmem:[%s317 + $0x70] sm:$0xff]
        %v767 = vpack.c.bf16 %v760, %v759
        %v768 = vpack.c.bf16 %v762, %v761
        %v769 = vpack.c.bf16 %v764, %v763
        %v770 = vpack.c.bf16 %v766, %v765
        %s771 = scalar_lea.vmem [#allocation6], 192
        %v772 = vld [vmem:[%s771] sm:$0xf]
        %v773 = vld [vmem:[%s771 + $0x4] sm:$0xf]
        %v774 = vld [vmem:[%s771 + $0x8] sm:$0xf]
        %v775 = vld [vmem:[%s771 + $0xc] sm:$0xf]
        %v776 = vld [vmem:[%s771 + $0x10] sm:$0xf]
        %v777 = vld [vmem:[%s771 + $0x14] sm:$0xf]
        %v778 = vld [vmem:[%s771 + $0x18] sm:$0xf]
        %v779 = vld [vmem:[%s771 + $0x1c] sm:$0xf]
        %v780 = vld [vmem:[%s771 + $0x20] sm:$0xf]
        %v781 = vld [vmem:[%s771 + $0x24] sm:$0xf]
        %v782 = vld [vmem:[%s771 + $0x28] sm:$0xf]
        %v783 = vld [vmem:[%s771 + $0x2c] sm:$0xf]
        %v784 = vld [vmem:[%s771 + $0x30] sm:$0xf]
        %v785 = vld [vmem:[%s771 + $0x34] sm:$0xf]
        %v786 = vld [vmem:[%s771 + $0x38] sm:$0xf]
        %v787 = vld [vmem:[%s771 + $0x3c] sm:$0xf]
        %v804 = vunpack.c.l.b16 %v772
        %v805 = vunpack.c.l.b16 %v773
        %v806 = vunpack.c.l.b16 %v774
        %v807 = vunpack.c.l.b16 %v775
        %v808 = vunpack.c.l.b16 %v776
        %v809 = vunpack.c.l.b16 %v777
        %v810 = vunpack.c.l.b16 %v778
        %v811 = vunpack.c.l.b16 %v779
        %v812 = vunpack.c.l.b16 %v780
        %v813 = vunpack.c.l.b16 %v781
        %v814 = vunpack.c.l.b16 %v782
        %v815 = vunpack.c.l.b16 %v783
        %v816 = vunpack.c.l.b16 %v784
        %v817 = vunpack.c.l.b16 %v785
        %v818 = vunpack.c.l.b16 %v786
        %v819 = vunpack.c.l.b16 %v787
        %v820 = vpack.c.b16 %v805, %v804
        %v821 = vpack.c.b16 %v807, %v806
        %v822 = vpack.c.b16 %v809, %v808
        %v823 = vpack.c.b16 %v811, %v810
        %v824 = vpack.c.b16 %v813, %v812
        %v825 = vpack.c.b16 %v815, %v814
        %v826 = vpack.c.b16 %v817, %v816
        %v827 = vpack.c.b16 %v819, %v818
        %836 = vmatprep.subr.bf16.mxu0 0
        %837 = vmatpush1.bf16.msra.mxu0 %v820
        %838 = vmatprep.subr.bf16.mxu0 0
        %839 = vmatpush1.bf16.msra.mxu0 %v821
        %840 = vmatprep.subr.bf16.mxu0 0
        %841 = vmatpush1.bf16.msra.mxu0 %v822
        %842 = vmatprep.subr.bf16.mxu0 0
        %843 = vmatpush1.bf16.msra.mxu0 %v823
        %844 = vmatprep.subr.bf16.mxu0 0
        %845 = vmatpush1.bf16.msra.mxu0 %v824
        %846 = vmatprep.subr.bf16.mxu0 0
        %847 = vmatpush1.bf16.msra.mxu0 %v825
        %848 = vmatprep.subr.bf16.mxu0 0
        %849 = vmatpush1.bf16.msra.mxu0 %v826
        %850 = vmatprep.subr.bf16.mxu0 0
        %851 = vmatpush1.bf16.msra.mxu0 %v827
        %852 = vmatprep.subr.bf16.mxu0 0
        %853 = vmatpush1.bf16.msra.mxu0 0
        %854 = vmatprep.subr.bf16.mxu0 0
        %855 = vmatpush1.bf16.msra.mxu0 0
        %856 = vmatprep.subr.bf16.mxu0 0
        %857 = vmatpush1.bf16.msra.mxu0 0
        %858 = vmatprep.subr.bf16.mxu0 0
        %859 = vmatpush1.bf16.msra.mxu0 0
        %860 = vmatprep.subr.bf16.mxu0 0
        %861 = vmatpush1.bf16.msra.mxu0 0
        %862 = vmatprep.subr.bf16.mxu0 0
        %863 = vmatpush1.bf16.msra.mxu0 0
        %864 = vmatprep.subr.bf16.mxu0 0
        %865 = vmatpush1.bf16.msra.mxu0 0
        %866 = vmatprep.subr.bf16.mxu0 0
        %867 = vmatpush1.bf16.msra.mxu0 0
        %868 = vmatprep.mubr.bf16.mxu0 0
        %869 = vmatmul.mubr.bf16.gmra.mrb[0].mxu0 %v767
        %v870 = vpop.f32.mrb[0].mxu0
        %v871 = vadd.f32 0.0, %v870
        %v872 = vpop.f32.mrb[0].mxu0
        %v873 = vpop.f32.mrb[0].mxu0
        %v874 = vadd.f32 0.0, %v873
        %v875 = vpop.f32.mrb[0].mxu0
        %876 = vmatprep.mubr.bf16.mxu0 0
        %877 = vmatmul.mubr.bf16.gmra.mrb[0].mxu0 %v768
        %v878 = vpop.f32.mrb[0].mxu0
        %v879 = vadd.f32 0.0, %v878
        %v880 = vpop.f32.mrb[0].mxu0
        %v881 = vpop.f32.mrb[0].mxu0
        %v882 = vadd.f32 0.0, %v881
        %v883 = vpop.f32.mrb[0].mxu0
        %884 = vmatprep.mubr.bf16.mxu0 0
        %885 = vmatmul.mubr.bf16.gmra.mrb[0].mxu0 %v769
        %v886 = vpop.f32.mrb[0].mxu0
        %v887 = vadd.f32 0.0, %v886
        %v888 = vpop.f32.mrb[0].mxu0
        %v889 = vpop.f32.mrb[0].mxu0
        %v890 = vadd.f32 0.0, %v889
        %v891 = vpop.f32.mrb[0].mxu0
        %892 = vmatprep.mubr.bf16.mxu0 0
        %893 = vmatmul.mubr.bf16.gmra.mrb[0].mxu0 %v770
        %v894 = vpop.f32.mrb[0].mxu0
        %v895 = vadd.f32 0.0, %v894
        %v896 = vpop.f32.mrb[0].mxu0
        %v897 = vpop.f32.mrb[0].mxu0
        %v898 = vadd.f32 0.0, %v897
        %v899 = vpop.f32.mrb[0].mxu0
        %900 = vdwg.mxu0
        %v901 = vadd.f32 %v751, %v871
        %v902 = vadd.f32 %v752, %v874
        %v903 = vadd.f32 %v753, %v879
        %v904 = vadd.f32 %v754, %v882
        %v905 = vadd.f32 %v755, %v887
        %v906 = vadd.f32 %v756, %v890
        %v907 = vadd.f32 %v757, %v895
        %v908 = vadd.f32 %v758, %v898
        %v909 = vld [vmem:[%s317 + $0x1] sm:$0xff]
        %v910 = vld [vmem:[%s317 + $0x11] sm:$0xff]
        %v911 = vld [vmem:[%s317 + $0x21] sm:$0xff]
        %v912 = vld [vmem:[%s317 + $0x31] sm:$0xff]
        %v913 = vld [vmem:[%s317 + $0x41] sm:$0xff]
        %v914 = vld [vmem:[%s317 + $0x51] sm:$0xff]
        %v915 = vld [vmem:[%s317 + $0x61] sm:$0xff]
        %v916 = vld [vmem:[%s317 + $0x71] sm:$0xff]
        %v917 = vpack.c.bf16 %v910, %v909
        %v918 = vpack.c.bf16 %v912, %v911
        %v919 = vpack.c.bf16 %v914, %v913
        %v920 = vpack.c.bf16 %v916, %v915
        %s921 = scalar_lea.vmem [#allocation6], 256
        %v922 = vld [vmem:[%s921] sm:$0xf]
        %v923 = vld [vmem:[%s921 + $0x4] sm:$0xf]
        %v924 = vld [vmem:[%s921 + $0x8] sm:$0xf]
        %v925 = vld [vmem:[%s921 + $0xc] sm:$0xf]
        %v926 = vld [vmem:[%s921 + $0x10] sm:$0xf]
        %v927 = vld [vmem:[%s921 + $0x14] sm:$0xf]
        %v928 = vld [vmem:[%s921 + $0x18] sm:$0xf]
        %v929 = vld [vmem:[%s921 + $0x1c] sm:$0xf]
        %v930 = vld [vmem:[%s921 + $0x20] sm:$0xf]
        %v931 = vld [vmem:[%s921 + $0x24] sm:$0xf]
        %v932 = vld [vmem:[%s921 + $0x28] sm:$0xf]
        %v933 = vld [vmem:[%s921 + $0x2c] sm:$0xf]
        %v934 = vld [vmem:[%s921 + $0x30] sm:$0xf]
        %v935 = vld [vmem:[%s921 + $0x34] sm:$0xf]
        %v936 = vld [vmem:[%s921 + $0x38] sm:$0xf]
        %v937 = vld [vmem:[%s921 + $0x3c] sm:$0xf]
        %v954 = vunpack.c.l.b16 %v922
        %v955 = vunpack.c.l.b16 %v923
        %v956 = vunpack.c.l.b16 %v924
        %v957 = vunpack.c.l.b16 %v925
        %v958 = vunpack.c.l.b16 %v926
        %v959 = vunpack.c.l.b16 %v927
        %v960 = vunpack.c.l.b16 %v928
        %v961 = vunpack.c.l.b16 %v929
        %v962 = vunpack.c.l.b16 %v930
        %v963 = vunpack.c.l.b16 %v931
        %v964 = vunpack.c.l.b16 %v932
        %v965 = vunpack.c.l.b16 %v933
        %v966 = vunpack.c.l.b16 %v934
        %v967 = vunpack.c.l.b16 %v935
        %v968 = vunpack.c.l.b16 %v936
        %v969 = vunpack.c.l.b16 %v937
        %v970 = vpack.c.b16 %v955, %v954
        %v971 = vpack.c.b16 %v957, %v956
        %v972 = vpack.c.b16 %v959, %v958
        %v973 = vpack.c.b16 %v961, %v960
        %v974 = vpack.c.b16 %v963, %v962
        %v975 = vpack.c.b16 %v965, %v964
        %v976 = vpack.c.b16 %v967, %v966
        %v977 = vpack.c.b16 %v969, %v968
        %986 = vmatprep.subr.bf16.mxu0 0
        %987 = vmatpush1.bf16.msra.mxu0 %v970
        %988 = vmatprep.subr.bf16.mxu0 0
        %989 = vmatpush1.bf16.msra.mxu0 %v971
        %990 = vmatprep.subr.bf16.mxu0 0
        %991 = vmatpush1.bf16.msra.mxu0 %v972
        %992 = vmatprep.subr.bf16.mxu0 0
        %993 = vmatpush1.bf16.msra.mxu0 %v973
        %994 = vmatprep.subr.bf16.mxu0 0
        %995 = vmatpush1.bf16.msra.mxu0 %v974
        %996 = vmatprep.subr.bf16.mxu0 0
        %997 = vmatpush1.bf16.msra.mxu0 %v975
        %998 = vmatprep.subr.bf16.mxu0 0
        %999 = vmatpush1.bf16.msra.mxu0 %v976
        %1000 = vmatprep.subr.bf16.mxu0 0
        %1001 = vmatpush1.bf16.msra.mxu0 %v977
        %1002 = vmatprep.subr.bf16.mxu0 0
        %1003 = vmatpush1.bf16.msra.mxu0 0
        %1004 = vmatprep.subr.bf16.mxu0 0
        %1005 = vmatpush1.bf16.msra.mxu0 0
        %1006 = vmatprep.subr.bf16.mxu0 0
        %1007 = vmatpush1.bf16.msra.mxu0 0
        %1008 = vmatprep.subr.bf16.mxu0 0
        %1009 = vmatpush1.bf16.msra.mxu0 0
        %1010 = vmatprep.subr.bf16.mxu0 0
        %1011 = vmatpush1.bf16.msra.mxu0 0
        %1012 = vmatprep.subr.bf16.mxu0 0
        %1013 = vmatpush1.bf16.msra.mxu0 0
        %1014 = vmatprep.subr.bf16.mxu0 0
        %1015 = vmatpush1.bf16.msra.mxu0 0
        %1016 = vmatprep.subr.bf16.mxu0 0
        %1017 = vmatpush1.bf16.msra.mxu0 0
        %1018 = vmatprep.mubr.bf16.mxu0 0
        %1019 = vmatmul.mubr.bf16.gmra.mrb[0].mxu0 %v917
        %v1020 = vpop.f32.mrb[0].mxu0
        %v1021 = vadd.f32 0.0, %v1020
        %v1022 = vpop.f32.mrb[0].mxu0
        %v1023 = vpop.f32.mrb[0].mxu0
        %v1024 = vadd.f32 0.0, %v1023
        %v1025 = vpop.f32.mrb[0].mxu0
        %1026 = vmatprep.mubr.bf16.mxu0 0
        %1027 = vmatmul.mubr.bf16.gmra.mrb[0].mxu0 %v918
        %v1028 = vpop.f32.mrb[0].mxu0
        %v1029 = vadd.f32 0.0, %v1028
        %v1030 = vpop.f32.mrb[0].mxu0
        %v1031 = vpop.f32.mrb[0].mxu0
        %v1032 = vadd.f32 0.0, %v1031
        %v1033 = vpop.f32.mrb[0].mxu0
        %1034 = vmatprep.mubr.bf16.mxu0 0
        %1035 = vmatmul.mubr.bf16.gmra.mrb[0].mxu0 %v919
        %v1036 = vpop.f32.mrb[0].mxu0
        %v1037 = vadd.f32 0.0, %v1036
        %v1038 = vpop.f32.mrb[0].mxu0
        %v1039 = vpop.f32.mrb[0].mxu0
        %v1040 = vadd.f32 0.0, %v1039
        %v1041 = vpop.f32.mrb[0].mxu0
        %1042 = vmatprep.mubr.bf16.mxu0 0
        %1043 = vmatmul.mubr.bf16.gmra.mrb[0].mxu0 %v920
        %v1044 = vpop.f32.mrb[0].mxu0
        %v1045 = vadd.f32 0.0, %v1044
        %v1046 = vpop.f32.mrb[0].mxu0
        %v1047 = vpop.f32.mrb[0].mxu0
        %v1048 = vadd.f32 0.0, %v1047
        %v1049 = vpop.f32.mrb[0].mxu0
        %1050 = vdwg.mxu0
        %v1051 = vadd.f32 %v901, %v1021
        %v1052 = vadd.f32 %v902, %v1024
        %v1053 = vadd.f32 %v903, %v1029
        %v1054 = vadd.f32 %v904, %v1032
        %v1055 = vadd.f32 %v905, %v1037
        %v1056 = vadd.f32 %v906, %v1040
        %v1057 = vadd.f32 %v907, %v1045
        %v1058 = vadd.f32 %v908, %v1048
        %v1059 = vld [vmem:[%s317 + $0x2] sm:$0xff]
        %v1060 = vld [vmem:[%s317 + $0x12] sm:$0xff]
        %v1061 = vld [vmem:[%s317 + $0x22] sm:$0xff]
        %v1062 = vld [vmem:[%s317 + $0x32] sm:$0xff]
        %v1063 = vld [vmem:[%s317 + $0x42] sm:$0xff]
        %v1064 = vld [vmem:[%s317 + $0x52] sm:$0xff]
        %v1065 = vld [vmem:[%s317 + $0x62] sm:$0xff]
        %v1066 = vld [vmem:[%s317 + $0x72] sm:$0xff]
        %v1067 = vpack.c.bf16 %v1060, %v1059
        %v1068 = vpack.c.bf16 %v1062, %v1061
        %v1069 = vpack.c.bf16 %v1064, %v1063
        %v1070 = vpack.c.bf16 %v1066, %v1065
        %s1071 = scalar_lea.vmem [#allocation6], 320
        %v1072 = vld [vmem:[%s1071] sm:$0xf]
        %v1073 = vld [vmem:[%s1071 + $0x4] sm:$0xf]
        %v1074 = vld [vmem:[%s1071 + $0x8] sm:$0xf]
        %v1075 = vld [vmem:[%s1071 + $0xc] sm:$0xf]
        %v1076 = vld [vmem:[%s1071 + $0x10] sm:$0xf]
        %v1077 = vld [vmem:[%s1071 + $0x14] sm:$0xf]
        %v1078 = vld [vmem:[%s1071 + $0x18] sm:$0xf]
        %v1079 = vld [vmem:[%s1071 + $0x1c] sm:$0xf]
        %v1080 = vld [vmem:[%s1071 + $0x20] sm:$0xf]
        %v1081 = vld [vmem:[%s1071 + $0x24] sm:$0xf]
        %v1082 = vld [vmem:[%s1071 + $0x28] sm:$0xf]
        %v1083 = vld [vmem:[%s1071 + $0x2c] sm:$0xf]
        %v1084 = vld [vmem:[%s1071 + $0x30] sm:$0xf]
        %v1085 = vld [vmem:[%s1071 + $0x34] sm:$0xf]
        %v1086 = vld [vmem:[%s1071 + $0x38] sm:$0xf]
        %v1087 = vld [vmem:[%s1071 + $0x3c] sm:$0xf]
        %v1104 = vunpack.c.l.b16 %v1072
        %v1105 = vunpack.c.l.b16 %v1073
        %v1106 = vunpack.c.l.b16 %v1074
        %v1107 = vunpack.c.l.b16 %v1075
        %v1108 = vunpack.c.l.b16 %v1076
        %v1109 = vunpack.c.l.b16 %v1077
        %v1110 = vunpack.c.l.b16 %v1078
        %v1111 = vunpack.c.l.b16 %v1079
        %v1112 = vunpack.c.l.b16 %v1080
        %v1113 = vunpack.c.l.b16 %v1081
        %v1114 = vunpack.c.l.b16 %v1082
        %v1115 = vunpack.c.l.b16 %v1083
        %v1116 = vunpack.c.l.b16 %v1084
        %v1117 = vunpack.c.l.b16 %v1085
        %v1118 = vunpack.c.l.b16 %v1086
        %v1119 = vunpack.c.l.b16 %v1087
        %v1120 = vpack.c.b16 %v1105, %v1104
        %v1121 = vpack.c.b16 %v1107, %v1106
        %v1122 = vpack.c.b16 %v1109, %v1108
        %v1123 = vpack.c.b16 %v1111, %v1110
        %v1124 = vpack.c.b16 %v1113, %v1112
        %v1125 = vpack.c.b16 %v1115, %v1114
        %v1126 = vpack.c.b16 %v1117, %v1116
        %v1127 = vpack.c.b16 %v1119, %v1118
        %1136 = vmatprep.subr.bf16.mxu0 0
        %1137 = vmatpush1.bf16.msra.mxu0 %v1120
        %1138 = vmatprep.subr.bf16.mxu0 0
        %1139 = vmatpush1.bf16.msra.mxu0 %v1121
        %1140 = vmatprep.subr.bf16.mxu0 0
        %1141 = vmatpush1.bf16.msra.mxu0 %v1122
        %1142 = vmatprep.subr.bf16.mxu0 0
        %1143 = vmatpush1.bf16.msra.mxu0 %v1123
        %1144 = vmatprep.subr.bf16.mxu0 0
        %1145 = vmatpush1.bf16.msra.mxu0 %v1124
        %1146 = vmatprep.subr.bf16.mxu0 0
        %1147 = vmatpush1.bf16.msra.mxu0 %v1125
        %1148 = vmatprep.subr.bf16.mxu0 0
        %1149 = vmatpush1.bf16.msra.mxu0 %v1126
        %1150 = vmatprep.subr.bf16.mxu0 0
        %1151 = vmatpush1.bf16.msra.mxu0 %v1127
        %1152 = vmatprep.subr.bf16.mxu0 0
        %1153 = vmatpush1.bf16.msra.mxu0 0
        %1154 = vmatprep.subr.bf16.mxu0 0
        %1155 = vmatpush1.bf16.msra.mxu0 0
        %1156 = vmatprep.subr.bf16.mxu0 0
        %1157 = vmatpush1.bf16.msra.mxu0 0
        %1158 = vmatprep.subr.bf16.mxu0 0
        %1159 = vmatpush1.bf16.msra.mxu0 0
        %1160 = vmatprep.subr.bf16.mxu0 0
        %1161 = vmatpush1.bf16.msra.mxu0 0
        %1162 = vmatprep.subr.bf16.mxu0 0
        %1163 = vmatpush1.bf16.msra.mxu0 0
        %1164 = vmatprep.subr.bf16.mxu0 0
        %1165 = vmatpush1.bf16.msra.mxu0 0
        %1166 = vmatprep.subr.bf16.mxu0 0
        %1167 = vmatpush1.bf16.msra.mxu0 0
        %1168 = vmatprep.mubr.bf16.mxu0 0
        %1169 = vmatmul.mubr.bf16.gmra.mrb[0].mxu0 %v1067
        %v1170 = vpop.f32.mrb[0].mxu0
        %v1171 = vadd.f32 0.0, %v1170
        %v1172 = vpop.f32.mrb[0].mxu0
        %v1173 = vpop.f32.mrb[0].mxu0
        %v1174 = vadd.f32 0.0, %v1173
        %v1175 = vpop.f32.mrb[0].mxu0
        %1176 = vmatprep.mubr.bf16.mxu0 0
        %1177 = vmatmul.mubr.bf16.gmra.mrb[0].mxu0 %v1068
        %v1178 = vpop.f32.mrb[0].mxu0
        %v1179 = vadd.f32 0.0, %v1178
        %v1180 = vpop.f32.mrb[0].mxu0
        %v1181 = vpop.f32.mrb[0].mxu0
        %v1182 = vadd.f32 0.0, %v1181
        %v1183 = vpop.f32.mrb[0].mxu0
        %1184 = vmatprep.mubr.bf16.mxu0 0
        %1185 = vmatmul.mubr.bf16.gmra.mrb[0].mxu0 %v1069
        %v1186 = vpop.f32.mrb[0].mxu0
        %v1187 = vadd.f32 0.0, %v1186
        %v1188 = vpop.f32.mrb[0].mxu0
        %v1189 = vpop.f32.mrb[0].mxu0
        %v1190 = vadd.f32 0.0, %v1189
        %v1191 = vpop.f32.mrb[0].mxu0
        %1192 = vmatprep.mubr.bf16.mxu0 0
        %1193 = vmatmul.mubr.bf16.gmra.mrb[0].mxu0 %v1070
        %v1194 = vpop.f32.mrb[0].mxu0
        %v1195 = vadd.f32 0.0, %v1194
        %v1196 = vpop.f32.mrb[0].mxu0
        %v1197 = vpop.f32.mrb[0].mxu0
        %v1198 = vadd.f32 0.0, %v1197
        %v1199 = vpop.f32.mrb[0].mxu0
        %1200 = vdwg.mxu0
        %v1201 = vadd.f32 %v1051, %v1171
        %v1202 = vadd.f32 %v1052, %v1174
        %v1203 = vadd.f32 %v1053, %v1179
        %v1204 = vadd.f32 %v1054, %v1182
        %v1205 = vadd.f32 %v1055, %v1187
        %v1206 = vadd.f32 %v1056, %v1190
        %v1207 = vadd.f32 %v1057, %v1195
        %v1208 = vadd.f32 %v1058, %v1198
        %s1209 = scalar_lea.vmem [#allocation2], 32
        %v1210 = vld [vmem:[%s1209] sm:$0xff]
        %v1211 = vld [vmem:[%s1209 + $0x10] sm:$0xff]
        %v1212 = vld [vmem:[%s1209 + $0x20] sm:$0xff]
        %v1213 = vld [vmem:[%s1209 + $0x30] sm:$0xff]
        %v1214 = vld [vmem:[%s1209 + $0x40] sm:$0xff]
        %v1215 = vld [vmem:[%s1209 + $0x50] sm:$0xff]
        %v1216 = vld [vmem:[%s1209 + $0x60] sm:$0xff]
        %v1217 = vld [vmem:[%s1209 + $0x70] sm:$0xff]
        %v1218 = vpack.c.bf16 %v1211, %v1210
        %v1219 = vpack.c.bf16 %v1213, %v1212
        %v1220 = vpack.c.bf16 %v1215, %v1214
        %v1221 = vpack.c.bf16 %v1217, %v1216
        %s1222 = scalar_lea.vmem [#allocation6], 384
        %v1223 = vld [vmem:[%s1222] sm:$0xf]
        %v1224 = vld [vmem:[%s1222 + $0x4] sm:$0xf]
        %v1225 = vld [vmem:[%s1222 + $0x8] sm:$0xf]
        %v1226 = vld [vmem:[%s1222 + $0xc] sm:$0xf]
        %v1227 = vld [vmem:[%s1222 + $0x10] sm:$0xf]
        %v1228 = vld [vmem:[%s1222 + $0x14] sm:$0xf]
        %v1229 = vld [vmem:[%s1222 + $0x18] sm:$0xf]
        %v1230 = vld [vmem:[%s1222 + $0x1c] sm:$0xf]
        %v1231 = vld [vmem:[%s1222 + $0x20] sm:$0xf]
        %v1232 = vld [vmem:[%s1222 + $0x24] sm:$0xf]
        %v1233 = vld [vmem:[%s1222 + $0x28] sm:$0xf]
        %v1234 = vld [vmem:[%s1222 + $0x2c] sm:$0xf]
        %v1235 = vld [vmem:[%s1222 + $0x30] sm:$0xf]
        %v1236 = vld [vmem:[%s1222 + $0x34] sm:$0xf]
        %v1237 = vld [vmem:[%s1222 + $0x38] sm:$0xf]
        %v1238 = vld [vmem:[%s1222 + $0x3c] sm:$0xf]
        %v1255 = vunpack.c.l.b16 %v1223
        %v1256 = vunpack.c.l.b16 %v1224
        %v1257 = vunpack.c.l.b16 %v1225
        %v1258 = vunpack.c.l.b16 %v1226
        %v1259 = vunpack.c.l.b16 %v1227
        %v1260 = vunpack.c.l.b16 %v1228
        %v1261 = vunpack.c.l.b16 %v1229
        %v1262 = vunpack.c.l.b16 %v1230
        %v1263 = vunpack.c.l.b16 %v1231
        %v1264 = vunpack.c.l.b16 %v1232
        %v1265 = vunpack.c.l.b16 %v1233
        %v1266 = vunpack.c.l.b16 %v1234
        %v1267 = vunpack.c.l.b16 %v1235
        %v1268 = vunpack.c.l.b16 %v1236
        %v1269 = vunpack.c.l.b16 %v1237
        %v1270 = vunpack.c.l.b16 %v1238
        %v1271 = vpack.c.b16 %v1256, %v1255
        %v1272 = vpack.c.b16 %v1258, %v1257
        %v1273 = vpack.c.b16 %v1260, %v1259
        %v1274 = vpack.c.b16 %v1262, %v1261
        %v1275 = vpack.c.b16 %v1264, %v1263
        %v1276 = vpack.c.b16 %v1266, %v1265
        %v1277 = vpack.c.b16 %v1268, %v1267
        %v1278 = vpack.c.b16 %v1270, %v1269
        %1287 = vmatprep.subr.bf16.mxu0 0
        %1288 = vmatpush1.bf16.msra.mxu0 %v1271
        %1289 = vmatprep.subr.bf16.mxu0 0
        %1290 = vmatpush1.bf16.msra.mxu0 %v1272
        %1291 = vmatprep.subr.bf16.mxu0 0
        %1292 = vmatpush1.bf16.msra.mxu0 %v1273
        %1293 = vmatprep.subr.bf16.mxu0 0
        %1294 = vmatpush1.bf16.msra.mxu0 %v1274
        %1295 = vmatprep.subr.bf16.mxu0 0
        %1296 = vmatpush1.bf16.msra.mxu0 %v1275
        %1297 = vmatprep.subr.bf16.mxu0 0
        %1298 = vmatpush1.bf16.msra.mxu0 %v1276
        %1299 = vmatprep.subr.bf16.mxu0 0
        %1300 = vmatpush1.bf16.msra.mxu0 %v1277
        %1301 = vmatprep.subr.bf16.mxu0 0
        %1302 = vmatpush1.bf16.msra.mxu0 %v1278
        %1303 = vmatprep.subr.bf16.mxu0 0
        %1304 = vmatpush1.bf16.msra.mxu0 0
        %1305 = vmatprep.subr.bf16.mxu0 0
        %1306 = vmatpush1.bf16.msra.mxu0 0
        %1307 = vmatprep.subr.bf16.mxu0 0
        %1308 = vmatpush1.bf16.msra.mxu0 0
        %1309 = vmatprep.subr.bf16.mxu0 0
        %1310 = vmatpush1.bf16.msra.mxu0 0
        %1311 = vmatprep.subr.bf16.mxu0 0
        %1312 = vmatpush1.bf16.msra.mxu0 0
        %1313 = vmatprep.subr.bf16.mxu0 0
        %1314 = vmatpush1.bf16.msra.mxu0 0
        %1315 = vmatprep.subr.bf16.mxu0 0
        %1316 = vmatpush1.bf16.msra.mxu0 0
        %1317 = vmatprep.subr.bf16.mxu0 0
        %1318 = vmatpush1.bf16.msra.mxu0 0
        %1319 = vmatprep.mubr.bf16.mxu0 0
        %1320 = vmatmul.mubr.bf16.gmra.mrb[0].mxu0 %v1218
        %v1321 = vpop.f32.mrb[0].mxu0
        %v1322 = vadd.f32 0.0, %v1321
        %v1323 = vpop.f32.mrb[0].mxu0
        %v1324 = vpop.f32.mrb[0].mxu0
        %v1325 = vadd.f32 0.0, %v1324
        %v1326 = vpop.f32.mrb[0].mxu0
        %1327 = vmatprep.mubr.bf16.mxu0 0
        %1328 = vmatmul.mubr.bf16.gmra.mrb[0].mxu0 %v1219
        %v1329 = vpop.f32.mrb[0].mxu0
        %v1330 = vadd.f32 0.0, %v1329
        %v1331 = vpop.f32.mrb[0].mxu0
        %v1332 = vpop.f32.mrb[0].mxu0
        %v1333 = vadd.f32 0.0, %v1332
        %v1334 = vpop.f32.mrb[0].mxu0
        %1335 = vmatprep.mubr.bf16.mxu0 0
        %1336 = vmatmul.mubr.bf16.gmra.mrb[0].mxu0 %v1220
        %v1337 = vpop.f32.mrb[0].mxu0
        %v1338 = vadd.f32 0.0, %v1337
        %v1339 = vpop.f32.mrb[0].mxu0
        %v1340 = vpop.f32.mrb[0].mxu0
        %v1341 = vadd.f32 0.0, %v1340
        %v1342 = vpop.f32.mrb[0].mxu0
        %1343 = vmatprep.mubr.bf16.mxu0 0
        %1344 = vmatmul.mubr.bf16.gmra.mrb[0].mxu0 %v1221
        %v1345 = vpop.f32.mrb[0].mxu0
        %v1346 = vadd.f32 0.0, %v1345
        %v1347 = vpop.f32.mrb[0].mxu0
        %v1348 = vpop.f32.mrb[0].mxu0
        %v1349 = vadd.f32 0.0, %v1348
        %v1350 = vpop.f32.mrb[0].mxu0
        %1351 = vdwg.mxu0
        %v1352 = vadd.f32 %v1201, %v1322
        %v1353 = vadd.f32 %v1202, %v1325
        %v1354 = vadd.f32 %v1203, %v1330
        %v1355 = vadd.f32 %v1204, %v1333
        %v1356 = vadd.f32 %v1205, %v1338
        %v1357 = vadd.f32 %v1206, %v1341
        %v1358 = vadd.f32 %v1207, %v1346
        %v1359 = vadd.f32 %v1208, %v1349
        %v1360 = vld [vmem:[%s1209 + $0x1] sm:$0xff]
        %v1361 = vld [vmem:[%s1209 + $0x11] sm:$0xff]
        %v1362 = vld [vmem:[%s1209 + $0x21] sm:$0xff]
        %v1363 = vld [vmem:[%s1209 + $0x31] sm:$0xff]
        %v1364 = vld [vmem:[%s1209 + $0x41] sm:$0xff]
        %v1365 = vld [vmem:[%s1209 + $0x51] sm:$0xff]
        %v1366 = vld [vmem:[%s1209 + $0x61] sm:$0xff]
        %v1367 = vld [vmem:[%s1209 + $0x71] sm:$0xff]
        %v1368 = vpack.c.bf16 %v1361, %v1360
        %v1369 = vpack.c.bf16 %v1363, %v1362
        %v1370 = vpack.c.bf16 %v1365, %v1364
        %v1371 = vpack.c.bf16 %v1367, %v1366
        %s1372 = scalar_lea.vmem [#allocation6], 448
        %v1373 = vld [vmem:[%s1372] sm:$0xf]
        %v1374 = vld [vmem:[%s1372 + $0x4] sm:$0xf]
        %v1375 = vld [vmem:[%s1372 + $0x8] sm:$0xf]
        %v1376 = vld [vmem:[%s1372 + $0xc] sm:$0xf]
        %v1377 = vld [vmem:[%s1372 + $0x10] sm:$0xf]
        %v1378 = vld [vmem:[%s1372 + $0x14] sm:$0xf]
        %v1379 = vld [vmem:[%s1372 + $0x18] sm:$0xf]
        %v1380 = vld [vmem:[%s1372 + $0x1c] sm:$0xf]
        %v1381 = vld [vmem:[%s1372 + $0x20] sm:$0xf]
        %v1382 = vld [vmem:[%s1372 + $0x24] sm:$0xf]
        %v1383 = vld [vmem:[%s1372 + $0x28] sm:$0xf]
        %v1384 = vld [vmem:[%s1372 + $0x2c] sm:$0xf]
        %v1385 = vld [vmem:[%s1372 + $0x30] sm:$0xf]
        %v1386 = vld [vmem:[%s1372 + $0x34] sm:$0xf]
        %v1387 = vld [vmem:[%s1372 + $0x38] sm:$0xf]
        %v1388 = vld [vmem:[%s1372 + $0x3c] sm:$0xf]
        %v1405 = vunpack.c.l.b16 %v1373
        %v1406 = vunpack.c.l.b16 %v1374
        %v1407 = vunpack.c.l.b16 %v1375
        %v1408 = vunpack.c.l.b16 %v1376
        %v1409 = vunpack.c.l.b16 %v1377
        %v1410 = vunpack.c.l.b16 %v1378
        %v1411 = vunpack.c.l.b16 %v1379
        %v1412 = vunpack.c.l.b16 %v1380
        %v1413 = vunpack.c.l.b16 %v1381
        %v1414 = vunpack.c.l.b16 %v1382
        %v1415 = vunpack.c.l.b16 %v1383
        %v1416 = vunpack.c.l.b16 %v1384
        %v1417 = vunpack.c.l.b16 %v1385
        %v1418 = vunpack.c.l.b16 %v1386
        %v1419 = vunpack.c.l.b16 %v1387
        %v1420 = vunpack.c.l.b16 %v1388
        %v1421 = vpack.c.b16 %v1406, %v1405
        %v1422 = vpack.c.b16 %v1408, %v1407
        %v1423 = vpack.c.b16 %v1410, %v1409
        %v1424 = vpack.c.b16 %v1412, %v1411
        %v1425 = vpack.c.b16 %v1414, %v1413
        %v1426 = vpack.c.b16 %v1416, %v1415
        %v1427 = vpack.c.b16 %v1418, %v1417
        %v1428 = vpack.c.b16 %v1420, %v1419
        %1437 = vmatprep.subr.bf16.mxu0 0
        %1438 = vmatpush1.bf16.msra.mxu0 %v1421
        %1439 = vmatprep.subr.bf16.mxu0 0
        %1440 = vmatpush1.bf16.msra.mxu0 %v1422
        %1441 = vmatprep.subr.bf16.mxu0 0
        %1442 = vmatpush1.bf16.msra.mxu0 %v1423
        %1443 = vmatprep.subr.bf16.mxu0 0
        %1444 = vmatpush1.bf16.msra.mxu0 %v1424
        %1445 = vmatprep.subr.bf16.mxu0 0
        %1446 = vmatpush1.bf16.msra.mxu0 %v1425
        %1447 = vmatprep.subr.bf16.mxu0 0
        %1448 = vmatpush1.bf16.msra.mxu0 %v1426
        %1449 = vmatprep.subr.bf16.mxu0 0
        %1450 = vmatpush1.bf16.msra.mxu0 %v1427
        %1451 = vmatprep.subr.bf16.mxu0 0
        %1452 = vmatpush1.bf16.msra.mxu0 %v1428
        %1453 = vmatprep.subr.bf16.mxu0 0
        %1454 = vmatpush1.bf16.msra.mxu0 0
        %1455 = vmatprep.subr.bf16.mxu0 0
        %1456 = vmatpush1.bf16.msra.mxu0 0
        %1457 = vmatprep.subr.bf16.mxu0 0
        %1458 = vmatpush1.bf16.msra.mxu0 0
        %1459 = vmatprep.subr.bf16.mxu0 0
        %1460 = vmatpush1.bf16.msra.mxu0 0
        %1461 = vmatprep.subr.bf16.mxu0 0
        %1462 = vmatpush1.bf16.msra.mxu0 0
        %1463 = vmatprep.subr.bf16.mxu0 0
        %1464 = vmatpush1.bf16.msra.mxu0 0
        %1465 = vmatprep.subr.bf16.mxu0 0
        %1466 = vmatpush1.bf16.msra.mxu0 0
        %1467 = vmatprep.subr.bf16.mxu0 0
        %1468 = vmatpush1.bf16.msra.mxu0 0
        %1469 = vmatprep.mubr.bf16.mxu0 0
        %1470 = vmatmul.mubr.bf16.gmra.mrb[0].mxu0 %v1368
        %v1471 = vpop.f32.mrb[0].mxu0
        %v1472 = vadd.f32 0.0, %v1471
        %v1473 = vpop.f32.mrb[0].mxu0
        %v1474 = vpop.f32.mrb[0].mxu0
        %v1475 = vadd.f32 0.0, %v1474
        %v1476 = vpop.f32.mrb[0].mxu0
        %1477 = vmatprep.mubr.bf16.mxu0 0
        %1478 = vmatmul.mubr.bf16.gmra.mrb[0].mxu0 %v1369
        %v1479 = vpop.f32.mrb[0].mxu0
        %v1480 = vadd.f32 0.0, %v1479
        %v1481 = vpop.f32.mrb[0].mxu0
        %v1482 = vpop.f32.mrb[0].mxu0
        %v1483 = vadd.f32 0.0, %v1482
        %v1484 = vpop.f32.mrb[0].mxu0
        %1485 = vmatprep.mubr.bf16.mxu0 0
        %1486 = vmatmul.mubr.bf16.gmra.mrb[0].mxu0 %v1370
        %v1487 = vpop.f32.mrb[0].mxu0
        %v1488 = vadd.f32 0.0, %v1487
        %v1489 = vpop.f32.mrb[0].mxu0
        %v1490 = vpop.f32.mrb[0].mxu0
        %v1491 = vadd.f32 0.0, %v1490
        %v1492 = vpop.f32.mrb[0].mxu0
        %1493 = vmatprep.mubr.bf16.mxu0 0
        %1494 = vmatmul.mubr.bf16.gmra.mrb[0].mxu0 %v1371
        %v1495 = vpop.f32.mrb[0].mxu0
        %v1496 = vadd.f32 0.0, %v1495
        %v1497 = vpop.f32.mrb[0].mxu0
        %v1498 = vpop.f32.mrb[0].mxu0
        %v1499 = vadd.f32 0.0, %v1498
        %v1500 = vpop.f32.mrb[0].mxu0
        %1501 = vdwg.mxu0
        %v1502 = vadd.f32 %v1352, %v1472
        %v1503 = vadd.f32 %v1353, %v1475
        %v1504 = vadd.f32 %v1354, %v1480
        %v1505 = vadd.f32 %v1355, %v1483
        %v1506 = vadd.f32 %v1356, %v1488
        %v1507 = vadd.f32 %v1357, %v1491
        %v1508 = vadd.f32 %v1358, %v1496
        %v1509 = vadd.f32 %v1359, %v1499
        %v1510 = vld [vmem:[%s1209 + $0x2] sm:$0xff]
        %v1511 = vld [vmem:[%s1209 + $0x12] sm:$0xff]
        %v1512 = vld [vmem:[%s1209 + $0x22] sm:$0xff]
        %v1513 = vld [vmem:[%s1209 + $0x32] sm:$0xff]
        %v1514 = vld [vmem:[%s1209 + $0x42] sm:$0xff]
        %v1515 = vld [vmem:[%s1209 + $0x52] sm:$0xff]
        %v1516 = vld [vmem:[%s1209 + $0x62] sm:$0xff]
        %v1517 = vld [vmem:[%s1209 + $0x72] sm:$0xff]
        %v1518 = vpack.c.bf16 %v1511, %v1510
        %v1519 = vpack.c.bf16 %v1513, %v1512
        %v1520 = vpack.c.bf16 %v1515, %v1514
        %v1521 = vpack.c.bf16 %v1517, %v1516
        %s1522 = scalar_lea.vmem [#allocation6], 512
        %v1523 = vld [vmem:[%s1522] sm:$0xf]
        %v1524 = vld [vmem:[%s1522 + $0x4] sm:$0xf]
        %v1525 = vld [vmem:[%s1522 + $0x8] sm:$0xf]
        %v1526 = vld [vmem:[%s1522 + $0xc] sm:$0xf]
        %v1527 = vld [vmem:[%s1522 + $0x10] sm:$0xf]
        %v1528 = vld [vmem:[%s1522 + $0x14] sm:$0xf]
        %v1529 = vld [vmem:[%s1522 + $0x18] sm:$0xf]
        %v1530 = vld [vmem:[%s1522 + $0x1c] sm:$0xf]
        %v1531 = vld [vmem:[%s1522 + $0x20] sm:$0xf]
        %v1532 = vld [vmem:[%s1522 + $0x24] sm:$0xf]
        %v1533 = vld [vmem:[%s1522 + $0x28] sm:$0xf]
        %v1534 = vld [vmem:[%s1522 + $0x2c] sm:$0xf]
        %v1535 = vld [vmem:[%s1522 + $0x30] sm:$0xf]
        %v1536 = vld [vmem:[%s1522 + $0x34] sm:$0xf]
        %v1537 = vld [vmem:[%s1522 + $0x38] sm:$0xf]
        %v1538 = vld [vmem:[%s1522 + $0x3c] sm:$0xf]
        %v1555 = vunpack.c.l.b16 %v1523
        %v1556 = vunpack.c.l.b16 %v1524
        %v1557 = vunpack.c.l.b16 %v1525
        %v1558 = vunpack.c.l.b16 %v1526
        %v1559 = vunpack.c.l.b16 %v1527
        %v1560 = vunpack.c.l.b16 %v1528
        %v1561 = vunpack.c.l.b16 %v1529
        %v1562 = vunpack.c.l.b16 %v1530
        %v1563 = vunpack.c.l.b16 %v1531
        %v1564 = vunpack.c.l.b16 %v1532
        %v1565 = vunpack.c.l.b16 %v1533
        %v1566 = vunpack.c.l.b16 %v1534
        %v1567 = vunpack.c.l.b16 %v1535
        %v1568 = vunpack.c.l.b16 %v1536
        %v1569 = vunpack.c.l.b16 %v1537
        %v1570 = vunpack.c.l.b16 %v1538
        %v1571 = vpack.c.b16 %v1556, %v1555
        %v1572 = vpack.c.b16 %v1558, %v1557
        %v1573 = vpack.c.b16 %v1560, %v1559
        %v1574 = vpack.c.b16 %v1562, %v1561
        %v1575 = vpack.c.b16 %v1564, %v1563
        %v1576 = vpack.c.b16 %v1566, %v1565
        %v1577 = vpack.c.b16 %v1568, %v1567
        %v1578 = vpack.c.b16 %v1570, %v1569
        %1587 = vmatprep.subr.bf16.mxu0 0
        %1588 = vmatpush1.bf16.msra.mxu0 %v1571
        %1589 = vmatprep.subr.bf16.mxu0 0
        %1590 = vmatpush1.bf16.msra.mxu0 %v1572
        %1591 = vmatprep.subr.bf16.mxu0 0
        %1592 = vmatpush1.bf16.msra.mxu0 %v1573
        %1593 = vmatprep.subr.bf16.mxu0 0
        %1594 = vmatpush1.bf16.msra.mxu0 %v1574
        %1595 = vmatprep.subr.bf16.mxu0 0
        %1596 = vmatpush1.bf16.msra.mxu0 %v1575
        %1597 = vmatprep.subr.bf16.mxu0 0
        %1598 = vmatpush1.bf16.msra.mxu0 %v1576
        %1599 = vmatprep.subr.bf16.mxu0 0
        %1600 = vmatpush1.bf16.msra.mxu0 %v1577
        %1601 = vmatprep.subr.bf16.mxu0 0
        %1602 = vmatpush1.bf16.msra.mxu0 %v1578
        %1603 = vmatprep.subr.bf16.mxu0 0
        %1604 = vmatpush1.bf16.msra.mxu0 0
        %1605 = vmatprep.subr.bf16.mxu0 0
        %1606 = vmatpush1.bf16.msra.mxu0 0
        %1607 = vmatprep.subr.bf16.mxu0 0
        %1608 = vmatpush1.bf16.msra.mxu0 0
        %1609 = vmatprep.subr.bf16.mxu0 0
        %1610 = vmatpush1.bf16.msra.mxu0 0
        %1611 = vmatprep.subr.bf16.mxu0 0
        %1612 = vmatpush1.bf16.msra.mxu0 0
        %1613 = vmatprep.subr.bf16.mxu0 0
        %1614 = vmatpush1.bf16.msra.mxu0 0
        %1615 = vmatprep.subr.bf16.mxu0 0
        %1616 = vmatpush1.bf16.msra.mxu0 0
        %1617 = vmatprep.subr.bf16.mxu0 0
        %1618 = vmatpush1.bf16.msra.mxu0 0
        %1619 = vmatprep.mubr.bf16.mxu0 0
        %1620 = vmatmul.mubr.bf16.gmra.mrb[0].mxu0 %v1518
        %v1621 = vpop.f32.mrb[0].mxu0
        %v1622 = vadd.f32 0.0, %v1621
        %v1623 = vpop.f32.mrb[0].mxu0
        %v1624 = vpop.f32.mrb[0].mxu0
        %v1625 = vadd.f32 0.0, %v1624
        %v1626 = vpop.f32.mrb[0].mxu0
        %1627 = vmatprep.mubr.bf16.mxu0 0
        %1628 = vmatmul.mubr.bf16.gmra.mrb[0].mxu0 %v1519
        %v1629 = vpop.f32.mrb[0].mxu0
        %v1630 = vadd.f32 0.0, %v1629
        %v1631 = vpop.f32.mrb[0].mxu0
        %v1632 = vpop.f32.mrb[0].mxu0
        %v1633 = vadd.f32 0.0, %v1632
        %v1634 = vpop.f32.mrb[0].mxu0
        %1635 = vmatprep.mubr.bf16.mxu0 0
        %1636 = vmatmul.mubr.bf16.gmra.mrb[0].mxu0 %v1520
        %v1637 = vpop.f32.mrb[0].mxu0
        %v1638 = vadd.f32 0.0, %v1637
        %v1639 = vpop.f32.mrb[0].mxu0
        %v1640 = vpop.f32.mrb[0].mxu0
        %v1641 = vadd.f32 0.0, %v1640
        %v1642 = vpop.f32.mrb[0].mxu0
        %1643 = vmatprep.mubr.bf16.mxu0 0
        %1644 = vmatmul.mubr.bf16.gmra.mrb[0].mxu0 %v1521
        %v1645 = vpop.f32.mrb[0].mxu0
        %v1646 = vadd.f32 0.0, %v1645
        %v1647 = vpop.f32.mrb[0].mxu0
        %v1648 = vpop.f32.mrb[0].mxu0
        %v1649 = vadd.f32 0.0, %v1648
        %v1650 = vpop.f32.mrb[0].mxu0
        %1651 = vdwg.mxu0
        %v1652 = vadd.f32 %v1502, %v1622
        %v1653 = vadd.f32 %v1503, %v1625
        %v1654 = vadd.f32 %v1504, %v1630
        %v1655 = vadd.f32 %v1505, %v1633
        %v1656 = vadd.f32 %v1506, %v1638
        %v1657 = vadd.f32 %v1507, %v1641
        %v1658 = vadd.f32 %v1508, %v1646
        %v1659 = vadd.f32 %v1509, %v1649
        %1660 = vst [vmem:[%s246] sm:$0xff] %v1652
        %1661 = vst [vmem:[%s246 + $0x8] sm:$0xff] %v1653
        %1662 = vst [vmem:[%s246 + $0x10] sm:$0xff] %v1654
        %1663 = vst [vmem:[%s246 + $0x18] sm:$0xff] %v1655
        %1664 = vst [vmem:[%s246 + $0x20] sm:$0xff] %v1656
        %1665 = vst [vmem:[%s246 + $0x28] sm:$0xff] %v1657
        %1666 = vst [vmem:[%s246 + $0x30] sm:$0xff] %v1658
        %1667 = vst [vmem:[%s246 + $0x38] sm:$0xff] %v1659
        %v1668 = vadd.f32 %v1652, %v1653
        %v1669 = vadd.f32 %v1668, %v1654
        %v1670 = vadd.f32 %v1669, %v1655
        %v1671 = vadd.f32 %v1670, %v1656
        %v1672 = vadd.f32 %v1671, %v1657
        %v1673 = vadd.f32 %v1672, %v1658
        %v1674 = vadd.f32 %v1673, %v1659
        %v1675 = vrot.slane %v1674, 4
        %v1676 = vadd.f32 %v1674, %v1675
        %v1677 = vrot.slane %v1676, 2
        %v1678 = vadd.f32 %v1676, %v1677
        %v1679 = vrot.slane %v1678, 1
        %v1680 = vadd.f32 %v1678, %v1679
        %1681 = vst [vmem:[%s253] sm:$0x1] %v1680
        %v1682 = vmul.f32 %v1652, %v1652
        %v1683 = vmul.f32 %v1653, %v1653
        %v1684 = vmul.f32 %v1654, %v1654
        %v1685 = vmul.f32 %v1655, %v1655
        %v1686 = vmul.f32 %v1656, %v1656
        %v1687 = vmul.f32 %v1657, %v1657
        %v1688 = vmul.f32 %v1658, %v1658
        %v1689 = vmul.f32 %v1659, %v1659
        %v1690 = vadd.f32 %v1682, %v1683
        %v1691 = vadd.f32 %v1690, %v1684
        %v1692 = vadd.f32 %v1691, %v1685
        %v1693 = vadd.f32 %v1692, %v1686
        %v1694 = vadd.f32 %v1693, %v1687
        %v1695 = vadd.f32 %v1694, %v1688
        %v1696 = vadd.f32 %v1695, %v1689
        %v1697 = vrot.slane %v1696, 4
        %v1698 = vadd.f32 %v1696, %v1697
        %v1699 = vrot.slane %v1698, 2
        %v1700 = vadd.f32 %v1698, %v1699
        %v1701 = vrot.slane %v1700, 1
        %v1702 = vadd.f32 %v1700, %v1701
        %1703 = vst [vmem:[%s253 + $0x1] sm:$0x1] %v1702
        %s1704 = sand.u32 %s102, 1
        %s1705 = scalar_lea.sflag [#allocation5], %s1704
        %s1706 = sand.u32 %s102, 1
        %s1707 = smul.addr %s1706, 64
        %s1708 = scalar_lea.vmem [#allocation9], %s1707
        %s1709 = sand.u32 %s128, 1
        %s1710 = scalar_lea.sflag [#allocation11], %s1709
        %s1711 = sand.u32 %s128, 1
        %s1712 = smul.addr %s1711, 2
        %s1713 = scalar_lea.vmem [#allocation10], %s1712
        // Predicated region
        $region45: #{neural_resnet34_bottleneck_forward.4} parent=31 // pred_check
          %p1714 = pneg %p112
        $region46: #{neural_resnet34_bottleneck_forward.4} parent=31 // pred_check_branch
          %1716 = sbr.rel (%p1714) target = $region48
        $region47: #{neural_resnet34_bottleneck_forward.4} parent=31 // pred_region
          %s1718 = ssub.s32 1024, 1024
          %1719 = vsyncadd %s1705, %s1718
          %s1720 = smul.addr %s26, 8
          %s1721 = smul.addr %s1720, 128
          %s1722 = scalar_lea.hbm %s3, %s1721
          %s1723 = sshll.u32 %s1708, 4
          %s1724 = int_to_ptr.vmem [resolvable:$true] %s1723
          %1729 = dma.vmem_to_hbm [thread:$0]  %s1724, 1024, %s1722, %s1705, 128, 128, 8
        $region48: #{neural_resnet34_bottleneck_forward.4} parent=31 // pred_fallthru
          _
        // Predicated region
        $region49: #{neural_resnet34_bottleneck_forward.4} parent=31 // pred_check
          %p1730 = pneg %p138
        $region50: #{neural_resnet34_bottleneck_forward.4} parent=31 // pred_check_branch
          %1732 = sbr.rel (%p1730) target = $region52
        $region51: #{neural_resnet34_bottleneck_forward.4} parent=31 // pred_region
          %s1734 = ssub.s32 32, 32
          %1735 = vsyncadd %s1710, %s1734
          %s1736 = smul.addr %s26, 32
          %s1737 = scalar_lea.hbm %s4, %s1736
          %s1739 = sshll.u32 %s1713, 4
          %s1740 = int_to_ptr.vmem [resolvable:$true] %s1739
          %1742 = dma.vmem_to_hbm [thread:$0]  %s1740, 32, %s1737, %s1710
        $region52: #{neural_resnet34_bottleneck_forward.4} parent=31 // pred_fallthru
          _
      $region32: #{neural_resnet34_bottleneck_forward.4} parent=5 // pred_fallthru
        _
      %p1743 = scmp.le.s32.totalorder 2, %s21
      // Predicated region
      $region53: #{neural_resnet34_bottleneck_forward.4} parent=5 // pred_check
        %p1744 = pneg %p1743
      $region54: #{neural_resnet34_bottleneck_forward.4} parent=5 // pred_check_branch
        %1746 = sbr.rel (%p1744) target = $region56
      $region55: #{neural_resnet34_bottleneck_forward.4} parent=5 // pred_region
        %s1747 = ssub.s32 %s21, 2
        // Predicated region
        $region57: #{neural_resnet34_bottleneck_forward.4} parent=55 // pred_check
          %p1748 = pneg %p118
        $region58: #{neural_resnet34_bottleneck_forward.4} parent=55 // pred_check_branch
          %1750 = sbr.rel (%p1748) target = $region60
        $region59: #{neural_resnet34_bottleneck_forward.4} parent=55 // pred_region
          %s1751 = sand.u32 %s103, 1
          %s1752 = scalar_lea.sflag [#allocation5], %s1751
          %s1753 = sand.u32 %s103, 1
          %s1754 = smul.addr %s1753, 64
          %s1755 = scalar_lea.vmem [#allocation9], %s1754
          %1756 = dma.done %s1752, 1024
        $region60: #{neural_resnet34_bottleneck_forward.4} parent=55 // pred_fallthru
          _
        // Predicated region
        $region61: #{neural_resnet34_bottleneck_forward.4} parent=55 // pred_check
          %p1757 = pneg %p144
        $region62: #{neural_resnet34_bottleneck_forward.4} parent=55 // pred_check_branch
          %1759 = sbr.rel (%p1757) target = $region64
        $region63: #{neural_resnet34_bottleneck_forward.4} parent=55 // pred_region
          %s1760 = sand.u32 %s129, 1
          %s1761 = scalar_lea.sflag [#allocation11], %s1760
          %s1762 = sand.u32 %s129, 1
          %s1763 = smul.addr %s1762, 2
          %s1764 = scalar_lea.vmem [#allocation10], %s1763
          %1765 = dma.done %s1761, 32
        $region64: #{neural_resnet34_bottleneck_forward.4} parent=55 // pred_fallthru
          _
      $region56: #{neural_resnet34_bottleneck_forward.4} parent=5 // pred_fallthru
        _
    $region6: #{neural_resnet34_bottleneck_forward.4} parent=1 // loop_footer
      %s25 = sadd.s32 1, %s21
    $region7: #{neural_resnet34_bottleneck_forward.4} parent=1 // loop_footer_branch
      %20 = sbr.rel target = $region3
    $region8: #{neural_resnet34_bottleneck_forward.4} parent=1 // loop_exit
      _
    %1766 = vsyncpa [#allocation4], 1
    %s1767 = scalar_lea.sflag [#allocation4], 1
    %1768 = vsyncpa %s1767, 1
    %1769 = vsyncpa [#allocation7], 1
    %1770 = vsyncpa [#allocation5], 1
    %s1771 = scalar_lea.sflag [#allocation5], 1
    %1772 = vsyncpa %s1771, 1
    %1773 = vsyncpa [#allocation11], 1
    %s1774 = scalar_lea.sflag [#allocation11], 1
    %1775 = vsyncpa %s1774, 1

</llo_original>
